<compile_context>
chip_gen: v7x
topology: tpu7x:2x2x1
jax: 0.10.0
libtpu: 0.0.40
codegen_flags: <defaults>
</compile_context>

<pallas_src>
import math

import jax
import jax.numpy as jnp
from jax.experimental import pallas as pl
from jax.experimental.pallas import tpu as pltpu

VOCAB = 256
D_MODEL = 10
N_HEAD = 2
HEAD_DIM = D_MODEL // N_HEAD
D_FF = 2048          # nn.TransformerEncoderLayer default dim_feedforward
EPS = 1e-5           # default layer_norm_eps
LANE = 128           # padded channel width (one vreg lane tile)
NEG_INF = -1e30

# fused-weight 128-wide column blocks: [ x | q_h0 | q_h1 | k_h0 | k_h1 | v'_h0 | v'_h1 ]
N_BLOCKS = 1 + 3 * N_HEAD

# row indices inside the packed "small rows" (16, 128) array
ROW_BQ = 0                      # rows 0..N_HEAD-1 : q bias per head (head dims in lanes 0..4)
ROW_BK = N_HEAD                 # rows 2..3        : k bias per head
ROW_ATTN_B = 2 * N_HEAD         # 4 : bo + bv @ Wo (output-proj bias, folded)
ROW_LN1_G = ROW_ATTN_B + 1      # 5
ROW_LN1_B = ROW_ATTN_B + 2      # 6
ROW_LN2_G = ROW_ATTN_B + 3      # 7
ROW_LN2_B = ROW_ATTN_B + 4      # 8
ROW_FF2_B = ROW_ATTN_B + 5      # 9
N_SMALL_ROWS = 16


# --------------------------------------------------------------------------- kernel
def dummy_llm_kernel(ids_ref, wf_ref, rows_ref, amask_ref,
                     w1_ref, b1_ref, w2_ref, wl_ref, bl_ref, out_ref):
    R = ids_ref.shape[0]                                  # rows in this tile (= TILE_B * S)

    # ---- fused embedding + QKV (+ Wo-folded V): one K=256 MXU matmul ----------------
    ids = ids_ref[...]                                    # (R, 1) int32
    tok = jax.lax.broadcasted_iota(jnp.int32, (R, VOCAB), 1)
    onehot = (tok == ids).astype(jnp.float32)             # (R, 256)
    y = jnp.dot(onehot, wf_ref[...],
                preferred_element_type=jnp.float32)       # (R, 7*128)

    x = y[:, :LANE]                                       # embedding, real data in lanes 0..9

    # lane mask so LayerNorm statistics run over the 10 real channels, not 128
    lane_id = jax.lax.broadcasted_iota(jnp.int32, (1, LANE), 1)
    dmask = (lane_id < D_MODEL).astype(jnp.float32)       # (1, 128)

    # ---- 2-head self-attention, unrolled, 2-D matmuls only --------------------------
    scale = 1.0 / math.sqrt(HEAD_DIM)
    mask_add = amask_ref[...]                             # (R, R): 0 same batch, -1e30 otherwise
    attn = jnp.zeros((R, LANE), jnp.float32)
    for h in range(N_HEAD):
        qh = (y[:, (1 + h) * LANE:(2 + h) * LANE]
              + rows_ref[ROW_BQ + h:ROW_BQ + h + 1, :])
        kh = (y[:, (1 + N_HEAD + h) * LANE:(2 + N_HEAD + h) * LANE]
              + rows_ref[ROW_BK + h:ROW_BK + h + 1, :])
        vh = y[:, (1 + 2 * N_HEAD + h) * LANE:(2 + 2 * N_HEAD + h) * LANE]  # Wo pre-folded

        s = jax.lax.dot_general(qh, kh, (((1,), (1,)), ((), ())),
                                preferred_element_type=jnp.float32) * scale   # (R, R)
        s = s + mask_add
        m = jnp.max(s, axis=-1, keepdims=True)
        e = jnp.exp(s - m)
        l = jnp.sum(e, axis=-1, keepdims=True)
        p = e * pl.reciprocal(l, approx=True)             # EUP reciprocal (free slot)
        attn = attn + jnp.dot(p, vh, preferred_element_type=jnp.float32)
    attn = attn + rows_ref[ROW_ATTN_B:ROW_ATTN_B + 1, :]  # bo + bv @ Wo (folded host-side)

    def layernorm(z, grow, brow):
        mu = jnp.sum(z, axis=-1, keepdims=True) * (1.0 / D_MODEL)
        c = (z - mu) * dmask                              # keep padded lanes exactly zero
        var = jnp.sum(c * c, axis=-1, keepdims=True) * (1.0 / D_MODEL)   # biased (PyTorch)
        return c * jax.lax.rsqrt(var + EPS) * grow + brow

    # ---- residual + LayerNorm 1 (norm_first=False; dropout == identity) -------------
    x1 = layernorm(x + attn,
                   rows_ref[ROW_LN1_G:ROW_LN1_G + 1, :],
                   rows_ref[ROW_LN1_B:ROW_LN1_B + 1, :])

    # ---- feed-forward: relu(x W1 + b1) W2 + b2  (bf16 operands, f32 accumulation) ----
    h1 = jnp.dot(x1.astype(jnp.bfloat16), w1_ref[...],
                 preferred_element_type=jnp.float32) + b1_ref[...]
    h1 = jnp.maximum(h1, 0.0)                             # (R, 2048), lane-dense
    ff = (jnp.dot(h1.astype(jnp.bfloat16), w2_ref[...],
                  preferred_element_type=jnp.float32)
          + rows_ref[ROW_FF2_B:ROW_FF2_B + 1, :])

    # ---- residual + LayerNorm 2 -------------------------------------------------------
    x2 = layernorm(x1 + ff,
                   rows_ref[ROW_LN2_G:ROW_LN2_G + 1, :],
                   rows_ref[ROW_LN2_B:ROW_LN2_B + 1, :])

    # ---- final vocab projection (lane-dense (R, 256) output) --------------------------
    out_ref[...] = jnp.dot(x2.astype(jnp.bfloat16), wl_ref[...],
                           preferred_element_type=jnp.float32) + bl_ref[...]


# --------------------------------------------------------------------------- host-side prep
def _pad_cols(a, width=LANE):
    return jnp.pad(a, ((0, 0), (0, width - a.shape[1])))


def _pad_rows(a, height=LANE):
    return jnp.pad(a, ((0, height - a.shape[0]), (0, 0)))


def _row(v, width=LANE):
    return jnp.pad(v, (0, width - v.shape[0])).reshape(1, width)


def _pick_tile_b(B, S, max_rows=512):
    """Batch elements per grid step.  Keeps whole sequences together, caps rows per tile
    (VMEM / vreg pressure incl. the (rows, 2048) FFN activation), and keeps the sublane
    constraint (rows % 8 == 0) whenever the grid has more than one step."""
    if B * S <= max_rows:
        return B
    cands = [tb for tb in range(1, B)
             if B % tb == 0 and tb * S <= max_rows and (tb * S) % 8 == 0]
    return max(cands) if cands else B


def _prepare_weights(params):
    emb = params['emb']                                   # (256, 10)
    wq, wk, wv = jnp.split(params['in_proj_w'], 3, axis=0)
    bq, bk, bv = jnp.split(params['in_proj_b'], 3, axis=0)
    wot = params['out_proj_w'].T                          # (10, 10) rows = merged-head dim
    bo = params['out_proj_b']

    aq = emb @ wq.T                                       # (256, 10)  emb -> q
    ak = emb @ wk.T
    av = emb @ wv.T

    blocks = [_pad_cols(emb)]
    blocks += [_pad_cols(aq[:, h * HEAD_DIM:(h + 1) * HEAD_DIM]) for h in range(N_HEAD)]
    blocks += [_pad_cols(ak[:, h * HEAD_DIM:(h + 1) * HEAD_DIM]) for h in range(N_HEAD)]
    blocks += [_pad_cols(av[:, h * HEAD_DIM:(h + 1) * HEAD_DIM]
                         @ wot[h * HEAD_DIM:(h + 1) * HEAD_DIM, :]) for h in range(N_HEAD)]
    w_fused = jnp.concatenate(blocks, axis=1)             # (256, 7*128) f32

    attn_bias = bo
    for h in range(N_HEAD):
        attn_bias = attn_bias + (bv[h * HEAD_DIM:(h + 1) * HEAD_DIM]
                                 @ wot[h * HEAD_DIM:(h + 1) * HEAD_DIM, :])

    small = jnp.concatenate(
        [_row(bq[h * HEAD_DIM:(h + 1) * HEAD_DIM]) for h in range(N_HEAD)]
        + [_row(bk[h * HEAD_DIM:(h + 1) * HEAD_DIM]) for h in range(N_HEAD)]
        + [_row(attn_bias),
           _row(params['ln1_g']), _row(params['ln1_b']),
           _row(params['ln2_g']), _row(params['ln2_b']),
           _row(params['ff2_b']),
           jnp.zeros((N_SMALL_ROWS - (2 * N_HEAD + 6), LANE), jnp.float32)],
        axis=0)                                           # (16, 128) f32

    w1 = _pad_rows(params['ff1_w'].T).astype(jnp.bfloat16)   # (128, 2048)
    b1 = params['ff1_b'].reshape(1, D_FF).astype(jnp.float32)
    w2 = _pad_cols(params['ff2_w'].T).astype(jnp.bfloat16)   # (2048, 128)
    wl = _pad_rows(params['lin_w'].T).astype(jnp.bfloat16)   # (128, 256)
    bl = params['lin_b'].reshape(1, VOCAB).astype(jnp.float32)
    return w_fused, small, w1, b1, w2, wl, bl


def init_params(key):
    """Deterministic synthetic parameters with PyTorch-default-like init."""
    ks = jax.random.split(key, 12)

    def u(k, shape, fan_in):
        bound = 1.0 / math.sqrt(fan_in)
        return jax.random.uniform(k, shape, jnp.float32, -bound, bound)

    return dict(
        emb=jax.random.normal(ks[0], (VOCAB, D_MODEL), jnp.float32),
        in_proj_w=u(ks[1], (3 * D_MODEL, D_MODEL), D_MODEL),
        in_proj_b=u(ks[2], (3 * D_MODEL,), D_MODEL),
        out_proj_w=u(ks[3], (D_MODEL, D_MODEL), D_MODEL),
        out_proj_b=u(ks[4], (D_MODEL,), D_MODEL),
        ln1_g=jnp.ones((D_MODEL,), jnp.float32),
        ln1_b=jnp.zeros((D_MODEL,), jnp.float32),
        ln2_g=jnp.ones((D_MODEL,), jnp.float32),
        ln2_b=jnp.zeros((D_MODEL,), jnp.float32),
        ff1_w=u(ks[5], (D_FF, D_MODEL), D_MODEL),
        ff1_b=u(ks[6], (D_FF,), D_MODEL),
        ff2_w=u(ks[7], (D_MODEL, D_FF), D_FF),
        ff2_b=u(ks[8], (D_MODEL,), D_FF),
        lin_w=u(ks[9], (VOCAB, D_MODEL), D_MODEL),
        lin_b=u(ks[10], (VOCAB,), D_MODEL),
    )


@jax.jit
def dummy_llm_forward(input_ids, params):
    A0, A1 = input_ids.shape
    S, B = A0, A1                      # batch_first=False: dim0 = seq, dim1 = batch
    N = S * B
    tile_b = _pick_tile_b(B, S)
    rows = tile_b * S
    grid = (B // tile_b,)

    # batch-major row order (row = b*S + s) so each grid step owns complete sequences
    ids = input_ids.T.reshape(N, 1).astype(jnp.int32)

    w_fused, small, w1, b1, w2, wl, bl = _prepare_weights(params)

    # additive attention mask: a token attends only within its own batch element
    bid = jnp.arange(rows, dtype=jnp.int32) // S
    amask = jnp.where(bid[:, None] == bid[None, :], 0.0, NEG_INF).astype(jnp.float32)

    flops = 2 * N * (VOCAB * N_BLOCKS * LANE          # fused embedding/QKV matmul
                     + 2 * N_HEAD * rows * LANE       # attention scores + PV
                     + 2 * LANE * D_FF                # FFN
                     + LANE * VOCAB)                  # vocab projection
    transcendentals = N * (N_HEAD * rows + 4)
    bytes_accessed = (w_fused.size * 4 + small.size * 4 + amask.size * 4
                      + w1.size * 2 + b1.size * 4 + w2.size * 2
                      + wl.size * 2 + bl.size * 4 + N * 4 + N * VOCAB * 4)

    def resident(arr):
        nd = arr.ndim
        return pl.BlockSpec(arr.shape, lambda i, nd=nd: (0,) * nd)

    logits_flat = pl.pallas_call(
        dummy_llm_kernel,
        out_shape=jax.ShapeDtypeStruct((N, VOCAB), jnp.float32),
        grid=grid,
        in_specs=[
            pl.BlockSpec((rows, 1), lambda i: (i, 0)),        # token ids, tiled over batch
            resident(w_fused), resident(small), resident(amask),
            resident(w1), resident(b1), resident(w2), resident(wl), resident(bl),
        ],
        out_specs=pl.BlockSpec((rows, VOCAB), lambda i: (i, 0)),
        compiler_params=pltpu.CompilerParams(
            dimension_semantics=("parallel",)),               # v7x: shard tiles over 2 TCs
        cost_estimate=pl.CostEstimate(flops=flops,
                                      transcendentals=transcendentals,
                                      bytes_accessed=bytes_accessed),
    )(ids, w_fused, small, amask, w1, b1, w2, wl, bl)

    # (B, S, V) batch-major -> (A0, A1, V) = (seq, batch, vocab), matching the module output
    return logits_flat.reshape(B, S, VOCAB).transpose(1, 0, 2)


if __name__ == "__main__":
    key = jax.random.PRNGKey(0)
    pkey, ikey = jax.random.split(key)
    params = init_params(pkey)

    # Small "tokenized prompt" (mirrors DummyTokenizer.encode output dtype): shape (2, 8).
    input_ids = jax.random.randint(ikey, (2, 8), 0, VOCAB, dtype=jnp.int32)

    logits = dummy_llm_forward(input_ids, params)
    jax.block_until_ready(logits)
    assert logits.shape == (2, 8, VOCAB) and logits.dtype == jnp.float32
    print("KERNEL_OK")
</pallas_src>

<mosaic_0001>
module attributes {stable_mosaic.version = 11 : i64} {
  func.func @dummy_llm_kernel(%arg0: i32, %arg1: memref<16x1xi32, #tpu.memory_space<vmem>>, %arg2: memref<256x896xf32, #tpu.memory_space<vmem>>, %arg3: memref<16x128xf32, #tpu.memory_space<vmem>>, %arg4: memref<16x16xf32, #tpu.memory_space<vmem>>, %arg5: memref<128x2048xbf16, #tpu.memory_space<vmem>>, %arg6: memref<1x2048xf32, #tpu.memory_space<vmem>>, %arg7: memref<2048x128xbf16, #tpu.memory_space<vmem>>, %arg8: memref<128x256xbf16, #tpu.memory_space<vmem>>, %arg9: memref<1x256xf32, #tpu.memory_space<vmem>>, %arg10: memref<16x256xf32, #tpu.memory_space<vmem>>) attributes {dimension_semantics = [#tpu.dimension_semantics<parallel>], iteration_bounds = array<i64: 1>, scalar_prefetch = 0 : i64, scratch_operands = 0 : i64, tpu.core_type = #tpu.core_type<tc>, window_params = [{transform_indices = @transform_0, window_bounds = array<i64: 16, 1>}, {pipeline_mode = #tpu.pipeline_mode<synchronous>, transform_indices = @transform_1, window_bounds = array<i64: 256, 896>}, {pipeline_mode = #tpu.pipeline_mode<synchronous>, transform_indices = @transform_2, window_bounds = array<i64: 16, 128>}, {pipeline_mode = #tpu.pipeline_mode<synchronous>, transform_indices = @transform_3, window_bounds = array<i64: 16, 16>}, {pipeline_mode = #tpu.pipeline_mode<synchronous>, transform_indices = @transform_4, window_bounds = array<i64: 128, 2048>}, {pipeline_mode = #tpu.pipeline_mode<synchronous>, transform_indices = @transform_5, window_bounds = array<i64: 1, 2048>}, {pipeline_mode = #tpu.pipeline_mode<synchronous>, transform_indices = @transform_6, window_bounds = array<i64: 2048, 128>}, {pipeline_mode = #tpu.pipeline_mode<synchronous>, transform_indices = @transform_7, window_bounds = array<i64: 128, 256>}, {pipeline_mode = #tpu.pipeline_mode<synchronous>, transform_indices = @transform_8, window_bounds = array<i64: 1, 256>}, {transform_indices = @transform_9, window_bounds = array<i64: 16, 256>}]} {
    %c0 = arith.constant 0 : index
    %c0_0 = arith.constant 0 : index
    %0 = vector.load %arg1[%c0, %c0_0] : memref<16x1xi32, #tpu.memory_space<vmem>>, vector<16x1xi32>
    %1 = tpu.iota {dimensions = array<i32: 1>} : vector<16x256xi32>
    %2 = vector.broadcast %0 : vector<16x1xi32> to vector<16x256xi32>
    %3 = arith.cmpi eq, %1, %2 : vector<16x256xi32>
    %4 = arith.extui %3 : vector<16x256xi1> to vector<16x256xi32>
    %5 = arith.sitofp %4 : vector<16x256xi32> to vector<16x256xf32>
    %c0_1 = arith.constant 0 : index
    %c0_2 = arith.constant 0 : index
    %6 = vector.load %arg2[%c0_1, %c0_2] : memref<256x896xf32, #tpu.memory_space<vmem>>, vector<256x896xf32>
    %cst = arith.constant dense<0.000000e+00> : vector<16x896xf32>
    %7 = tpu.matmul %5, %6, %cst {dimension_numbers = #tpu.dot_dimension_numbers<[1], [0], [0], [1], [0, 0, 1, 1], [], []>} : vector<16x256xf32>, vector<256x896xf32>, vector<16x896xf32> -> vector<16x896xf32>
    %8 = vector.extract_strided_slice %7 {offsets = [0, 0], sizes = [16, 128], strides = [1, 1]} : vector<16x896xf32> to vector<16x128xf32>
    %9 = tpu.iota {dimensions = array<i32: 1>} : vector<1x128xi32>
    %c10_i32 = arith.constant 10 : i32
    %10 = vector.broadcast %c10_i32 : i32 to vector<1x128xi32>
    %11 = arith.cmpi slt, %9, %10 : vector<1x128xi32>
    %12 = arith.extui %11 : vector<1x128xi1> to vector<1x128xi32>
    %13 = arith.sitofp %12 : vector<1x128xi32> to vector<1x128xf32>
    %c0_3 = arith.constant 0 : index
    %c0_4 = arith.constant 0 : index
    %14 = vector.load %arg4[%c0_3, %c0_4] : memref<16x16xf32, #tpu.memory_space<vmem>>, vector<16x16xf32>
    %cst_5 = arith.constant 0.000000e+00 : f32
    %15 = vector.broadcast %cst_5 : f32 to vector<16x128xf32>
    %16 = vector.extract_strided_slice %7 {offsets = [0, 128], sizes = [16, 128], strides = [1, 1]} : vector<16x896xf32> to vector<16x128xf32>
    %c0_6 = arith.constant 0 : index
    %c0_7 = arith.constant 0 : index
    %17 = vector.load %arg3[%c0_6, %c0_7] : memref<16x128xf32, #tpu.memory_space<vmem>>, vector<1x128xf32>
    %18 = vector.broadcast %17 : vector<1x128xf32> to vector<16x128xf32>
    %19 = arith.addf %16, %18 : vector<16x128xf32>
    %20 = vector.extract_strided_slice %7 {offsets = [0, 384], sizes = [16, 128], strides = [1, 1]} : vector<16x896xf32> to vector<16x128xf32>
    %c2 = arith.constant 2 : index
    %c0_8 = arith.constant 0 : index
    %21 = vector.load %arg3[%c2, %c0_8] : memref<16x128xf32, #tpu.memory_space<vmem>>, vector<1x128xf32>
    %22 = vector.broadcast %21 : vector<1x128xf32> to vector<16x128xf32>
    %23 = arith.addf %20, %22 : vector<16x128xf32>
    %24 = vector.extract_strided_slice %7 {offsets = [0, 640], sizes = [16, 128], strides = [1, 1]} : vector<16x896xf32> to vector<16x128xf32>
    %cst_9 = arith.constant dense<0.000000e+00> : vector<16x16xf32>
    %25 = tpu.matmul %19, %23, %cst_9 {dimension_numbers = #tpu.dot_dimension_numbers<[1], [1], [0], [0], [0, 0, 1, 0], [], []>} : vector<16x128xf32>, vector<16x128xf32>, vector<16x16xf32> -> vector<16x16xf32>
    %cst_10 = arith.constant 0.44721359 : f32
    %26 = vector.broadcast %cst_10 : f32 to vector<16x16xf32>
    %27 = arith.mulf %25, %26 : vector<16x16xf32>
    %28 = arith.addf %27, %14 : vector<16x16xf32>
    %cst_11 = arith.constant dense<0xFF800000> : vector<16xf32>
    %29 = vector.multi_reduction <maximumf>, %28, %cst_11 [1] : vector<16x16xf32> to vector<16xf32>
    %30 = vector.shape_cast %29 : vector<16xf32> to vector<16x1xf32>
    %31 = vector.broadcast %30 : vector<16x1xf32> to vector<16x16xf32>
    %32 = arith.subf %28, %31 : vector<16x16xf32>
    %33 = math.exp %32 : vector<16x16xf32>
    %cst_12 = arith.constant dense<0.000000e+00> : vector<16xf32>
    %34 = vector.multi_reduction <add>, %33, %cst_12 [1] : vector<16x16xf32> to vector<16xf32>
    %35 = vector.shape_cast %34 : vector<16xf32> to vector<16x1xf32>
    %36 = tpu.reciprocal %35 {approx = true} : vector<16x1xf32> -> vector<16x1xf32>
    %37 = vector.broadcast %36 : vector<16x1xf32> to vector<16x16xf32>
    %38 = arith.mulf %33, %37 : vector<16x16xf32>
    %cst_13 = arith.constant dense<0.000000e+00> : vector<16x128xf32>
    %39 = tpu.matmul %38, %24, %cst_13 {dimension_numbers = #tpu.dot_dimension_numbers<[1], [0], [0], [1], [0, 0, 1, 1], [], []>} : vector<16x16xf32>, vector<16x128xf32>, vector<16x128xf32> -> vector<16x128xf32>
    %40 = arith.addf %15, %39 : vector<16x128xf32>
    %41 = vector.extract_strided_slice %7 {offsets = [0, 256], sizes = [16, 128], strides = [1, 1]} : vector<16x896xf32> to vector<16x128xf32>
    %c1 = arith.constant 1 : index
    %c0_14 = arith.constant 0 : index
    %42 = vector.load %arg3[%c1, %c0_14] : memref<16x128xf32, #tpu.memory_space<vmem>>, vector<1x128xf32>
    %43 = vector.broadcast %42 : vector<1x128xf32> to vector<16x128xf32>
    %44 = arith.addf %41, %43 : vector<16x128xf32>
    %45 = vector.extract_strided_slice %7 {offsets = [0, 512], sizes = [16, 128], strides = [1, 1]} : vector<16x896xf32> to vector<16x128xf32>
    %c3 = arith.constant 3 : index
    %c0_15 = arith.constant 0 : index
    %46 = vector.load %arg3[%c3, %c0_15] : memref<16x128xf32, #tpu.memory_space<vmem>>, vector<1x128xf32>
    %47 = vector.broadcast %46 : vector<1x128xf32> to vector<16x128xf32>
    %48 = arith.addf %45, %47 : vector<16x128xf32>
    %49 = vector.extract_strided_slice %7 {offsets = [0, 768], sizes = [16, 128], strides = [1, 1]} : vector<16x896xf32> to vector<16x128xf32>
    %cst_16 = arith.constant dense<0.000000e+00> : vector<16x16xf32>
    %50 = tpu.matmul %44, %48, %cst_16 {dimension_numbers = #tpu.dot_dimension_numbers<[1], [1], [0], [0], [0, 0, 1, 0], [], []>} : vector<16x128xf32>, vector<16x128xf32>, vector<16x16xf32> -> vector<16x16xf32>
    %cst_17 = arith.constant 0.44721359 : f32
    %51 = vector.broadcast %cst_17 : f32 to vector<16x16xf32>
    %52 = arith.mulf %50, %51 : vector<16x16xf32>
    %53 = arith.addf %52, %14 : vector<16x16xf32>
    %cst_18 = arith.constant dense<0xFF800000> : vector<16xf32>
    %54 = vector.multi_reduction <maximumf>, %53, %cst_18 [1] : vector<16x16xf32> to vector<16xf32>
    %55 = vector.shape_cast %54 : vector<16xf32> to vector<16x1xf32>
    %56 = vector.broadcast %55 : vector<16x1xf32> to vector<16x16xf32>
    %57 = arith.subf %53, %56 : vector<16x16xf32>
    %58 = math.exp %57 : vector<16x16xf32>
    %cst_19 = arith.constant dense<0.000000e+00> : vector<16xf32>
    %59 = vector.multi_reduction <add>, %58, %cst_19 [1] : vector<16x16xf32> to vector<16xf32>
    %60 = vector.shape_cast %59 : vector<16xf32> to vector<16x1xf32>
    %61 = tpu.reciprocal %60 {approx = true} : vector<16x1xf32> -> vector<16x1xf32>
    %62 = vector.broadcast %61 : vector<16x1xf32> to vector<16x16xf32>
    %63 = arith.mulf %58, %62 : vector<16x16xf32>
    %cst_20 = arith.constant dense<0.000000e+00> : vector<16x128xf32>
    %64 = tpu.matmul %63, %49, %cst_20 {dimension_numbers = #tpu.dot_dimension_numbers<[1], [0], [0], [1], [0, 0, 1, 1], [], []>} : vector<16x16xf32>, vector<16x128xf32>, vector<16x128xf32> -> vector<16x128xf32>
    %65 = arith.addf %40, %64 : vector<16x128xf32>
    %c4 = arith.constant 4 : index
    %c0_21 = arith.constant 0 : index
    %66 = vector.load %arg3[%c4, %c0_21] : memref<16x128xf32, #tpu.memory_space<vmem>>, vector<1x128xf32>
    %67 = vector.broadcast %66 : vector<1x128xf32> to vector<16x128xf32>
    %68 = arith.addf %65, %67 : vector<16x128xf32>
    %69 = arith.addf %8, %68 : vector<16x128xf32>
    %c5 = arith.constant 5 : index
    %c0_22 = arith.constant 0 : index
    %70 = vector.load %arg3[%c5, %c0_22] : memref<16x128xf32, #tpu.memory_space<vmem>>, vector<1x128xf32>
    %c6 = arith.constant 6 : index
    %c0_23 = arith.constant 0 : index
    %71 = vector.load %arg3[%c6, %c0_23] : memref<16x128xf32, #tpu.memory_space<vmem>>, vector<1x128xf32>
    %cst_24 = arith.constant dense<0.000000e+00> : vector<16xf32>
    %72 = vector.multi_reduction <add>, %69, %cst_24 [1] : vector<16x128xf32> to vector<16xf32>
    %73 = vector.shape_cast %72 : vector<16xf32> to vector<16x1xf32>
    %cst_25 = arith.constant 1.000000e-01 : f32
    %74 = vector.broadcast %cst_25 : f32 to vector<16x1xf32>
    %75 = arith.mulf %73, %74 : vector<16x1xf32>
    %76 = vector.broadcast %75 : vector<16x1xf32> to vector<16x128xf32>
    %77 = arith.subf %69, %76 : vector<16x128xf32>
    %78 = vector.broadcast %13 : vector<1x128xf32> to vector<16x128xf32>
    %79 = arith.mulf %77, %78 : vector<16x128xf32>
    %80 = arith.mulf %79, %79 : vector<16x128xf32>
    %cst_26 = arith.constant dense<0.000000e+00> : vector<16xf32>
    %81 = vector.multi_reduction <add>, %80, %cst_26 [1] : vector<16x128xf32> to vector<16xf32>
    %82 = vector.shape_cast %81 : vector<16xf32> to vector<16x1xf32>
    %cst_27 = arith.constant 1.000000e-01 : f32
    %83 = vector.broadcast %cst_27 : f32 to vector<16x1xf32>
    %84 = arith.mulf %82, %83 : vector<16x1xf32>
    %cst_28 = arith.constant 9.99999974E-6 : f32
    %85 = vector.broadcast %cst_28 : f32 to vector<16x1xf32>
    %86 = arith.addf %84, %85 : vector<16x1xf32>
    %87 = math.rsqrt %86 : vector<16x1xf32>
    %88 = vector.broadcast %87 : vector<16x1xf32> to vector<16x128xf32>
    %89 = arith.mulf %79, %88 : vector<16x128xf32>
    %90 = vector.broadcast %70 : vector<1x128xf32> to vector<16x128xf32>
    %91 = arith.mulf %89, %90 : vector<16x128xf32>
    %92 = vector.broadcast %71 : vector<1x128xf32> to vector<16x128xf32>
    %93 = arith.addf %91, %92 : vector<16x128xf32>
    %94 = arith.truncf %93 : vector<16x128xf32> to vector<16x128xbf16>
    %c0_29 = arith.constant 0 : index
    %c0_30 = arith.constant 0 : index
    %95 = vector.load %arg5[%c0_29, %c0_30] : memref<128x2048xbf16, #tpu.memory_space<vmem>>, vector<128x2048xbf16>
    %cst_31 = arith.constant dense<0.000000e+00> : vector<16x2048xf32>
    %96 = tpu.matmul %94, %95, %cst_31 {dimension_numbers = #tpu.dot_dimension_numbers<[1], [0], [0], [1], [0, 0, 1, 1], [], []>} : vector<16x128xbf16>, vector<128x2048xbf16>, vector<16x2048xf32> -> vector<16x2048xf32>
    %c0_32 = arith.constant 0 : index
    %c0_33 = arith.constant 0 : index
    %97 = vector.load %arg6[%c0_32, %c0_33] : memref<1x2048xf32, #tpu.memory_space<vmem>>, vector<1x2048xf32>
    %98 = vector.broadcast %97 : vector<1x2048xf32> to vector<16x2048xf32>
    %99 = arith.addf %96, %98 : vector<16x2048xf32>
    %cst_34 = arith.constant 0.000000e+00 : f32
    %100 = vector.broadcast %cst_34 : f32 to vector<16x2048xf32>
    %101 = arith.maximumf %99, %100 : vector<16x2048xf32>
    %102 = arith.truncf %101 : vector<16x2048xf32> to vector<16x2048xbf16>
    %c0_35 = arith.constant 0 : index
    %c0_36 = arith.constant 0 : index
    %103 = vector.load %arg7[%c0_35, %c0_36] : memref<2048x128xbf16, #tpu.memory_space<vmem>>, vector<2048x128xbf16>
    %cst_37 = arith.constant dense<0.000000e+00> : vector<16x128xf32>
    %104 = tpu.matmul %102, %103, %cst_37 {dimension_numbers = #tpu.dot_dimension_numbers<[1], [0], [0], [1], [0, 0, 1, 1], [], []>} : vector<16x2048xbf16>, vector<2048x128xbf16>, vector<16x128xf32> -> vector<16x128xf32>
    %c9 = arith.constant 9 : index
    %c0_38 = arith.constant 0 : index
    %105 = vector.load %arg3[%c9, %c0_38] : memref<16x128xf32, #tpu.memory_space<vmem>>, vector<1x128xf32>
    %106 = vector.broadcast %105 : vector<1x128xf32> to vector<16x128xf32>
    %107 = arith.addf %104, %106 : vector<16x128xf32>
    %108 = arith.addf %93, %107 : vector<16x128xf32>
    %c7 = arith.constant 7 : index
    %c0_39 = arith.constant 0 : index
    %109 = vector.load %arg3[%c7, %c0_39] : memref<16x128xf32, #tpu.memory_space<vmem>>, vector<1x128xf32>
    %c8 = arith.constant 8 : index
    %c0_40 = arith.constant 0 : index
    %110 = vector.load %arg3[%c8, %c0_40] : memref<16x128xf32, #tpu.memory_space<vmem>>, vector<1x128xf32>
    %cst_41 = arith.constant dense<0.000000e+00> : vector<16xf32>
    %111 = vector.multi_reduction <add>, %108, %cst_41 [1] : vector<16x128xf32> to vector<16xf32>
    %112 = vector.shape_cast %111 : vector<16xf32> to vector<16x1xf32>
    %cst_42 = arith.constant 1.000000e-01 : f32
    %113 = vector.broadcast %cst_42 : f32 to vector<16x1xf32>
    %114 = arith.mulf %112, %113 : vector<16x1xf32>
    %115 = vector.broadcast %114 : vector<16x1xf32> to vector<16x128xf32>
    %116 = arith.subf %108, %115 : vector<16x128xf32>
    %117 = vector.broadcast %13 : vector<1x128xf32> to vector<16x128xf32>
    %118 = arith.mulf %116, %117 : vector<16x128xf32>
    %119 = arith.mulf %118, %118 : vector<16x128xf32>
    %cst_43 = arith.constant dense<0.000000e+00> : vector<16xf32>
    %120 = vector.multi_reduction <add>, %119, %cst_43 [1] : vector<16x128xf32> to vector<16xf32>
    %121 = vector.shape_cast %120 : vector<16xf32> to vector<16x1xf32>
    %cst_44 = arith.constant 1.000000e-01 : f32
    %122 = vector.broadcast %cst_44 : f32 to vector<16x1xf32>
    %123 = arith.mulf %121, %122 : vector<16x1xf32>
    %cst_45 = arith.constant 9.99999974E-6 : f32
    %124 = vector.broadcast %cst_45 : f32 to vector<16x1xf32>
    %125 = arith.addf %123, %124 : vector<16x1xf32>
    %126 = math.rsqrt %125 : vector<16x1xf32>
    %127 = vector.broadcast %126 : vector<16x1xf32> to vector<16x128xf32>
    %128 = arith.mulf %118, %127 : vector<16x128xf32>
    %129 = vector.broadcast %109 : vector<1x128xf32> to vector<16x128xf32>
    %130 = arith.mulf %128, %129 : vector<16x128xf32>
    %131 = vector.broadcast %110 : vector<1x128xf32> to vector<16x128xf32>
    %132 = arith.addf %130, %131 : vector<16x128xf32>
    %133 = arith.truncf %132 : vector<16x128xf32> to vector<16x128xbf16>
    %c0_46 = arith.constant 0 : index
    %c0_47 = arith.constant 0 : index
    %134 = vector.load %arg8[%c0_46, %c0_47] : memref<128x256xbf16, #tpu.memory_space<vmem>>, vector<128x256xbf16>
    %cst_48 = arith.constant dense<0.000000e+00> : vector<16x256xf32>
    %135 = tpu.matmul %133, %134, %cst_48 {dimension_numbers = #tpu.dot_dimension_numbers<[1], [0], [0], [1], [0, 0, 1, 1], [], []>} : vector<16x128xbf16>, vector<128x256xbf16>, vector<16x256xf32> -> vector<16x256xf32>
    %c0_49 = arith.constant 0 : index
    %c0_50 = arith.constant 0 : index
    %136 = vector.load %arg9[%c0_49, %c0_50] : memref<1x256xf32, #tpu.memory_space<vmem>>, vector<1x256xf32>
    %137 = vector.broadcast %136 : vector<1x256xf32> to vector<16x256xf32>
    %138 = arith.addf %135, %137 : vector<16x256xf32>
    %c0_51 = arith.constant 0 : index
    %c0_52 = arith.constant 0 : index
    %139 = vector.load %arg10[%c0_51, %c0_52] : memref<16x256xf32, #tpu.memory_space<vmem>>, vector<16x256xf32>
    tpu.vector_store %arg10[%c0_51, %c0_52], %138 {strides = array<i32>} : memref<16x256xf32, #tpu.memory_space<vmem>>, vector<16x256xf32>,
    return
  }
  func.func @transform_0(%arg0: i32) -> (i32, i32) {
    %c0_i32 = arith.constant 0 : i32
    %c0_i32_0 = arith.constant 0 : i32
    return %arg0, %c0_i32 : i32, i32
  }
  func.func @transform_1(%arg0: i32) -> (i32, i32) {
    %c0_i32 = arith.constant 0 : i32
    %c0_i32_0 = arith.constant 0 : i32
    %c0_i32_1 = arith.constant 0 : i32
    return %c0_i32, %c0_i32_0 : i32, i32
  }
  func.func @transform_2(%arg0: i32) -> (i32, i32) {
    %c0_i32 = arith.constant 0 : i32
    %c0_i32_0 = arith.constant 0 : i32
    %c0_i32_1 = arith.constant 0 : i32
    return %c0_i32, %c0_i32_0 : i32, i32
  }
  func.func @transform_3(%arg0: i32) -> (i32, i32) {
    %c0_i32 = arith.constant 0 : i32
    %c0_i32_0 = arith.constant 0 : i32
    %c0_i32_1 = arith.constant 0 : i32
    return %c0_i32, %c0_i32_0 : i32, i32
  }
  func.func @transform_4(%arg0: i32) -> (i32, i32) {
    %c0_i32 = arith.constant 0 : i32
    %c0_i32_0 = arith.constant 0 : i32
    %c0_i32_1 = arith.constant 0 : i32
    return %c0_i32, %c0_i32_0 : i32, i32
  }
  func.func @transform_5(%arg0: i32) -> (i32, i32) {
    %c0_i32 = arith.constant 0 : i32
    %c0_i32_0 = arith.constant 0 : i32
    %c0_i32_1 = arith.constant 0 : i32
    return %c0_i32, %c0_i32_0 : i32, i32
  }
  func.func @transform_6(%arg0: i32) -> (i32, i32) {
    %c0_i32 = arith.constant 0 : i32
    %c0_i32_0 = arith.constant 0 : i32
    %c0_i32_1 = arith.constant 0 : i32
    return %c0_i32, %c0_i32_0 : i32, i32
  }
  func.func @transform_7(%arg0: i32) -> (i32, i32) {
    %c0_i32 = arith.constant 0 : i32
    %c0_i32_0 = arith.constant 0 : i32
    %c0_i32_1 = arith.constant 0 : i32
    return %c0_i32, %c0_i32_0 : i32, i32
  }
  func.func @transform_8(%arg0: i32) -> (i32, i32) {
    %c0_i32 = arith.constant 0 : i32
    %c0_i32_0 = arith.constant 0 : i32
    %c0_i32_1 = arith.constant 0 : i32
    return %c0_i32, %c0_i32_0 : i32, i32
  }
  func.func @transform_9(%arg0: i32) -> (i32, i32) {
    %c0_i32 = arith.constant 0 : i32
    %c0_i32_0 = arith.constant 0 : i32
    return %arg0, %c0_i32 : i32, i32
  }
}

</mosaic_0001>

<llo_original>
// kernel: dummy_llm_forward.1
$region0: #{dummy_llm_forward.1}
  #allocation0 [shape = 'u32[]', space=smem, size = 0x4, offset = 0x4, fixed_abs, tag = 'smem constant byte address 0x4 - core index']
  #allocation1 [shape = 'u32[144,128]{1,0:T(1,128)}', space=vmem, size = 0x12000, scoped, tag = 'internal scratch']
  %s0 = inlined_call_operand.vmem [shape: s32[16,1], index: 0, kind: input, shape index: {}]
  %s1 = inlined_call_operand.vmem [shape: f32[256,896], index: 1, kind: input, shape index: {}]
  %s2 = inlined_call_operand.vmem [shape: f32[16,128], index: 2, kind: input, shape index: {}]
  %s3 = inlined_call_operand.vmem [shape: f32[16,16], index: 3, kind: input, shape index: {}]
  %s4 = inlined_call_operand.vmem [shape: bf16[128,2048], index: 4, kind: input, shape index: {}]
  %s5 = inlined_call_operand.vmem [shape: f32[1,2048], index: 5, kind: input, shape index: {}]
  %s6 = inlined_call_operand.vmem [shape: bf16[2048,128], index: 6, kind: input, shape index: {}]
  %s7 = inlined_call_operand.vmem [shape: bf16[128,256], index: 7, kind: input, shape index: {}]
  %s8 = inlined_call_operand.vmem [shape: f32[1,256], index: 8, kind: input, shape index: {}]
  %s9 = inlined_call_operand.vmem [shape: f32[16,256], index: 9, kind: output, shape index: {}]
  %s10 = sld [smem:[#allocation0]]
  $region46: #{dummy_llm_forward.1} parent=0
    _
  %s12 = ssub.s32 1, %s10
  %s13 = scalar_select 0, %s12, %s10
  // Predicated region
  $region2: #{dummy_llm_forward.1} parent=0 // pred_check
    _
  $region3: #{dummy_llm_forward.1} parent=0 // pred_check_branch
    %15 = sbr.rel (0) target = $region5
  $region4: #{dummy_llm_forward.1} parent=0 // pred_region
    _
  $region5: #{dummy_llm_forward.1} parent=0 // pred_fallthru
    _
  // Predicated region
  $region6: #{dummy_llm_forward.1} parent=0 // pred_check
    _
  $region7: #{dummy_llm_forward.1} parent=0 // pred_check_branch
    %17 = sbr.rel (0) target = $region9
  $region8: #{dummy_llm_forward.1} parent=0 // pred_region
    _
  $region9: #{dummy_llm_forward.1} parent=0 // pred_fallthru
    _
  // Predicated region
  $region10: #{dummy_llm_forward.1} parent=0 // pred_check
    _
  $region11: #{dummy_llm_forward.1} parent=0 // pred_check_branch
    %19 = sbr.rel (0) target = $region13
  $region12: #{dummy_llm_forward.1} parent=0 // pred_region
    _
  $region13: #{dummy_llm_forward.1} parent=0 // pred_fallthru
    _
  // Predicated region
  $region14: #{dummy_llm_forward.1} parent=0 // pred_check
    _
  $region15: #{dummy_llm_forward.1} parent=0 // pred_check_branch
    %21 = sbr.rel (0) target = $region17
  $region16: #{dummy_llm_forward.1} parent=0 // pred_region
    _
  $region17: #{dummy_llm_forward.1} parent=0 // pred_fallthru
    _
  // Predicated region
  $region18: #{dummy_llm_forward.1} parent=0 // pred_check
    _
  $region19: #{dummy_llm_forward.1} parent=0 // pred_check_branch
    %23 = sbr.rel (0) target = $region21
  $region20: #{dummy_llm_forward.1} parent=0 // pred_region
    _
  $region21: #{dummy_llm_forward.1} parent=0 // pred_fallthru
    _
  // Predicated region
  $region22: #{dummy_llm_forward.1} parent=0 // pred_check
    _
  $region23: #{dummy_llm_forward.1} parent=0 // pred_check_branch
    %25 = sbr.rel (0) target = $region25
  $region24: #{dummy_llm_forward.1} parent=0 // pred_region
    _
  $region25: #{dummy_llm_forward.1} parent=0 // pred_fallthru
    _
  // Predicated region
  $region26: #{dummy_llm_forward.1} parent=0 // pred_check
    _
  $region27: #{dummy_llm_forward.1} parent=0 // pred_check_branch
    %27 = sbr.rel (0) target = $region29
  $region28: #{dummy_llm_forward.1} parent=0 // pred_region
    _
  $region29: #{dummy_llm_forward.1} parent=0 // pred_fallthru
    _
  // Predicated region
  $region30: #{dummy_llm_forward.1} parent=0 // pred_check
    _
  $region31: #{dummy_llm_forward.1} parent=0 // pred_check_branch
    %29 = sbr.rel (0) target = $region33
  $region32: #{dummy_llm_forward.1} parent=0 // pred_region
    _
  $region33: #{dummy_llm_forward.1} parent=0 // pred_fallthru
    _
  // Predicated region
  $region34: #{dummy_llm_forward.1} parent=0 // pred_check
    _
  $region35: #{dummy_llm_forward.1} parent=0 // pred_check_branch
    %31 = sbr.rel (0) target = $region37
  $region36: #{dummy_llm_forward.1} parent=0 // pred_region
    _
  $region37: #{dummy_llm_forward.1} parent=0 // pred_fallthru
    _
  %v33 = vld [vmem:[%s0] sm:$0xff]
  %v34 = vld [vmem:[%s0 + $0x8] sm:$0xff]
  %v35 = vlaneseq
  %v36 = vand.u32 %v35, 127
  %v37 = vadd.s32 %v36, 128
  %38 = vset.pattern.permute.xlu0 0
  %39 = vperm.xlu0 %38, %v33
  %v40 = vpop.permute.xlu0 %39
  %41 = vset.pattern.permute.xlu0 0
  %42 = vperm.xlu0 %41, %v34
  %v43 = vpop.permute.xlu0 %42
  %vm44 = vcmp.eq.s32.totalorder %v36, %v40
  %vm45 = vcmp.eq.s32.totalorder %v37, %v40
  %vm46 = vcmp.eq.s32.totalorder %v36, %v43
  %vm47 = vcmp.eq.s32.totalorder %v37, %v43
  %v48 = vsel %vm44, 1, 0
  %v49 = vsel %vm45, 1, 0
  %v50 = vsel %vm46, 1, 0
  %v51 = vsel %vm47, 1, 0
  %v52 = vcvt.s32.f32 %v48
  %v53 = vcvt.s32.f32 %v49
  %v54 = vcvt.s32.f32 %v50
  %v55 = vcvt.s32.f32 %v51
  %v56 = vld [vmem:[%s1] sm:$0xff]
  %v57 = vld [vmem:[%s1 + $0x8] sm:$0xff]
  %v58 = vld [vmem:[%s1 + $0x10] sm:$0xff]
  %v59 = vld [vmem:[%s1 + $0x18] sm:$0xff]
  %v60 = vld [vmem:[%s1 + $0x20] sm:$0xff]
  %v61 = vld [vmem:[%s1 + $0x28] sm:$0xff]
  %v62 = vld [vmem:[%s1 + $0x30] sm:$0xff]
  %v63 = vld [vmem:[%s1 + $0x38] sm:$0xff]
  %v64 = vld [vmem:[%s1 + $0x40] sm:$0xff]
  %v65 = vld [vmem:[%s1 + $0x48] sm:$0xff]
  %v66 = vld [vmem:[%s1 + $0x50] sm:$0xff]
  %v67 = vld [vmem:[%s1 + $0x58] sm:$0xff]
  %v68 = vld [vmem:[%s1 + $0x60] sm:$0xff]
  %v69 = vld [vmem:[%s1 + $0x68] sm:$0xff]
  %v70 = vld [vmem:[%s1 + $0x70] sm:$0xff]
  %v71 = vld [vmem:[%s1 + $0x78] sm:$0xff]
  %v72 = vld [vmem:[%s1 + $0x80] sm:$0xff]
  %v73 = vld [vmem:[%s1 + $0x88] sm:$0xff]
  %v74 = vld [vmem:[%s1 + $0x90] sm:$0xff]
  %v75 = vld [vmem:[%s1 + $0x98] sm:$0xff]
  %v76 = vld [vmem:[%s1 + $0xa0] sm:$0xff]
  %v77 = vld [vmem:[%s1 + $0xa8] sm:$0xff]
  %v78 = vld [vmem:[%s1 + $0xb0] sm:$0xff]
  %v79 = vld [vmem:[%s1 + $0xb8] sm:$0xff]
  %v80 = vld [vmem:[%s1 + $0xc0] sm:$0xff]
  %v81 = vld [vmem:[%s1 + $0xc8] sm:$0xff]
  %v82 = vld [vmem:[%s1 + $0xd0] sm:$0xff]
  %v83 = vld [vmem:[%s1 + $0xd8] sm:$0xff]
  %v84 = vld [vmem:[%s1 + $0xe0] sm:$0xff]
  %v85 = vld [vmem:[%s1 + $0xe8] sm:$0xff]
  %v86 = vld [vmem:[%s1 + $0xf0] sm:$0xff]
  %v87 = vld [vmem:[%s1 + $0xf8] sm:$0xff]
  %v88 = vld [vmem:[%s1 + $0x100] sm:$0xff]
  %v89 = vld [vmem:[%s1 + $0x108] sm:$0xff]
  %v90 = vld [vmem:[%s1 + $0x110] sm:$0xff]
  %v91 = vld [vmem:[%s1 + $0x118] sm:$0xff]
  %v92 = vld [vmem:[%s1 + $0x120] sm:$0xff]
  %v93 = vld [vmem:[%s1 + $0x128] sm:$0xff]
  %v94 = vld [vmem:[%s1 + $0x130] sm:$0xff]
  %v95 = vld [vmem:[%s1 + $0x138] sm:$0xff]
  %v96 = vld [vmem:[%s1 + $0x140] sm:$0xff]
  %v97 = vld [vmem:[%s1 + $0x148] sm:$0xff]
  %v98 = vld [vmem:[%s1 + $0x150] sm:$0xff]
  %v99 = vld [vmem:[%s1 + $0x158] sm:$0xff]
  %v100 = vld [vmem:[%s1 + $0x160] sm:$0xff]
  %v101 = vld [vmem:[%s1 + $0x168] sm:$0xff]
  %v102 = vld [vmem:[%s1 + $0x170] sm:$0xff]
  %v103 = vld [vmem:[%s1 + $0x178] sm:$0xff]
  %v104 = vld [vmem:[%s1 + $0x180] sm:$0xff]
  %v105 = vld [vmem:[%s1 + $0x188] sm:$0xff]
  %v106 = vld [vmem:[%s1 + $0x190] sm:$0xff]
  %v107 = vld [vmem:[%s1 + $0x198] sm:$0xff]
  %v108 = vld [vmem:[%s1 + $0x1a0] sm:$0xff]
  %v109 = vld [vmem:[%s1 + $0x1a8] sm:$0xff]
  %v110 = vld [vmem:[%s1 + $0x1b0] sm:$0xff]
  %v111 = vld [vmem:[%s1 + $0x1b8] sm:$0xff]
  %v112 = vld [vmem:[%s1 + $0x1c0] sm:$0xff]
  %v113 = vld [vmem:[%s1 + $0x1c8] sm:$0xff]
  %v114 = vld [vmem:[%s1 + $0x1d0] sm:$0xff]
  %v115 = vld [vmem:[%s1 + $0x1d8] sm:$0xff]
  %v116 = vld [vmem:[%s1 + $0x1e0] sm:$0xff]
  %v117 = vld [vmem:[%s1 + $0x1e8] sm:$0xff]
  %v118 = vld [vmem:[%s1 + $0x1f0] sm:$0xff]
  %v119 = vld [vmem:[%s1 + $0x1f8] sm:$0xff]
  %v120 = vld [vmem:[%s1 + $0x200] sm:$0xff]
  %v121 = vld [vmem:[%s1 + $0x208] sm:$0xff]
  %v122 = vld [vmem:[%s1 + $0x210] sm:$0xff]
  %v123 = vld [vmem:[%s1 + $0x218] sm:$0xff]
  %v124 = vld [vmem:[%s1 + $0x220] sm:$0xff]
  %v125 = vld [vmem:[%s1 + $0x228] sm:$0xff]
  %v126 = vld [vmem:[%s1 + $0x230] sm:$0xff]
  %v127 = vld [vmem:[%s1 + $0x238] sm:$0xff]
  %v128 = vld [vmem:[%s1 + $0x240] sm:$0xff]
  %v129 = vld [vmem:[%s1 + $0x248] sm:$0xff]
  %v130 = vld [vmem:[%s1 + $0x250] sm:$0xff]
  %v131 = vld [vmem:[%s1 + $0x258] sm:$0xff]
  %v132 = vld [vmem:[%s1 + $0x260] sm:$0xff]
  %v133 = vld [vmem:[%s1 + $0x268] sm:$0xff]
  %v134 = vld [vmem:[%s1 + $0x270] sm:$0xff]
  %v135 = vld [vmem:[%s1 + $0x278] sm:$0xff]
  %v136 = vld [vmem:[%s1 + $0x280] sm:$0xff]
  %v137 = vld [vmem:[%s1 + $0x288] sm:$0xff]
  %v138 = vld [vmem:[%s1 + $0x290] sm:$0xff]
  %v139 = vld [vmem:[%s1 + $0x298] sm:$0xff]
  %v140 = vld [vmem:[%s1 + $0x2a0] sm:$0xff]
  %v141 = vld [vmem:[%s1 + $0x2a8] sm:$0xff]
  %v142 = vld [vmem:[%s1 + $0x2b0] sm:$0xff]
  %v143 = vld [vmem:[%s1 + $0x2b8] sm:$0xff]
  %v144 = vld [vmem:[%s1 + $0x2c0] sm:$0xff]
  %v145 = vld [vmem:[%s1 + $0x2c8] sm:$0xff]
  %v146 = vld [vmem:[%s1 + $0x2d0] sm:$0xff]
  %v147 = vld [vmem:[%s1 + $0x2d8] sm:$0xff]
  %v148 = vld [vmem:[%s1 + $0x2e0] sm:$0xff]
  %v149 = vld [vmem:[%s1 + $0x2e8] sm:$0xff]
  %v150 = vld [vmem:[%s1 + $0x2f0] sm:$0xff]
  %v151 = vld [vmem:[%s1 + $0x2f8] sm:$0xff]
  %v152 = vld [vmem:[%s1 + $0x300] sm:$0xff]
  %v153 = vld [vmem:[%s1 + $0x308] sm:$0xff]
  %v154 = vld [vmem:[%s1 + $0x310] sm:$0xff]
  %v155 = vld [vmem:[%s1 + $0x318] sm:$0xff]
  %v156 = vld [vmem:[%s1 + $0x320] sm:$0xff]
  %v157 = vld [vmem:[%s1 + $0x328] sm:$0xff]
  %v158 = vld [vmem:[%s1 + $0x330] sm:$0xff]
  %v159 = vld [vmem:[%s1 + $0x338] sm:$0xff]
  %v160 = vld [vmem:[%s1 + $0x340] sm:$0xff]
  %v161 = vld [vmem:[%s1 + $0x348] sm:$0xff]
  %v162 = vld [vmem:[%s1 + $0x350] sm:$0xff]
  %v163 = vld [vmem:[%s1 + $0x358] sm:$0xff]
  %v164 = vld [vmem:[%s1 + $0x360] sm:$0xff]
  %v165 = vld [vmem:[%s1 + $0x368] sm:$0xff]
  %v166 = vld [vmem:[%s1 + $0x370] sm:$0xff]
  %v167 = vld [vmem:[%s1 + $0x378] sm:$0xff]
  %v168 = vld [vmem:[%s1 + $0x380] sm:$0xff]
  %v169 = vld [vmem:[%s1 + $0x388] sm:$0xff]
  %v170 = vld [vmem:[%s1 + $0x390] sm:$0xff]
  %v171 = vld [vmem:[%s1 + $0x398] sm:$0xff]
  %v172 = vld [vmem:[%s1 + $0x3a0] sm:$0xff]
  %v173 = vld [vmem:[%s1 + $0x3a8] sm:$0xff]
  %v174 = vld [vmem:[%s1 + $0x3b0] sm:$0xff]
  %v175 = vld [vmem:[%s1 + $0x3b8] sm:$0xff]
  %v176 = vld [vmem:[%s1 + $0x3c0] sm:$0xff]
  %v177 = vld [vmem:[%s1 + $0x3c8] sm:$0xff]
  %v178 = vld [vmem:[%s1 + $0x3d0] sm:$0xff]
  %v179 = vld [vmem:[%s1 + $0x3d8] sm:$0xff]
  %v180 = vld [vmem:[%s1 + $0x3e0] sm:$0xff]
  %v181 = vld [vmem:[%s1 + $0x3e8] sm:$0xff]
  %v182 = vld [vmem:[%s1 + $0x3f0] sm:$0xff]
  %v183 = vld [vmem:[%s1 + $0x3f8] sm:$0xff]
  %v184 = vld [vmem:[%s1 + $0x400] sm:$0xff]
  %v185 = vld [vmem:[%s1 + $0x408] sm:$0xff]
  %v186 = vld [vmem:[%s1 + $0x410] sm:$0xff]
  %v187 = vld [vmem:[%s1 + $0x418] sm:$0xff]
  %v188 = vld [vmem:[%s1 + $0x420] sm:$0xff]
  %v189 = vld [vmem:[%s1 + $0x428] sm:$0xff]
  %v190 = vld [vmem:[%s1 + $0x430] sm:$0xff]
  %v191 = vld [vmem:[%s1 + $0x438] sm:$0xff]
  %v192 = vld [vmem:[%s1 + $0x440] sm:$0xff]
  %v193 = vld [vmem:[%s1 + $0x448] sm:$0xff]
  %v194 = vld [vmem:[%s1 + $0x450] sm:$0xff]
  %v195 = vld [vmem:[%s1 + $0x458] sm:$0xff]
  %v196 = vld [vmem:[%s1 + $0x460] sm:$0xff]
  %v197 = vld [vmem:[%s1 + $0x468] sm:$0xff]
  %v198 = vld [vmem:[%s1 + $0x470] sm:$0xff]
  %v199 = vld [vmem:[%s1 + $0x478] sm:$0xff]
  %v200 = vld [vmem:[%s1 + $0x480] sm:$0xff]
  %v201 = vld [vmem:[%s1 + $0x488] sm:$0xff]
  %v202 = vld [vmem:[%s1 + $0x490] sm:$0xff]
  %v203 = vld [vmem:[%s1 + $0x498] sm:$0xff]
  %v204 = vld [vmem:[%s1 + $0x4a0] sm:$0xff]
  %v205 = vld [vmem:[%s1 + $0x4a8] sm:$0xff]
  %v206 = vld [vmem:[%s1 + $0x4b0] sm:$0xff]
  %v207 = vld [vmem:[%s1 + $0x4b8] sm:$0xff]
  %v208 = vld [vmem:[%s1 + $0x4c0] sm:$0xff]
  %v209 = vld [vmem:[%s1 + $0x4c8] sm:$0xff]
  %v210 = vld [vmem:[%s1 + $0x4d0] sm:$0xff]
  %v211 = vld [vmem:[%s1 + $0x4d8] sm:$0xff]
  %v212 = vld [vmem:[%s1 + $0x4e0] sm:$0xff]
  %v213 = vld [vmem:[%s1 + $0x4e8] sm:$0xff]
  %v214 = vld [vmem:[%s1 + $0x4f0] sm:$0xff]
  %v215 = vld [vmem:[%s1 + $0x4f8] sm:$0xff]
  %v216 = vld [vmem:[%s1 + $0x500] sm:$0xff]
  %v217 = vld [vmem:[%s1 + $0x508] sm:$0xff]
  %v218 = vld [vmem:[%s1 + $0x510] sm:$0xff]
  %v219 = vld [vmem:[%s1 + $0x518] sm:$0xff]
  %v220 = vld [vmem:[%s1 + $0x520] sm:$0xff]
  %v221 = vld [vmem:[%s1 + $0x528] sm:$0xff]
  %v222 = vld [vmem:[%s1 + $0x530] sm:$0xff]
  %v223 = vld [vmem:[%s1 + $0x538] sm:$0xff]
  %v224 = vld [vmem:[%s1 + $0x540] sm:$0xff]
  %v225 = vld [vmem:[%s1 + $0x548] sm:$0xff]
  %v226 = vld [vmem:[%s1 + $0x550] sm:$0xff]
  %v227 = vld [vmem:[%s1 + $0x558] sm:$0xff]
  %v228 = vld [vmem:[%s1 + $0x560] sm:$0xff]
  %v229 = vld [vmem:[%s1 + $0x568] sm:$0xff]
  %v230 = vld [vmem:[%s1 + $0x570] sm:$0xff]
  %v231 = vld [vmem:[%s1 + $0x578] sm:$0xff]
  %v232 = vld [vmem:[%s1 + $0x580] sm:$0xff]
  %v233 = vld [vmem:[%s1 + $0x588] sm:$0xff]
  %v234 = vld [vmem:[%s1 + $0x590] sm:$0xff]
  %v235 = vld [vmem:[%s1 + $0x598] sm:$0xff]
  %v236 = vld [vmem:[%s1 + $0x5a0] sm:$0xff]
  %v237 = vld [vmem:[%s1 + $0x5a8] sm:$0xff]
  %v238 = vld [vmem:[%s1 + $0x5b0] sm:$0xff]
  %v239 = vld [vmem:[%s1 + $0x5b8] sm:$0xff]
  %v240 = vld [vmem:[%s1 + $0x5c0] sm:$0xff]
  %v241 = vld [vmem:[%s1 + $0x5c8] sm:$0xff]
  %v242 = vld [vmem:[%s1 + $0x5d0] sm:$0xff]
  %v243 = vld [vmem:[%s1 + $0x5d8] sm:$0xff]
  %v244 = vld [vmem:[%s1 + $0x5e0] sm:$0xff]
  %v245 = vld [vmem:[%s1 + $0x5e8] sm:$0xff]
  %v246 = vld [vmem:[%s1 + $0x5f0] sm:$0xff]
  %v247 = vld [vmem:[%s1 + $0x5f8] sm:$0xff]
  %v248 = vld [vmem:[%s1 + $0x600] sm:$0xff]
  %v249 = vld [vmem:[%s1 + $0x608] sm:$0xff]
  %v250 = vld [vmem:[%s1 + $0x610] sm:$0xff]
  %v251 = vld [vmem:[%s1 + $0x618] sm:$0xff]
  %v252 = vld [vmem:[%s1 + $0x620] sm:$0xff]
  %v253 = vld [vmem:[%s1 + $0x628] sm:$0xff]
  %v254 = vld [vmem:[%s1 + $0x630] sm:$0xff]
  %v255 = vld [vmem:[%s1 + $0x638] sm:$0xff]
  %v256 = vld [vmem:[%s1 + $0x640] sm:$0xff]
  %v257 = vld [vmem:[%s1 + $0x648] sm:$0xff]
  %v258 = vld [vmem:[%s1 + $0x650] sm:$0xff]
  %v259 = vld [vmem:[%s1 + $0x658] sm:$0xff]
  %v260 = vld [vmem:[%s1 + $0x660] sm:$0xff]
  %v261 = vld [vmem:[%s1 + $0x668] sm:$0xff]
  %v262 = vld [vmem:[%s1 + $0x670] sm:$0xff]
  %v263 = vld [vmem:[%s1 + $0x678] sm:$0xff]
  %v264 = vld [vmem:[%s1 + $0x680] sm:$0xff]
  %v265 = vld [vmem:[%s1 + $0x688] sm:$0xff]
  %v266 = vld [vmem:[%s1 + $0x690] sm:$0xff]
  %v267 = vld [vmem:[%s1 + $0x698] sm:$0xff]
  %v268 = vld [vmem:[%s1 + $0x6a0] sm:$0xff]
  %v269 = vld [vmem:[%s1 + $0x6a8] sm:$0xff]
  %v270 = vld [vmem:[%s1 + $0x6b0] sm:$0xff]
  %v271 = vld [vmem:[%s1 + $0x6b8] sm:$0xff]
  %v272 = vld [vmem:[%s1 + $0x6c0] sm:$0xff]
  %v273 = vld [vmem:[%s1 + $0x6c8] sm:$0xff]
  %v274 = vld [vmem:[%s1 + $0x6d0] sm:$0xff]
  %v275 = vld [vmem:[%s1 + $0x6d8] sm:$0xff]
  %v276 = vld [vmem:[%s1 + $0x6e0] sm:$0xff]
  %v277 = vld [vmem:[%s1 + $0x6e8] sm:$0xff]
  %v278 = vld [vmem:[%s1 + $0x6f0] sm:$0xff]
  %v279 = vld [vmem:[%s1 + $0x6f8] sm:$0xff]
  %280 = vmatprep.subr.mxu0 %v57
  %281 = vmatpush1.msra.mxu0 %v56
  %282 = vmatprep.subr.mxu0 %v64
  %283 = vmatpush1.msra.mxu0 %v63
  %284 = vmatprep.subr.mxu0 %v71
  %285 = vmatpush1.msra.mxu0 %v70
  %286 = vmatprep.subr.mxu0 %v78
  %287 = vmatpush1.msra.mxu0 %v77
  %288 = vmatprep.subr.mxu0 %v85
  %289 = vmatpush1.msra.mxu0 %v84
  %290 = vmatprep.subr.mxu0 %v92
  %291 = vmatpush1.msra.mxu0 %v91
  %292 = vmatprep.subr.mxu0 %v99
  %293 = vmatpush1.msra.mxu0 %v98
  %294 = vmatprep.subr.mxu0 %v106
  %295 = vmatpush1.msra.mxu0 %v105
  %296 = vmatprep.subr.mxu0 %v113
  %297 = vmatpush1.msra.mxu0 %v112
  %298 = vmatprep.subr.mxu0 %v120
  %299 = vmatpush1.msra.mxu0 %v119
  %300 = vmatprep.subr.mxu0 %v127
  %301 = vmatpush1.msra.mxu0 %v126
  %302 = vmatprep.subr.mxu0 %v134
  %303 = vmatpush1.msra.mxu0 %v133
  %304 = vmatprep.subr.mxu0 %v141
  %305 = vmatpush1.msra.mxu0 %v140
  %306 = vmatprep.subr.mxu0 %v148
  %307 = vmatpush1.msra.mxu0 %v147
  %308 = vmatprep.subr.mxu0 %v155
  %309 = vmatpush1.msra.mxu0 %v154
  %310 = vmatprep.subr.mxu0 %v162
  %311 = vmatpush1.msra.mxu0 %v161
  %312 = vmatprep.subr.mxu0 %v169
  %313 = vmatpush1.msra.mxu0 %v168
  %314 = vmatprep.subr.mxu0 %v176
  %315 = vmatpush1.msra.mxu0 %v175
  %316 = vmatprep.subr.mxu0 %v183
  %317 = vmatpush1.msra.mxu0 %v182
  %318 = vmatprep.subr.mxu0 %v190
  %319 = vmatpush1.msra.mxu0 %v189
  %320 = vmatprep.subr.mxu0 %v197
  %321 = vmatpush1.msra.mxu0 %v196
  %322 = vmatprep.subr.mxu0 %v204
  %323 = vmatpush1.msra.mxu0 %v203
  %324 = vmatprep.subr.mxu0 %v211
  %325 = vmatpush1.msra.mxu0 %v210
  %326 = vmatprep.subr.mxu0 %v218
  %327 = vmatpush1.msra.mxu0 %v217
  %328 = vmatprep.subr.mxu0 %v225
  %329 = vmatpush1.msra.mxu0 %v224
  %330 = vmatprep.subr.mxu0 %v232
  %331 = vmatpush1.msra.mxu0 %v231
  %332 = vmatprep.subr.mxu0 %v239
  %333 = vmatpush1.msra.mxu0 %v238
  %334 = vmatprep.subr.mxu0 %v246
  %335 = vmatpush1.msra.mxu0 %v245
  %336 = vmatprep.subr.mxu0 %v253
  %337 = vmatpush1.msra.mxu0 %v252
  %338 = vmatprep.subr.mxu0 %v260
  %339 = vmatpush1.msra.mxu0 %v259
  %340 = vmatprep.subr.mxu0 %v267
  %341 = vmatpush1.msra.mxu0 %v266
  %342 = vmatprep.subr.mxu0 %v274
  %343 = vmatpush1.msra.mxu0 %v273
  %344 = vmatprep.mubr.f32.mxu0 %v53
  %345 = vmatmul.mubr.f32.gmra.mrb[0].mxu0 %v52
  %v346 = vpop.f32.mrb[0].mxu0
  %v347 = vadd.f32 0.0, %v346
  %v348 = vpop.f32.mrb[0].mxu0
  %v349 = vadd.f32 0.0, %v348
  %350 = vmatprep.mubr.f32.mxu0 %v55
  %351 = vmatmul.mubr.f32.gmra.mrb[0].mxu0 %v54
  %v352 = vpop.f32.mrb[0].mxu0
  %v353 = vadd.f32 0.0, %v352
  %v354 = vpop.f32.mrb[0].mxu0
  %v355 = vadd.f32 0.0, %v354
  %356 = vdwg.mxu0
  %357 = vmatprep.subr.mxu0 %v59
  %358 = vmatpush1.msra.mxu0 %v58
  %359 = vmatprep.subr.mxu0 %v66
  %360 = vmatpush1.msra.mxu0 %v65
  %361 = vmatprep.subr.mxu0 %v73
  %362 = vmatpush1.msra.mxu0 %v72
  %363 = vmatprep.subr.mxu0 %v80
  %364 = vmatpush1.msra.mxu0 %v79
  %365 = vmatprep.subr.mxu0 %v87
  %366 = vmatpush1.msra.mxu0 %v86
  %367 = vmatprep.subr.mxu0 %v94
  %368 = vmatpush1.msra.mxu0 %v93
  %369 = vmatprep.subr.mxu0 %v101
  %370 = vmatpush1.msra.mxu0 %v100
  %371 = vmatprep.subr.mxu0 %v108
  %372 = vmatpush1.msra.mxu0 %v107
  %373 = vmatprep.subr.mxu0 %v115
  %374 = vmatpush1.msra.mxu0 %v114
  %375 = vmatprep.subr.mxu0 %v122
  %376 = vmatpush1.msra.mxu0 %v121
  %377 = vmatprep.subr.mxu0 %v129
  %378 = vmatpush1.msra.mxu0 %v128
  %379 = vmatprep.subr.mxu0 %v136
  %380 = vmatpush1.msra.mxu0 %v135
  %381 = vmatprep.subr.mxu0 %v143
  %382 = vmatpush1.msra.mxu0 %v142
  %383 = vmatprep.subr.mxu0 %v150
  %384 = vmatpush1.msra.mxu0 %v149
  %385 = vmatprep.subr.mxu0 %v157
  %386 = vmatpush1.msra.mxu0 %v156
  %387 = vmatprep.subr.mxu0 %v164
  %388 = vmatpush1.msra.mxu0 %v163
  %389 = vmatprep.subr.mxu0 %v171
  %390 = vmatpush1.msra.mxu0 %v170
  %391 = vmatprep.subr.mxu0 %v178
  %392 = vmatpush1.msra.mxu0 %v177
  %393 = vmatprep.subr.mxu0 %v185
  %394 = vmatpush1.msra.mxu0 %v184
  %395 = vmatprep.subr.mxu0 %v192
  %396 = vmatpush1.msra.mxu0 %v191
  %397 = vmatprep.subr.mxu0 %v199
  %398 = vmatpush1.msra.mxu0 %v198
  %399 = vmatprep.subr.mxu0 %v206
  %400 = vmatpush1.msra.mxu0 %v205
  %401 = vmatprep.subr.mxu0 %v213
  %402 = vmatpush1.msra.mxu0 %v212
  %403 = vmatprep.subr.mxu0 %v220
  %404 = vmatpush1.msra.mxu0 %v219
  %405 = vmatprep.subr.mxu0 %v227
  %406 = vmatpush1.msra.mxu0 %v226
  %407 = vmatprep.subr.mxu0 %v234
  %408 = vmatpush1.msra.mxu0 %v233
  %409 = vmatprep.subr.mxu0 %v241
  %410 = vmatpush1.msra.mxu0 %v240
  %411 = vmatprep.subr.mxu0 %v248
  %412 = vmatpush1.msra.mxu0 %v247
  %413 = vmatprep.subr.mxu0 %v255
  %414 = vmatpush1.msra.mxu0 %v254
  %415 = vmatprep.subr.mxu0 %v262
  %416 = vmatpush1.msra.mxu0 %v261
  %417 = vmatprep.subr.mxu0 %v269
  %418 = vmatpush1.msra.mxu0 %v268
  %419 = vmatprep.subr.mxu0 %v276
  %420 = vmatpush1.msra.mxu0 %v275
  %421 = vmatprep.mubr.f32.mxu0 %v53
  %422 = vmatmul.mubr.f32.gmra.mrb[0].mxu0 %v52
  %v423 = vpop.f32.mrb[0].mxu0
  %v424 = vadd.f32 0.0, %v423
  %v425 = vpop.f32.mrb[0].mxu0
  %v426 = vadd.f32 0.0, %v425
  %427 = vmatprep.mubr.f32.mxu0 %v55
  %428 = vmatmul.mubr.f32.gmra.mrb[0].mxu0 %v54
  %v429 = vpop.f32.mrb[0].mxu0
  %v430 = vadd.f32 0.0, %v429
  %v431 = vpop.f32.mrb[0].mxu0
  %v432 = vadd.f32 0.0, %v431
  %433 = vdwg.mxu0
  %434 = vmatprep.subr.mxu0 %v61
  %435 = vmatpush1.msra.mxu0 %v60
  %436 = vmatprep.subr.mxu0 %v68
  %437 = vmatpush1.msra.mxu0 %v67
  %438 = vmatprep.subr.mxu0 %v75
  %439 = vmatpush1.msra.mxu0 %v74
  %440 = vmatprep.subr.mxu0 %v82
  %441 = vmatpush1.msra.mxu0 %v81
  %442 = vmatprep.subr.mxu0 %v89
  %443 = vmatpush1.msra.mxu0 %v88
  %444 = vmatprep.subr.mxu0 %v96
  %445 = vmatpush1.msra.mxu0 %v95
  %446 = vmatprep.subr.mxu0 %v103
  %447 = vmatpush1.msra.mxu0 %v102
  %448 = vmatprep.subr.mxu0 %v110
  %449 = vmatpush1.msra.mxu0 %v109
  %450 = vmatprep.subr.mxu0 %v117
  %451 = vmatpush1.msra.mxu0 %v116
  %452 = vmatprep.subr.mxu0 %v124
  %453 = vmatpush1.msra.mxu0 %v123
  %454 = vmatprep.subr.mxu0 %v131
  %455 = vmatpush1.msra.mxu0 %v130
  %456 = vmatprep.subr.mxu0 %v138
  %457 = vmatpush1.msra.mxu0 %v137
  %458 = vmatprep.subr.mxu0 %v145
  %459 = vmatpush1.msra.mxu0 %v144
  %460 = vmatprep.subr.mxu0 %v152
  %461 = vmatpush1.msra.mxu0 %v151
  %462 = vmatprep.subr.mxu0 %v159
  %463 = vmatpush1.msra.mxu0 %v158
  %464 = vmatprep.subr.mxu0 %v166
  %465 = vmatpush1.msra.mxu0 %v165
  %466 = vmatprep.subr.mxu0 %v173
  %467 = vmatpush1.msra.mxu0 %v172
  %468 = vmatprep.subr.mxu0 %v180
  %469 = vmatpush1.msra.mxu0 %v179
  %470 = vmatprep.subr.mxu0 %v187
  %471 = vmatpush1.msra.mxu0 %v186
  %472 = vmatprep.subr.mxu0 %v194
  %473 = vmatpush1.msra.mxu0 %v193
  %474 = vmatprep.subr.mxu0 %v201
  %475 = vmatpush1.msra.mxu0 %v200
  %476 = vmatprep.subr.mxu0 %v208
  %477 = vmatpush1.msra.mxu0 %v207
  %478 = vmatprep.subr.mxu0 %v215
  %479 = vmatpush1.msra.mxu0 %v214
  %480 = vmatprep.subr.mxu0 %v222
  %481 = vmatpush1.msra.mxu0 %v221
  %482 = vmatprep.subr.mxu0 %v229
  %483 = vmatpush1.msra.mxu0 %v228
  %484 = vmatprep.subr.mxu0 %v236
  %485 = vmatpush1.msra.mxu0 %v235
  %486 = vmatprep.subr.mxu0 %v243
  %487 = vmatpush1.msra.mxu0 %v242
  %488 = vmatprep.subr.mxu0 %v250
  %489 = vmatpush1.msra.mxu0 %v249
  %490 = vmatprep.subr.mxu0 %v257
  %491 = vmatpush1.msra.mxu0 %v256
  %492 = vmatprep.subr.mxu0 %v264
  %493 = vmatpush1.msra.mxu0 %v263
  %494 = vmatprep.subr.mxu0 %v271
  %495 = vmatpush1.msra.mxu0 %v270
  %496 = vmatprep.subr.mxu0 %v278
  %497 = vmatpush1.msra.mxu0 %v277
  %498 = vmatprep.mubr.f32.mxu0 %v53
  %499 = vmatmul.mubr.f32.gmra.mrb[0].mxu0 %v52
  %v500 = vpop.f32.mrb[0].mxu0
  %v501 = vadd.f32 0.0, %v500
  %v502 = vpop.f32.mrb[0].mxu0
  %v503 = vadd.f32 0.0, %v502
  %504 = vmatprep.mubr.f32.mxu0 %v55
  %505 = vmatmul.mubr.f32.gmra.mrb[0].mxu0 %v54
  %v506 = vpop.f32.mrb[0].mxu0
  %v507 = vadd.f32 0.0, %v506
  %v508 = vpop.f32.mrb[0].mxu0
  %v509 = vadd.f32 0.0, %v508
  %510 = vdwg.mxu0
  %511 = vmatprep.subr.mxu0 0.0
  %512 = vmatpush1.msra.mxu0 %v62
  %513 = vmatprep.subr.mxu0 0.0
  %514 = vmatpush1.msra.mxu0 %v69
  %515 = vmatprep.subr.mxu0 0.0
  %516 = vmatpush1.msra.mxu0 %v76
  %517 = vmatprep.subr.mxu0 0.0
  %518 = vmatpush1.msra.mxu0 %v83
  %519 = vmatprep.subr.mxu0 0.0
  %520 = vmatpush1.msra.mxu0 %v90
  %521 = vmatprep.subr.mxu0 0.0
  %522 = vmatpush1.msra.mxu0 %v97
  %523 = vmatprep.subr.mxu0 0.0
  %524 = vmatpush1.msra.mxu0 %v104
  %525 = vmatprep.subr.mxu0 0.0
  %526 = vmatpush1.msra.mxu0 %v111
  %527 = vmatprep.subr.mxu0 0.0
  %528 = vmatpush1.msra.mxu0 %v118
  %529 = vmatprep.subr.mxu0 0.0
  %530 = vmatpush1.msra.mxu0 %v125
  %531 = vmatprep.subr.mxu0 0.0
  %532 = vmatpush1.msra.mxu0 %v132
  %533 = vmatprep.subr.mxu0 0.0
  %534 = vmatpush1.msra.mxu0 %v139
  %535 = vmatprep.subr.mxu0 0.0
  %536 = vmatpush1.msra.mxu0 %v146
  %537 = vmatprep.subr.mxu0 0.0
  %538 = vmatpush1.msra.mxu0 %v153
  %539 = vmatprep.subr.mxu0 0.0
  %540 = vmatpush1.msra.mxu0 %v160
  %541 = vmatprep.subr.mxu0 0.0
  %542 = vmatpush1.msra.mxu0 %v167
  %543 = vmatprep.subr.mxu0 0.0
  %544 = vmatpush1.msra.mxu0 %v174
  %545 = vmatprep.subr.mxu0 0.0
  %546 = vmatpush1.msra.mxu0 %v181
  %547 = vmatprep.subr.mxu0 0.0
  %548 = vmatpush1.msra.mxu0 %v188
  %549 = vmatprep.subr.mxu0 0.0
  %550 = vmatpush1.msra.mxu0 %v195
  %551 = vmatprep.subr.mxu0 0.0
  %552 = vmatpush1.msra.mxu0 %v202
  %553 = vmatprep.subr.mxu0 0.0
  %554 = vmatpush1.msra.mxu0 %v209
  %555 = vmatprep.subr.mxu0 0.0
  %556 = vmatpush1.msra.mxu0 %v216
  %557 = vmatprep.subr.mxu0 0.0
  %558 = vmatpush1.msra.mxu0 %v223
  %559 = vmatprep.subr.mxu0 0.0
  %560 = vmatpush1.msra.mxu0 %v230
  %561 = vmatprep.subr.mxu0 0.0
  %562 = vmatpush1.msra.mxu0 %v237
  %563 = vmatprep.subr.mxu0 0.0
  %564 = vmatpush1.msra.mxu0 %v244
  %565 = vmatprep.subr.mxu0 0.0
  %566 = vmatpush1.msra.mxu0 %v251
  %567 = vmatprep.subr.mxu0 0.0
  %568 = vmatpush1.msra.mxu0 %v258
  %569 = vmatprep.subr.mxu0 0.0
  %570 = vmatpush1.msra.mxu0 %v265
  %571 = vmatprep.subr.mxu0 0.0
  %572 = vmatpush1.msra.mxu0 %v272
  %573 = vmatprep.subr.mxu0 0.0
  %574 = vmatpush1.msra.mxu0 %v279
  %575 = vmatprep.mubr.f32.mxu0 %v53
  %576 = vmatmul.mubr.f32.gmra.mrb[0].mxu0 %v52
  %v577 = vpop.f32.mrb[0].mxu0
  %v578 = vadd.f32 0.0, %v577
  %v579 = vpop.f32.mrb[0].mxu0
  %580 = vmatprep.mubr.f32.mxu0 %v55
  %581 = vmatmul.mubr.f32.gmra.mrb[0].mxu0 %v54
  %v582 = vpop.f32.mrb[0].mxu0
  %v583 = vadd.f32 0.0, %v582
  %v584 = vpop.f32.mrb[0].mxu0
  %585 = vdwg.mxu0
  %vm586 = vcmp.lt.s32.totalorder %v36, 10
  %v587 = vsel %vm586, 1, 0
  %v588 = vcvt.s32.f32 %v587
  %v589 = vld [vmem:[%s3] sm:$0xff]
  %v590 = vld [vmem:[%s3 + $0x8] sm:$0xff]
  %v591 = vld [vmem:[%s2] sm:$0x1]
  %v592 = vlaneseq
  %v593 = vshrl.u32 %v592, 7
  %v594 = vsub.s32 0, %v593
  %v595 = vrot.slane %v591, %v594
  %v596 = vadd.f32 %v349, %v595
  %v597 = vadd.f32 %v355, %v595
  %v598 = vld [vmem:[%s2 + $0x2] sm:$0x1]
  %v599 = vlaneseq
  %v600 = vshrl.u32 %v599, 7
  %v601 = vsub.s32 0, %v600
  %v602 = vrot.slane %v598, %v601
  %v603 = vadd.f32 %v426, %v602
  %v604 = vadd.f32 %v432, %v602
  %605 = vmatprep.subr.mxu0 0.0
  %606 = vmatpush1.xpose.msra.mxu0 %v603
  %607 = vmatprep.subr.mxu0 0.0
  %608 = vmatpush1.xpose.msra.mxu0 %v604
  %609 = vmatprep.subr.mxu0 0.0
  %610 = vmatpush1.xpose.msra.mxu0 0.0
  %611 = vmatprep.subr.mxu0 0.0
  %612 = vmatpush1.xpose.msra.mxu0 0.0
  %613 = vmatprep.subr.mxu0 0.0
  %614 = vmatpush1.xpose.msra.mxu0 0.0
  %615 = vmatprep.subr.mxu0 0.0
  %616 = vmatpush1.xpose.msra.mxu0 0.0
  %617 = vmatprep.subr.mxu0 0.0
  %618 = vmatpush1.xpose.msra.mxu0 0.0
  %619 = vmatprep.subr.mxu0 0.0
  %620 = vmatpush1.xpose.msra.mxu0 0.0
  %621 = vmatprep.subr.mxu0 0.0
  %622 = vmatpush1.xpose.msra.mxu0 0.0
  %623 = vmatprep.subr.mxu0 0.0
  %624 = vmatpush1.xpose.msra.mxu0 0.0
  %625 = vmatprep.subr.mxu0 0.0
  %626 = vmatpush1.xpose.msra.mxu0 0.0
  %627 = vmatprep.subr.mxu0 0.0
  %628 = vmatpush1.xpose.msra.mxu0 0.0
  %629 = vmatprep.subr.mxu0 0.0
  %630 = vmatpush1.xpose.msra.mxu0 0.0
  %631 = vmatprep.subr.mxu0 0.0
  %632 = vmatpush1.xpose.msra.mxu0 0.0
  %633 = vmatprep.subr.mxu0 0.0
  %634 = vmatpush1.xpose.msra.mxu0 0.0
  %635 = vmatprep.subr.mxu0 0.0
  %636 = vmatpush1.xpose.msra.mxu0 0.0
  %637 = vmatprep.subr.mxu0 0.0
  %638 = vmatpush1.xpose.msra.mxu0 0.0
  %639 = vmatprep.subr.mxu0 0.0
  %640 = vmatpush1.xpose.msra.mxu0 0.0
  %641 = vmatprep.subr.mxu0 0.0
  %642 = vmatpush1.xpose.msra.mxu0 0.0
  %643 = vmatprep.subr.mxu0 0.0
  %644 = vmatpush1.xpose.msra.mxu0 0.0
  %645 = vmatprep.subr.mxu0 0.0
  %646 = vmatpush1.xpose.msra.mxu0 0.0
  %647 = vmatprep.subr.mxu0 0.0
  %648 = vmatpush1.xpose.msra.mxu0 0.0
  %649 = vmatprep.subr.mxu0 0.0
  %650 = vmatpush1.xpose.msra.mxu0 0.0
  %651 = vmatprep.subr.mxu0 0.0
  %652 = vmatpush1.xpose.msra.mxu0 0.0
  %653 = vmatprep.subr.mxu0 0.0
  %654 = vmatpush1.xpose.msra.mxu0 0.0
  %655 = vmatprep.subr.mxu0 0.0
  %656 = vmatpush1.xpose.msra.mxu0 0.0
  %657 = vmatprep.subr.mxu0 0.0
  %658 = vmatpush1.xpose.msra.mxu0 0.0
  %659 = vmatprep.subr.mxu0 0.0
  %660 = vmatpush1.xpose.msra.mxu0 0.0
  %661 = vmatprep.subr.mxu0 0.0
  %662 = vmatpush1.xpose.msra.mxu0 0.0
  %663 = vmatprep.subr.mxu0 0.0
  %664 = vmatpush1.xpose.msra.mxu0 0.0
  %665 = vmatprep.subr.mxu0 0.0
  %666 = vmatpush1.xpose.msra.mxu0 0.0
  %667 = vmatprep.subr.mxu0 0.0
  %668 = vmatpush1.xpose.msra.mxu0 0.0
  %669 = vmatprep.mubr.f32.mxu0 0.0
  %670 = vmatmul.mubr.f32.gmra.mrb[0].mxu0 %v596
  %v671 = vpop.f32.mrb[0].mxu0
  %v672 = vadd.f32 0.0, %v671
  %v673 = vpop.f32.mrb[0].mxu0
  %674 = vmatprep.mubr.f32.mxu0 0.0
  %675 = vmatmul.mubr.f32.gmra.mrb[0].mxu0 %v597
  %v676 = vpop.f32.mrb[0].mxu0
  %v677 = vadd.f32 0.0, %v676
  %v678 = vpop.f32.mrb[0].mxu0
  %679 = vdwg.mxu0
  %v680 = vmul.f32 %v672, 0.4472136
  %v681 = vmul.f32 %v677, 0.4472136
  %v682 = vadd.f32 %v680, %v589
  %v683 = vadd.f32 %v681, %v590
  %vm684 = vcmask 130048
  %v685 = vsel %vm684, %v682, -inf
  %686 = vmax.xlane.f32.xlu0 %v685
  %v687 = vpop.xlane.xlu0 %686
  %v688 = vsel %vm684, %v683, -inf
  %689 = vmax.xlane.f32.xlu0 %v688
  %v690 = vpop.xlane.xlu0 %689
  %v691 = vsub.f32 %v682, %v687
  %v692 = vsub.f32 %v683, %v690
  %v693 = vmul.f32 %v691, 1.442695
  %v694 = vpow.pop %v693
  %v695 = vmul.f32 %v692, 1.442695
  %v696 = vpow.pop %v695
  %v697 = vsel %vm684, %v694, 0.0
  %698 = vadd.xlane.f32.xlu0 %v697
  %v699 = vpop.xlane.xlu0 %698
  %v700 = vsel %vm684, %v696, 0.0
  %701 = vadd.xlane.f32.xlu0 %v700
  %v702 = vpop.xlane.xlu0 %701
  %v703 = vrcp.pop %v699
  %v704 = vrcp.pop %v702
  %v705 = vmul.f32 %v694, %v703
  %v706 = vmul.f32 %v696, %v704
  %v707 = vld [vmem:[%s2 + $0x1] sm:$0x1]
  %v708 = vlaneseq
  %v709 = vshrl.u32 %v708, 7
  %v710 = vsub.s32 0, %v709
  %v711 = vrot.slane %v707, %v710
  %v712 = vadd.f32 %v424, %v711
  %v713 = vadd.f32 %v430, %v711
  %v714 = vld [vmem:[%s2 + $0x3] sm:$0x1]
  %v715 = vlaneseq
  %v716 = vshrl.u32 %v715, 7
  %v717 = vsub.s32 0, %v716
  %v718 = vrot.slane %v714, %v717
  %v719 = vadd.f32 %v501, %v718
  %v720 = vadd.f32 %v507, %v718
  %721 = vmatprep.subr.mxu0 0.0
  %722 = vmatpush1.xpose.msra.mxu0 %v719
  %723 = vmatprep.subr.mxu0 0.0
  %724 = vmatpush1.xpose.msra.mxu0 %v720
  %725 = vmatprep.subr.mxu0 0.0
  %726 = vmatpush1.xpose.msra.mxu0 0.0
  %727 = vmatprep.subr.mxu0 0.0
  %728 = vmatpush1.xpose.msra.mxu0 0.0
  %729 = vmatprep.subr.mxu0 0.0
  %730 = vmatpush1.xpose.msra.mxu0 0.0
  %731 = vmatprep.subr.mxu0 0.0
  %732 = vmatpush1.xpose.msra.mxu0 0.0
  %733 = vmatprep.subr.mxu0 0.0
  %734 = vmatpush1.xpose.msra.mxu0 0.0
  %735 = vmatprep.subr.mxu0 0.0
  %736 = vmatpush1.xpose.msra.mxu0 0.0
  %737 = vmatprep.subr.mxu0 0.0
  %738 = vmatpush1.xpose.msra.mxu0 0.0
  %739 = vmatprep.subr.mxu0 0.0
  %740 = vmatpush1.xpose.msra.mxu0 0.0
  %741 = vmatprep.subr.mxu0 0.0
  %742 = vmatpush1.xpose.msra.mxu0 0.0
  %743 = vmatprep.subr.mxu0 0.0
  %744 = vmatpush1.xpose.msra.mxu0 0.0
  %745 = vmatprep.subr.mxu0 0.0
  %746 = vmatpush1.xpose.msra.mxu0 0.0
  %747 = vmatprep.subr.mxu0 0.0
  %748 = vmatpush1.xpose.msra.mxu0 0.0
  %749 = vmatprep.subr.mxu0 0.0
  %750 = vmatpush1.xpose.msra.mxu0 0.0
  %751 = vmatprep.subr.mxu0 0.0
  %752 = vmatpush1.xpose.msra.mxu0 0.0
  %753 = vmatprep.subr.mxu0 0.0
  %754 = vmatpush1.xpose.msra.mxu0 0.0
  %755 = vmatprep.subr.mxu0 0.0
  %756 = vmatpush1.xpose.msra.mxu0 0.0
  %757 = vmatprep.subr.mxu0 0.0
  %758 = vmatpush1.xpose.msra.mxu0 0.0
  %759 = vmatprep.subr.mxu0 0.0
  %760 = vmatpush1.xpose.msra.mxu0 0.0
  %761 = vmatprep.subr.mxu0 0.0
  %762 = vmatpush1.xpose.msra.mxu0 0.0
  %763 = vmatprep.subr.mxu0 0.0
  %764 = vmatpush1.xpose.msra.mxu0 0.0
  %765 = vmatprep.subr.mxu0 0.0
  %766 = vmatpush1.xpose.msra.mxu0 0.0
  %767 = vmatprep.subr.mxu0 0.0
  %768 = vmatpush1.xpose.msra.mxu0 0.0
  %769 = vmatprep.subr.mxu0 0.0
  %770 = vmatpush1.xpose.msra.mxu0 0.0
  %771 = vmatprep.subr.mxu0 0.0
  %772 = vmatpush1.xpose.msra.mxu0 0.0
  %773 = vmatprep.subr.mxu0 0.0
  %774 = vmatpush1.xpose.msra.mxu0 0.0
  %775 = vmatprep.subr.mxu0 0.0
  %776 = vmatpush1.xpose.msra.mxu0 0.0
  %777 = vmatprep.subr.mxu0 0.0
  %778 = vmatpush1.xpose.msra.mxu0 0.0
  %779 = vmatprep.subr.mxu0 0.0
  %780 = vmatpush1.xpose.msra.mxu0 0.0
  %781 = vmatprep.subr.mxu0 0.0
  %782 = vmatpush1.xpose.msra.mxu0 0.0
  %783 = vmatprep.subr.mxu0 0.0
  %784 = vmatpush1.xpose.msra.mxu0 0.0
  %785 = vmatprep.mubr.f32.mxu0 0.0
  %786 = vmatmul.mubr.f32.gmra.mrb[0].mxu0 %v712
  %v787 = vpop.f32.mrb[0].mxu0
  %v788 = vadd.f32 0.0, %v787
  %v789 = vpop.f32.mrb[0].mxu0
  %790 = vmatprep.mubr.f32.mxu0 0.0
  %791 = vmatmul.mubr.f32.gmra.mrb[0].mxu0 %v713
  %v792 = vpop.f32.mrb[0].mxu0
  %v793 = vadd.f32 0.0, %v792
  %v794 = vpop.f32.mrb[0].mxu0
  %795 = vdwg.mxu0
  %v796 = vmul.f32 %v788, 0.4472136
  %v797 = vmul.f32 %v793, 0.4472136
  %v798 = vadd.f32 %v796, %v589
  %v799 = vadd.f32 %v797, %v590
  %v800 = vsel %vm684, %v798, -inf
  %801 = vmax.xlane.f32.xlu0 %v800
  %v802 = vpop.xlane.xlu0 %801
  %v803 = vsel %vm684, %v799, -inf
  %804 = vmax.xlane.f32.xlu0 %v803
  %v805 = vpop.xlane.xlu0 %804
  %v806 = vsub.f32 %v798, %v802
  %v807 = vsub.f32 %v799, %v805
  %v808 = vmul.f32 %v806, 1.442695
  %v809 = vpow.pop %v808
  %v810 = vmul.f32 %v807, 1.442695
  %v811 = vpow.pop %v810
  %v812 = vsel %vm684, %v809, 0.0
  %813 = vadd.xlane.f32.xlu0 %v812
  %v814 = vpop.xlane.xlu0 %813
  %v815 = vsel %vm684, %v811, 0.0
  %816 = vadd.xlane.f32.xlu0 %v815
  %v817 = vpop.xlane.xlu0 %816
  %v818 = vrcp.pop %v814
  %v819 = vrcp.pop %v817
  %v820 = vmul.f32 %v809, %v818
  %v821 = vmul.f32 %v811, %v819
  %v823 = vsel %vm684, %v820, 0
  %v826 = vsel %vm684, %v821, 0
  %828 = vmatprep.subr.mxu0 0.0
  %829 = vmatpush1.msra.mxu0 %v578
  %830 = vmatprep.subr.mxu0 0.0
  %831 = vmatpush1.msra.mxu0 %v583
  %832 = vmatprep.subr.mxu0 0.0
  %833 = vmatpush1.msra.mxu0 0.0
  %834 = vmatprep.subr.mxu0 0.0
  %835 = vmatpush1.msra.mxu0 0.0
  %836 = vmatprep.subr.mxu0 0.0
  %837 = vmatpush1.msra.mxu0 0.0
  %838 = vmatprep.subr.mxu0 0.0
  %839 = vmatpush1.msra.mxu0 0.0
  %840 = vmatprep.subr.mxu0 0.0
  %841 = vmatpush1.msra.mxu0 0.0
  %842 = vmatprep.subr.mxu0 0.0
  %843 = vmatpush1.msra.mxu0 0.0
  %844 = vmatprep.subr.mxu0 0.0
  %845 = vmatpush1.msra.mxu0 0.0
  %846 = vmatprep.subr.mxu0 0.0
  %847 = vmatpush1.msra.mxu0 0.0
  %848 = vmatprep.subr.mxu0 0.0
  %849 = vmatpush1.msra.mxu0 0.0
  %850 = vmatprep.subr.mxu0 0.0
  %851 = vmatpush1.msra.mxu0 0.0
  %852 = vmatprep.subr.mxu0 0.0
  %853 = vmatpush1.msra.mxu0 0.0
  %854 = vmatprep.subr.mxu0 0.0
  %855 = vmatpush1.msra.mxu0 0.0
  %856 = vmatprep.subr.mxu0 0.0
  %857 = vmatpush1.msra.mxu0 0.0
  %858 = vmatprep.subr.mxu0 0.0
  %859 = vmatpush1.msra.mxu0 0.0
  %860 = vmatprep.subr.mxu0 0.0
  %861 = vmatpush1.msra.mxu0 0.0
  %862 = vmatprep.subr.mxu0 0.0
  %863 = vmatpush1.msra.mxu0 0.0
  %864 = vmatprep.subr.mxu0 0.0
  %865 = vmatpush1.msra.mxu0 0.0
  %866 = vmatprep.subr.mxu0 0.0
  %867 = vmatpush1.msra.mxu0 0.0
  %868 = vmatprep.subr.mxu0 0.0
  %869 = vmatpush1.msra.mxu0 0.0
  %870 = vmatprep.subr.mxu0 0.0
  %871 = vmatpush1.msra.mxu0 0.0
  %872 = vmatprep.subr.mxu0 0.0
  %873 = vmatpush1.msra.mxu0 0.0
  %874 = vmatprep.subr.mxu0 0.0
  %875 = vmatpush1.msra.mxu0 0.0
  %876 = vmatprep.subr.mxu0 0.0
  %877 = vmatpush1.msra.mxu0 0.0
  %878 = vmatprep.subr.mxu0 0.0
  %879 = vmatpush1.msra.mxu0 0.0
  %880 = vmatprep.subr.mxu0 0.0
  %881 = vmatpush1.msra.mxu0 0.0
  %882 = vmatprep.subr.mxu0 0.0
  %883 = vmatpush1.msra.mxu0 0.0
  %884 = vmatprep.subr.mxu0 0.0
  %885 = vmatpush1.msra.mxu0 0.0
  %886 = vmatprep.subr.mxu0 0.0
  %887 = vmatpush1.msra.mxu0 0.0
  %888 = vmatprep.subr.mxu0 0.0
  %889 = vmatpush1.msra.mxu0 0.0
  %890 = vmatprep.subr.mxu0 0.0
  %891 = vmatpush1.msra.mxu0 0.0
  %892 = vmatprep.mubr.f32.mxu0 0.0
  %893 = vmatmul.mubr.f32.gmra.mrb[0].mxu0 %v823
  %v894 = vpop.f32.mrb[0].mxu0
  %v895 = vadd.f32 0.0, %v894
  %v896 = vpop.f32.mrb[0].mxu0
  %897 = vmatprep.mubr.f32.mxu0 0.0
  %898 = vmatmul.mubr.f32.gmra.mrb[0].mxu0 %v826
  %v899 = vpop.f32.mrb[0].mxu0
  %v900 = vadd.f32 0.0, %v899
  %v901 = vpop.f32.mrb[0].mxu0
  %902 = vdwg.mxu0
  %v904 = vsel %vm684, %v705, 0
  %v907 = vsel %vm684, %v706, 0
  %909 = vmatprep.subr.mxu0 0.0
  %910 = vmatpush1.msra.mxu0 %v503
  %911 = vmatprep.subr.mxu0 0.0
  %912 = vmatpush1.msra.mxu0 %v509
  %913 = vmatprep.subr.mxu0 0.0
  %914 = vmatpush1.msra.mxu0 0.0
  %915 = vmatprep.subr.mxu0 0.0
  %916 = vmatpush1.msra.mxu0 0.0
  %917 = vmatprep.subr.mxu0 0.0
  %918 = vmatpush1.msra.mxu0 0.0
  %919 = vmatprep.subr.mxu0 0.0
  %920 = vmatpush1.msra.mxu0 0.0
  %921 = vmatprep.subr.mxu0 0.0
  %922 = vmatpush1.msra.mxu0 0.0
  %923 = vmatprep.subr.mxu0 0.0
  %924 = vmatpush1.msra.mxu0 0.0
  %925 = vmatprep.subr.mxu0 0.0
  %926 = vmatpush1.msra.mxu0 0.0
  %927 = vmatprep.subr.mxu0 0.0
  %928 = vmatpush1.msra.mxu0 0.0
  %929 = vmatprep.subr.mxu0 0.0
  %930 = vmatpush1.msra.mxu0 0.0
  %931 = vmatprep.subr.mxu0 0.0
  %932 = vmatpush1.msra.mxu0 0.0
  %933 = vmatprep.subr.mxu0 0.0
  %934 = vmatpush1.msra.mxu0 0.0
  %935 = vmatprep.subr.mxu0 0.0
  %936 = vmatpush1.msra.mxu0 0.0
  %937 = vmatprep.subr.mxu0 0.0
  %938 = vmatpush1.msra.mxu0 0.0
  %939 = vmatprep.subr.mxu0 0.0
  %940 = vmatpush1.msra.mxu0 0.0
  %941 = vmatprep.subr.mxu0 0.0
  %942 = vmatpush1.msra.mxu0 0.0
  %943 = vmatprep.subr.mxu0 0.0
  %944 = vmatpush1.msra.mxu0 0.0
  %945 = vmatprep.subr.mxu0 0.0
  %946 = vmatpush1.msra.mxu0 0.0
  %947 = vmatprep.subr.mxu0 0.0
  %948 = vmatpush1.msra.mxu0 0.0
  %949 = vmatprep.subr.mxu0 0.0
  %950 = vmatpush1.msra.mxu0 0.0
  %951 = vmatprep.subr.mxu0 0.0
  %952 = vmatpush1.msra.mxu0 0.0
  %953 = vmatprep.subr.mxu0 0.0
  %954 = vmatpush1.msra.mxu0 0.0
  %955 = vmatprep.subr.mxu0 0.0
  %956 = vmatpush1.msra.mxu0 0.0
  %957 = vmatprep.subr.mxu0 0.0
  %958 = vmatpush1.msra.mxu0 0.0
  %959 = vmatprep.subr.mxu0 0.0
  %960 = vmatpush1.msra.mxu0 0.0
  %961 = vmatprep.subr.mxu0 0.0
  %962 = vmatpush1.msra.mxu0 0.0
  %963 = vmatprep.subr.mxu0 0.0
  %964 = vmatpush1.msra.mxu0 0.0
  %965 = vmatprep.subr.mxu0 0.0
  %966 = vmatpush1.msra.mxu0 0.0
  %967 = vmatprep.subr.mxu0 0.0
  %968 = vmatpush1.msra.mxu0 0.0
  %969 = vmatprep.subr.mxu0 0.0
  %970 = vmatpush1.msra.mxu0 0.0
  %971 = vmatprep.subr.mxu0 0.0
  %972 = vmatpush1.msra.mxu0 0.0
  %973 = vmatprep.mubr.f32.mxu0 0.0
  %974 = vmatmul.mubr.f32.gmra.mrb[0].mxu0 %v904
  %v975 = vpop.f32.mrb[0].mxu0
  %v976 = vadd.f32 %v895, %v975
  %v977 = vpop.f32.mrb[0].mxu0
  %978 = vmatprep.mubr.f32.mxu0 0.0
  %979 = vmatmul.mubr.f32.gmra.mrb[0].mxu0 %v907
  %v980 = vpop.f32.mrb[0].mxu0
  %v981 = vadd.f32 %v900, %v980
  %v982 = vpop.f32.mrb[0].mxu0
  %983 = vdwg.mxu0
  %v984 = vld [vmem:[%s2 + $0x4] sm:$0x1]
  %v985 = vlaneseq
  %v986 = vshrl.u32 %v985, 7
  %v987 = vsub.s32 0, %v986
  %v988 = vrot.slane %v984, %v987
  %v989 = vadd.f32 %v976, %v988
  %v990 = vadd.f32 %v981, %v988
  %v991 = vadd.f32 %v347, %v989
  %v992 = vadd.f32 %v353, %v990
  %v993 = vld [vmem:[%s2 + $0x5] sm:$0x1]
  %v994 = vld [vmem:[%s2 + $0x6] sm:$0x1]
  %995 = vadd.xlane.f32.xlu0 %v991
  %v996 = vpop.xlane.xlu0 %995
  %997 = vadd.xlane.f32.xlu0 %v992
  %v998 = vpop.xlane.xlu0 %997
  %v999 = vmul.f32 %v996, 0.1
  %v1000 = vmul.f32 %v998, 0.1
  %v1001 = vsub.f32 %v991, %v999
  %v1002 = vsub.f32 %v992, %v1000
  %v1003 = vmul.f32 %v1001, %v588
  %v1004 = vmul.f32 %v1002, %v588
  %v1005 = vmul.f32 %v1003, %v1003
  %v1006 = vmul.f32 %v1004, %v1004
  %1007 = vadd.xlane.f32.xlu0 %v1005
  %v1008 = vpop.xlane.xlu0 %1007
  %1009 = vadd.xlane.f32.xlu0 %v1006
  %v1010 = vpop.xlane.xlu0 %1009
  %v1011 = vmul.f32 %v1008, 0.1
  %v1012 = vmul.f32 %v1010, 0.1
  %v1013 = vadd.f32 %v1011, 1e-05
  %v1014 = vadd.f32 %v1012, 1e-05
  %v1015 = vrsqrt.pop %v1013
  %v1016 = vrsqrt.pop %v1014
  %v1017 = vmul.f32 %v1003, %v1015
  %v1018 = vmul.f32 %v1004, %v1016
  %v1019 = vlaneseq
  %v1020 = vshrl.u32 %v1019, 7
  %v1021 = vsub.s32 0, %v1020
  %v1022 = vrot.slane %v993, %v1021
  %v1023 = vmul.f32 %v1017, %v1022
  %v1024 = vmul.f32 %v1018, %v1022
  %v1025 = vlaneseq
  %v1026 = vshrl.u32 %v1025, 7
  %v1027 = vsub.s32 0, %v1026
  %v1028 = vrot.slane %v994, %v1027
  %v1029 = vadd.f32 %v1023, %v1028
  %v1030 = vadd.f32 %v1024, %v1028
  %v1031 = vpack.c.bf16 %v1030, %v1029
  %v1032 = vld [vmem:[%s4] sm:$0xff]
  %v1033 = vld [vmem:[%s4 + $0x8] sm:$0xff]
  %v1034 = vld [vmem:[%s4 + $0x10] sm:$0xff]
  %v1035 = vld [vmem:[%s4 + $0x18] sm:$0xff]
  %v1036 = vld [vmem:[%s4 + $0x20] sm:$0xff]
  %v1037 = vld [vmem:[%s4 + $0x28] sm:$0xff]
  %v1038 = vld [vmem:[%s4 + $0x30] sm:$0xff]
  %v1039 = vld [vmem:[%s4 + $0x38] sm:$0xff]
  %v1040 = vld [vmem:[%s4 + $0x40] sm:$0xff]
  %v1041 = vld [vmem:[%s4 + $0x48] sm:$0xff]
  %v1042 = vld [vmem:[%s4 + $0x50] sm:$0xff]
  %v1043 = vld [vmem:[%s4 + $0x58] sm:$0xff]
  %v1044 = vld [vmem:[%s4 + $0x60] sm:$0xff]
  %v1045 = vld [vmem:[%s4 + $0x68] sm:$0xff]
  %v1046 = vld [vmem:[%s4 + $0x70] sm:$0xff]
  %v1047 = vld [vmem:[%s4 + $0x78] sm:$0xff]
  %v1048 = vld [vmem:[%s4 + $0x80] sm:$0xff]
  %v1049 = vld [vmem:[%s4 + $0x88] sm:$0xff]
  %v1050 = vld [vmem:[%s4 + $0x90] sm:$0xff]
  %v1051 = vld [vmem:[%s4 + $0x98] sm:$0xff]
  %v1052 = vld [vmem:[%s4 + $0xa0] sm:$0xff]
  %v1053 = vld [vmem:[%s4 + $0xa8] sm:$0xff]
  %v1054 = vld [vmem:[%s4 + $0xb0] sm:$0xff]
  %v1055 = vld [vmem:[%s4 + $0xb8] sm:$0xff]
  %v1056 = vld [vmem:[%s4 + $0xc0] sm:$0xff]
  %v1057 = vld [vmem:[%s4 + $0xc8] sm:$0xff]
  %v1058 = vld [vmem:[%s4 + $0xd0] sm:$0xff]
  %v1059 = vld [vmem:[%s4 + $0xd8] sm:$0xff]
  %v1060 = vld [vmem:[%s4 + $0xe0] sm:$0xff]
  %v1061 = vld [vmem:[%s4 + $0xe8] sm:$0xff]
  %v1062 = vld [vmem:[%s4 + $0xf0] sm:$0xff]
  %v1063 = vld [vmem:[%s4 + $0xf8] sm:$0xff]
  %v1064 = vld [vmem:[%s4 + $0x100] sm:$0xff]
  %v1065 = vld [vmem:[%s4 + $0x108] sm:$0xff]
  %v1066 = vld [vmem:[%s4 + $0x110] sm:$0xff]
  %v1067 = vld [vmem:[%s4 + $0x118] sm:$0xff]
  %v1068 = vld [vmem:[%s4 + $0x120] sm:$0xff]
  %v1069 = vld [vmem:[%s4 + $0x128] sm:$0xff]
  %v1070 = vld [vmem:[%s4 + $0x130] sm:$0xff]
  %v1071 = vld [vmem:[%s4 + $0x138] sm:$0xff]
  %v1072 = vld [vmem:[%s4 + $0x140] sm:$0xff]
  %v1073 = vld [vmem:[%s4 + $0x148] sm:$0xff]
  %v1074 = vld [vmem:[%s4 + $0x150] sm:$0xff]
  %v1075 = vld [vmem:[%s4 + $0x158] sm:$0xff]
  %v1076 = vld [vmem:[%s4 + $0x160] sm:$0xff]
  %v1077 = vld [vmem:[%s4 + $0x168] sm:$0xff]
  %v1078 = vld [vmem:[%s4 + $0x170] sm:$0xff]
  %v1079 = vld [vmem:[%s4 + $0x178] sm:$0xff]
  %v1080 = vld [vmem:[%s4 + $0x180] sm:$0xff]
  %v1081 = vld [vmem:[%s4 + $0x188] sm:$0xff]
  %v1082 = vld [vmem:[%s4 + $0x190] sm:$0xff]
  %v1083 = vld [vmem:[%s4 + $0x198] sm:$0xff]
  %v1084 = vld [vmem:[%s4 + $0x1a0] sm:$0xff]
  %v1085 = vld [vmem:[%s4 + $0x1a8] sm:$0xff]
  %v1086 = vld [vmem:[%s4 + $0x1b0] sm:$0xff]
  %v1087 = vld [vmem:[%s4 + $0x1b8] sm:$0xff]
  %v1088 = vld [vmem:[%s4 + $0x1c0] sm:$0xff]
  %v1089 = vld [vmem:[%s4 + $0x1c8] sm:$0xff]
  %v1090 = vld [vmem:[%s4 + $0x1d0] sm:$0xff]
  %v1091 = vld [vmem:[%s4 + $0x1d8] sm:$0xff]
  %v1092 = vld [vmem:[%s4 + $0x1e0] sm:$0xff]
  %v1093 = vld [vmem:[%s4 + $0x1e8] sm:$0xff]
  %v1094 = vld [vmem:[%s4 + $0x1f0] sm:$0xff]
  %v1095 = vld [vmem:[%s4 + $0x1f8] sm:$0xff]
  %v1096 = vld [vmem:[%s4 + $0x200] sm:$0xff]
  %v1097 = vld [vmem:[%s4 + $0x208] sm:$0xff]
  %v1098 = vld [vmem:[%s4 + $0x210] sm:$0xff]
  %v1099 = vld [vmem:[%s4 + $0x218] sm:$0xff]
  %v1100 = vld [vmem:[%s4 + $0x220] sm:$0xff]
  %v1101 = vld [vmem:[%s4 + $0x228] sm:$0xff]
  %v1102 = vld [vmem:[%s4 + $0x230] sm:$0xff]
  %v1103 = vld [vmem:[%s4 + $0x238] sm:$0xff]
  %v1104 = vld [vmem:[%s4 + $0x240] sm:$0xff]
  %v1105 = vld [vmem:[%s4 + $0x248] sm:$0xff]
  %v1106 = vld [vmem:[%s4 + $0x250] sm:$0xff]
  %v1107 = vld [vmem:[%s4 + $0x258] sm:$0xff]
  %v1108 = vld [vmem:[%s4 + $0x260] sm:$0xff]
  %v1109 = vld [vmem:[%s4 + $0x268] sm:$0xff]
  %v1110 = vld [vmem:[%s4 + $0x270] sm:$0xff]
  %v1111 = vld [vmem:[%s4 + $0x278] sm:$0xff]
  %v1112 = vld [vmem:[%s4 + $0x280] sm:$0xff]
  %v1113 = vld [vmem:[%s4 + $0x288] sm:$0xff]
  %v1114 = vld [vmem:[%s4 + $0x290] sm:$0xff]
  %v1115 = vld [vmem:[%s4 + $0x298] sm:$0xff]
  %v1116 = vld [vmem:[%s4 + $0x2a0] sm:$0xff]
  %v1117 = vld [vmem:[%s4 + $0x2a8] sm:$0xff]
  %v1118 = vld [vmem:[%s4 + $0x2b0] sm:$0xff]
  %v1119 = vld [vmem:[%s4 + $0x2b8] sm:$0xff]
  %v1120 = vld [vmem:[%s4 + $0x2c0] sm:$0xff]
  %v1121 = vld [vmem:[%s4 + $0x2c8] sm:$0xff]
  %v1122 = vld [vmem:[%s4 + $0x2d0] sm:$0xff]
  %v1123 = vld [vmem:[%s4 + $0x2d8] sm:$0xff]
  %v1124 = vld [vmem:[%s4 + $0x2e0] sm:$0xff]
  %v1125 = vld [vmem:[%s4 + $0x2e8] sm:$0xff]
  %v1126 = vld [vmem:[%s4 + $0x2f0] sm:$0xff]
  %v1127 = vld [vmem:[%s4 + $0x2f8] sm:$0xff]
  %v1128 = vld [vmem:[%s4 + $0x300] sm:$0xff]
  %v1129 = vld [vmem:[%s4 + $0x308] sm:$0xff]
  %v1130 = vld [vmem:[%s4 + $0x310] sm:$0xff]
  %v1131 = vld [vmem:[%s4 + $0x318] sm:$0xff]
  %v1132 = vld [vmem:[%s4 + $0x320] sm:$0xff]
  %v1133 = vld [vmem:[%s4 + $0x328] sm:$0xff]
  %v1134 = vld [vmem:[%s4 + $0x330] sm:$0xff]
  %v1135 = vld [vmem:[%s4 + $0x338] sm:$0xff]
  %v1136 = vld [vmem:[%s4 + $0x340] sm:$0xff]
  %v1137 = vld [vmem:[%s4 + $0x348] sm:$0xff]
  %v1138 = vld [vmem:[%s4 + $0x350] sm:$0xff]
  %v1139 = vld [vmem:[%s4 + $0x358] sm:$0xff]
  %v1140 = vld [vmem:[%s4 + $0x360] sm:$0xff]
  %v1141 = vld [vmem:[%s4 + $0x368] sm:$0xff]
  %v1142 = vld [vmem:[%s4 + $0x370] sm:$0xff]
  %v1143 = vld [vmem:[%s4 + $0x378] sm:$0xff]
  %v1144 = vld [vmem:[%s4 + $0x380] sm:$0xff]
  %v1145 = vld [vmem:[%s4 + $0x388] sm:$0xff]
  %v1146 = vld [vmem:[%s4 + $0x390] sm:$0xff]
  %v1147 = vld [vmem:[%s4 + $0x398] sm:$0xff]
  %v1148 = vld [vmem:[%s4 + $0x3a0] sm:$0xff]
  %v1149 = vld [vmem:[%s4 + $0x3a8] sm:$0xff]
  %v1150 = vld [vmem:[%s4 + $0x3b0] sm:$0xff]
  %v1151 = vld [vmem:[%s4 + $0x3b8] sm:$0xff]
  %v1152 = vld [vmem:[%s4 + $0x3c0] sm:$0xff]
  %v1153 = vld [vmem:[%s4 + $0x3c8] sm:$0xff]
  %v1154 = vld [vmem:[%s4 + $0x3d0] sm:$0xff]
  %v1155 = vld [vmem:[%s4 + $0x3d8] sm:$0xff]
  %v1156 = vld [vmem:[%s4 + $0x3e0] sm:$0xff]
  %v1157 = vld [vmem:[%s4 + $0x3e8] sm:$0xff]
  %v1158 = vld [vmem:[%s4 + $0x3f0] sm:$0xff]
  %v1159 = vld [vmem:[%s4 + $0x3f8] sm:$0xff]
  %v1160 = vld [vmem:[%s5] sm:$0xff]
  %v1161 = vld [vmem:[%s5 + $0x8] sm:$0xff]
  %v1164 = vlaneseq
  %v1165 = vshrl.u32 %v1164, 7
  %v1166 = vsub.s32 0, %v1165
  %v1167 = vrot.slane %v1160, %v1166
  %v1168 = vlaneseq
  %v1169 = vshrl.u32 %v1168, 7
  %v1170 = vsub.s32 1, %v1169
  %v1171 = vrot.slane %v1160, %v1170
  %v1172 = vlaneseq
  %v1173 = vshrl.u32 %v1172, 7
  %v1174 = vsub.s32 2, %v1173
  %v1175 = vrot.slane %v1160, %v1174
  %v1176 = vlaneseq
  %v1177 = vshrl.u32 %v1176, 7
  %v1178 = vsub.s32 3, %v1177
  %v1179 = vrot.slane %v1160, %v1178
  %v1180 = vlaneseq
  %v1181 = vshrl.u32 %v1180, 7
  %v1182 = vsub.s32 4, %v1181
  %v1183 = vrot.slane %v1160, %v1182
  %v1184 = vlaneseq
  %v1185 = vshrl.u32 %v1184, 7
  %v1186 = vsub.s32 5, %v1185
  %v1187 = vrot.slane %v1160, %v1186
  %v1188 = vlaneseq
  %v1189 = vshrl.u32 %v1188, 7
  %v1190 = vsub.s32 6, %v1189
  %v1191 = vrot.slane %v1160, %v1190
  %v1192 = vlaneseq
  %v1193 = vshrl.u32 %v1192, 7
  %v1194 = vsub.s32 7, %v1193
  %v1195 = vrot.slane %v1160, %v1194
  %v1196 = vlaneseq
  %v1197 = vshrl.u32 %v1196, 7
  %v1198 = vsub.s32 0, %v1197
  %v1199 = vrot.slane %v1161, %v1198
  %v1200 = vlaneseq
  %v1201 = vshrl.u32 %v1200, 7
  %v1202 = vsub.s32 1, %v1201
  %v1203 = vrot.slane %v1161, %v1202
  %v1204 = vlaneseq
  %v1205 = vshrl.u32 %v1204, 7
  %v1206 = vsub.s32 2, %v1205
  %v1207 = vrot.slane %v1161, %v1206
  %v1208 = vlaneseq
  %v1209 = vshrl.u32 %v1208, 7
  %v1210 = vsub.s32 3, %v1209
  %v1211 = vrot.slane %v1161, %v1210
  %v1212 = vlaneseq
  %v1213 = vshrl.u32 %v1212, 7
  %v1214 = vsub.s32 4, %v1213
  %v1215 = vrot.slane %v1161, %v1214
  %v1216 = vlaneseq
  %v1217 = vshrl.u32 %v1216, 7
  %v1218 = vsub.s32 5, %v1217
  %v1219 = vrot.slane %v1161, %v1218
  %v1220 = vlaneseq
  %v1221 = vshrl.u32 %v1220, 7
  %v1222 = vsub.s32 6, %v1221
  %v1223 = vrot.slane %v1161, %v1222
  %v1224 = vlaneseq
  %v1225 = vshrl.u32 %v1224, 7
  %v1226 = vsub.s32 7, %v1225
  %v1227 = vrot.slane %v1161, %v1226
  %v1372 = vunpack.c.l.b16 %v1032
  %v1373 = vunpack.c.h.b16 %v1032
  %v1374 = vunpack.c.l.b16 %v1033
  %v1375 = vunpack.c.h.b16 %v1033
  %v1376 = vunpack.c.l.b16 %v1034
  %v1377 = vunpack.c.h.b16 %v1034
  %v1378 = vunpack.c.l.b16 %v1035
  %v1379 = vunpack.c.h.b16 %v1035
  %v1380 = vunpack.c.l.b16 %v1036
  %v1381 = vunpack.c.h.b16 %v1036
  %v1382 = vunpack.c.l.b16 %v1037
  %v1383 = vunpack.c.h.b16 %v1037
  %v1384 = vunpack.c.l.b16 %v1038
  %v1385 = vunpack.c.h.b16 %v1038
  %v1386 = vunpack.c.l.b16 %v1039
  %v1387 = vunpack.c.h.b16 %v1039
  %v1388 = vunpack.c.l.b16 %v1040
  %v1389 = vunpack.c.h.b16 %v1040
  %v1390 = vunpack.c.l.b16 %v1041
  %v1391 = vunpack.c.h.b16 %v1041
  %v1392 = vunpack.c.l.b16 %v1042
  %v1393 = vunpack.c.h.b16 %v1042
  %v1394 = vunpack.c.l.b16 %v1043
  %v1395 = vunpack.c.h.b16 %v1043
  %v1396 = vunpack.c.l.b16 %v1044
  %v1397 = vunpack.c.h.b16 %v1044
  %v1398 = vunpack.c.l.b16 %v1045
  %v1399 = vunpack.c.h.b16 %v1045
  %v1400 = vunpack.c.l.b16 %v1046
  %v1401 = vunpack.c.h.b16 %v1046
  %v1402 = vunpack.c.l.b16 %v1047
  %v1403 = vunpack.c.h.b16 %v1047
  %v1404 = vunpack.c.l.b16 %v1048
  %v1405 = vunpack.c.h.b16 %v1048
  %v1406 = vunpack.c.l.b16 %v1049
  %v1407 = vunpack.c.h.b16 %v1049
  %v1408 = vunpack.c.l.b16 %v1050
  %v1409 = vunpack.c.h.b16 %v1050
  %v1410 = vunpack.c.l.b16 %v1051
  %v1411 = vunpack.c.h.b16 %v1051
  %v1412 = vunpack.c.l.b16 %v1052
  %v1413 = vunpack.c.h.b16 %v1052
  %v1414 = vunpack.c.l.b16 %v1053
  %v1415 = vunpack.c.h.b16 %v1053
  %v1416 = vunpack.c.l.b16 %v1054
  %v1417 = vunpack.c.h.b16 %v1054
  %v1418 = vunpack.c.l.b16 %v1055
  %v1419 = vunpack.c.h.b16 %v1055
  %v1420 = vunpack.c.l.b16 %v1056
  %v1421 = vunpack.c.h.b16 %v1056
  %v1422 = vunpack.c.l.b16 %v1057
  %v1423 = vunpack.c.h.b16 %v1057
  %v1424 = vunpack.c.l.b16 %v1058
  %v1425 = vunpack.c.h.b16 %v1058
  %v1426 = vunpack.c.l.b16 %v1059
  %v1427 = vunpack.c.h.b16 %v1059
  %v1428 = vunpack.c.l.b16 %v1060
  %v1429 = vunpack.c.h.b16 %v1060
  %v1430 = vunpack.c.l.b16 %v1061
  %v1431 = vunpack.c.h.b16 %v1061
  %v1432 = vunpack.c.l.b16 %v1062
  %v1433 = vunpack.c.h.b16 %v1062
  %v1434 = vunpack.c.l.b16 %v1063
  %v1435 = vunpack.c.h.b16 %v1063
  %v1436 = vunpack.c.l.b16 %v1064
  %v1437 = vunpack.c.h.b16 %v1064
  %v1438 = vunpack.c.l.b16 %v1065
  %v1439 = vunpack.c.h.b16 %v1065
  %v1440 = vunpack.c.l.b16 %v1066
  %v1441 = vunpack.c.h.b16 %v1066
  %v1442 = vunpack.c.l.b16 %v1067
  %v1443 = vunpack.c.h.b16 %v1067
  %v1444 = vunpack.c.l.b16 %v1068
  %v1445 = vunpack.c.h.b16 %v1068
  %v1446 = vunpack.c.l.b16 %v1069
  %v1447 = vunpack.c.h.b16 %v1069
  %v1448 = vunpack.c.l.b16 %v1070
  %v1449 = vunpack.c.h.b16 %v1070
  %v1450 = vunpack.c.l.b16 %v1071
  %v1451 = vunpack.c.h.b16 %v1071
  %v1452 = vunpack.c.l.b16 %v1072
  %v1453 = vunpack.c.h.b16 %v1072
  %v1454 = vunpack.c.l.b16 %v1073
  %v1455 = vunpack.c.h.b16 %v1073
  %v1456 = vunpack.c.l.b16 %v1074
  %v1457 = vunpack.c.h.b16 %v1074
  %v1458 = vunpack.c.l.b16 %v1075
  %v1459 = vunpack.c.h.b16 %v1075
  %v1460 = vunpack.c.l.b16 %v1076
  %v1461 = vunpack.c.h.b16 %v1076
  %v1462 = vunpack.c.l.b16 %v1077
  %v1463 = vunpack.c.h.b16 %v1077
  %v1464 = vunpack.c.l.b16 %v1078
  %v1465 = vunpack.c.h.b16 %v1078
  %v1466 = vunpack.c.l.b16 %v1079
  %v1467 = vunpack.c.h.b16 %v1079
  %v1468 = vunpack.c.l.b16 %v1080
  %v1469 = vunpack.c.h.b16 %v1080
  %v1470 = vunpack.c.l.b16 %v1081
  %v1471 = vunpack.c.h.b16 %v1081
  %v1472 = vunpack.c.l.b16 %v1082
  %v1473 = vunpack.c.h.b16 %v1082
  %v1474 = vunpack.c.l.b16 %v1083
  %v1475 = vunpack.c.h.b16 %v1083
  %v1476 = vunpack.c.l.b16 %v1084
  %v1477 = vunpack.c.h.b16 %v1084
  %v1478 = vunpack.c.l.b16 %v1085
  %v1479 = vunpack.c.h.b16 %v1085
  %v1480 = vunpack.c.l.b16 %v1086
  %v1481 = vunpack.c.h.b16 %v1086
  %v1482 = vunpack.c.l.b16 %v1087
  %v1483 = vunpack.c.h.b16 %v1087
  %v1484 = vunpack.c.l.b16 %v1088
  %v1485 = vunpack.c.h.b16 %v1088
  %v1486 = vunpack.c.l.b16 %v1089
  %v1487 = vunpack.c.h.b16 %v1089
  %v1488 = vunpack.c.l.b16 %v1090
  %v1489 = vunpack.c.h.b16 %v1090
  %v1490 = vunpack.c.l.b16 %v1091
  %v1491 = vunpack.c.h.b16 %v1091
  %v1492 = vunpack.c.l.b16 %v1092
  %v1493 = vunpack.c.h.b16 %v1092
  %v1494 = vunpack.c.l.b16 %v1093
  %v1495 = vunpack.c.h.b16 %v1093
  %v1496 = vunpack.c.l.b16 %v1094
  %v1497 = vunpack.c.h.b16 %v1094
  %v1498 = vunpack.c.l.b16 %v1095
  %v1499 = vunpack.c.h.b16 %v1095
  %v1500 = vunpack.c.l.b16 %v1096
  %v1501 = vunpack.c.h.b16 %v1096
  %v1502 = vunpack.c.l.b16 %v1097
  %v1503 = vunpack.c.h.b16 %v1097
  %v1504 = vunpack.c.l.b16 %v1098
  %v1505 = vunpack.c.h.b16 %v1098
  %v1506 = vunpack.c.l.b16 %v1099
  %v1507 = vunpack.c.h.b16 %v1099
  %v1508 = vunpack.c.l.b16 %v1100
  %v1509 = vunpack.c.h.b16 %v1100
  %v1510 = vunpack.c.l.b16 %v1101
  %v1511 = vunpack.c.h.b16 %v1101
  %v1512 = vunpack.c.l.b16 %v1102
  %v1513 = vunpack.c.h.b16 %v1102
  %v1514 = vunpack.c.l.b16 %v1103
  %v1515 = vunpack.c.h.b16 %v1103
  %v1516 = vunpack.c.l.b16 %v1104
  %v1517 = vunpack.c.h.b16 %v1104
  %v1518 = vunpack.c.l.b16 %v1105
  %v1519 = vunpack.c.h.b16 %v1105
  %v1520 = vunpack.c.l.b16 %v1106
  %v1521 = vunpack.c.h.b16 %v1106
  %v1522 = vunpack.c.l.b16 %v1107
  %v1523 = vunpack.c.h.b16 %v1107
  %v1524 = vunpack.c.l.b16 %v1108
  %v1525 = vunpack.c.h.b16 %v1108
  %v1526 = vunpack.c.l.b16 %v1109
  %v1527 = vunpack.c.h.b16 %v1109
  %v1528 = vunpack.c.l.b16 %v1110
  %v1529 = vunpack.c.h.b16 %v1110
  %v1530 = vunpack.c.l.b16 %v1111
  %v1531 = vunpack.c.h.b16 %v1111
  %v1532 = vunpack.c.l.b16 %v1112
  %v1533 = vunpack.c.h.b16 %v1112
  %v1534 = vunpack.c.l.b16 %v1113
  %v1535 = vunpack.c.h.b16 %v1113
  %v1536 = vunpack.c.l.b16 %v1114
  %v1537 = vunpack.c.h.b16 %v1114
  %v1538 = vunpack.c.l.b16 %v1115
  %v1539 = vunpack.c.h.b16 %v1115
  %v1540 = vunpack.c.l.b16 %v1116
  %v1541 = vunpack.c.h.b16 %v1116
  %v1542 = vunpack.c.l.b16 %v1117
  %v1543 = vunpack.c.h.b16 %v1117
  %v1544 = vunpack.c.l.b16 %v1118
  %v1545 = vunpack.c.h.b16 %v1118
  %v1546 = vunpack.c.l.b16 %v1119
  %v1547 = vunpack.c.h.b16 %v1119
  %v1548 = vunpack.c.l.b16 %v1120
  %v1549 = vunpack.c.h.b16 %v1120
  %v1550 = vunpack.c.l.b16 %v1121
  %v1551 = vunpack.c.h.b16 %v1121
  %v1552 = vunpack.c.l.b16 %v1122
  %v1553 = vunpack.c.h.b16 %v1122
  %v1554 = vunpack.c.l.b16 %v1123
  %v1555 = vunpack.c.h.b16 %v1123
  %v1556 = vunpack.c.l.b16 %v1124
  %v1557 = vunpack.c.h.b16 %v1124
  %v1558 = vunpack.c.l.b16 %v1125
  %v1559 = vunpack.c.h.b16 %v1125
  %v1560 = vunpack.c.l.b16 %v1126
  %v1561 = vunpack.c.h.b16 %v1126
  %v1562 = vunpack.c.l.b16 %v1127
  %v1563 = vunpack.c.h.b16 %v1127
  %v1564 = vunpack.c.l.b16 %v1128
  %v1565 = vunpack.c.h.b16 %v1128
  %v1566 = vunpack.c.l.b16 %v1129
  %v1567 = vunpack.c.h.b16 %v1129
  %v1568 = vunpack.c.l.b16 %v1130
  %v1569 = vunpack.c.h.b16 %v1130
  %v1570 = vunpack.c.l.b16 %v1131
  %v1571 = vunpack.c.h.b16 %v1131
  %v1572 = vunpack.c.l.b16 %v1132
  %v1573 = vunpack.c.h.b16 %v1132
  %v1574 = vunpack.c.l.b16 %v1133
  %v1575 = vunpack.c.h.b16 %v1133
  %v1576 = vunpack.c.l.b16 %v1134
  %v1577 = vunpack.c.h.b16 %v1134
  %v1578 = vunpack.c.l.b16 %v1135
  %v1579 = vunpack.c.h.b16 %v1135
  %v1580 = vunpack.c.l.b16 %v1136
  %v1581 = vunpack.c.h.b16 %v1136
  %v1582 = vunpack.c.l.b16 %v1137
  %v1583 = vunpack.c.h.b16 %v1137
  %v1584 = vunpack.c.l.b16 %v1138
  %v1585 = vunpack.c.h.b16 %v1138
  %v1586 = vunpack.c.l.b16 %v1139
  %v1587 = vunpack.c.h.b16 %v1139
  %v1588 = vunpack.c.l.b16 %v1140
  %v1589 = vunpack.c.h.b16 %v1140
  %v1590 = vunpack.c.l.b16 %v1141
  %v1591 = vunpack.c.h.b16 %v1141
  %v1592 = vunpack.c.l.b16 %v1142
  %v1593 = vunpack.c.h.b16 %v1142
  %v1594 = vunpack.c.l.b16 %v1143
  %v1595 = vunpack.c.h.b16 %v1143
  %v1596 = vunpack.c.l.b16 %v1144
  %v1597 = vunpack.c.h.b16 %v1144
  %v1598 = vunpack.c.l.b16 %v1145
  %v1599 = vunpack.c.h.b16 %v1145
  %v1600 = vunpack.c.l.b16 %v1146
  %v1601 = vunpack.c.h.b16 %v1146
  %v1602 = vunpack.c.l.b16 %v1147
  %v1603 = vunpack.c.h.b16 %v1147
  %v1604 = vunpack.c.l.b16 %v1148
  %v1605 = vunpack.c.h.b16 %v1148
  %v1606 = vunpack.c.l.b16 %v1149
  %v1607 = vunpack.c.h.b16 %v1149
  %v1608 = vunpack.c.l.b16 %v1150
  %v1609 = vunpack.c.h.b16 %v1150
  %v1610 = vunpack.c.l.b16 %v1151
  %v1611 = vunpack.c.h.b16 %v1151
  %v1612 = vunpack.c.l.b16 %v1152
  %v1613 = vunpack.c.h.b16 %v1152
  %v1614 = vunpack.c.l.b16 %v1153
  %v1615 = vunpack.c.h.b16 %v1153
  %v1616 = vunpack.c.l.b16 %v1154
  %v1617 = vunpack.c.h.b16 %v1154
  %v1618 = vunpack.c.l.b16 %v1155
  %v1619 = vunpack.c.h.b16 %v1155
  %v1620 = vunpack.c.l.b16 %v1156
  %v1621 = vunpack.c.h.b16 %v1156
  %v1622 = vunpack.c.l.b16 %v1157
  %v1623 = vunpack.c.h.b16 %v1157
  %v1624 = vunpack.c.l.b16 %v1158
  %v1625 = vunpack.c.h.b16 %v1158
  %v1626 = vunpack.c.l.b16 %v1159
  %v1627 = vunpack.c.h.b16 %v1159
  %v1628 = vpack.c.b16 %v1388, %v1372
  %v1629 = vpack.c.b16 %v1389, %v1373
  %v1630 = vpack.c.b16 %v1390, %v1374
  %v1631 = vpack.c.b16 %v1391, %v1375
  %v1632 = vpack.c.b16 %v1392, %v1376
  %v1633 = vpack.c.b16 %v1393, %v1377
  %v1634 = vpack.c.b16 %v1394, %v1378
  %v1635 = vpack.c.b16 %v1395, %v1379
  %v1636 = vpack.c.b16 %v1396, %v1380
  %v1637 = vpack.c.b16 %v1397, %v1381
  %v1638 = vpack.c.b16 %v1398, %v1382
  %v1639 = vpack.c.b16 %v1399, %v1383
  %v1640 = vpack.c.b16 %v1400, %v1384
  %v1641 = vpack.c.b16 %v1401, %v1385
  %v1642 = vpack.c.b16 %v1402, %v1386
  %v1643 = vpack.c.b16 %v1403, %v1387
  %v1644 = vpack.c.b16 %v1420, %v1404
  %v1645 = vpack.c.b16 %v1421, %v1405
  %v1646 = vpack.c.b16 %v1422, %v1406
  %v1647 = vpack.c.b16 %v1423, %v1407
  %v1648 = vpack.c.b16 %v1424, %v1408
  %v1649 = vpack.c.b16 %v1425, %v1409
  %v1650 = vpack.c.b16 %v1426, %v1410
  %v1651 = vpack.c.b16 %v1427, %v1411
  %v1652 = vpack.c.b16 %v1428, %v1412
  %v1653 = vpack.c.b16 %v1429, %v1413
  %v1654 = vpack.c.b16 %v1430, %v1414
  %v1655 = vpack.c.b16 %v1431, %v1415
  %v1656 = vpack.c.b16 %v1432, %v1416
  %v1657 = vpack.c.b16 %v1433, %v1417
  %v1658 = vpack.c.b16 %v1434, %v1418
  %v1659 = vpack.c.b16 %v1435, %v1419
  %v1660 = vpack.c.b16 %v1452, %v1436
  %v1661 = vpack.c.b16 %v1453, %v1437
  %v1662 = vpack.c.b16 %v1454, %v1438
  %v1663 = vpack.c.b16 %v1455, %v1439
  %v1664 = vpack.c.b16 %v1456, %v1440
  %v1665 = vpack.c.b16 %v1457, %v1441
  %v1666 = vpack.c.b16 %v1458, %v1442
  %v1667 = vpack.c.b16 %v1459, %v1443
  %v1668 = vpack.c.b16 %v1460, %v1444
  %v1669 = vpack.c.b16 %v1461, %v1445
  %v1670 = vpack.c.b16 %v1462, %v1446
  %v1671 = vpack.c.b16 %v1463, %v1447
  %v1672 = vpack.c.b16 %v1464, %v1448
  %v1673 = vpack.c.b16 %v1465, %v1449
  %v1674 = vpack.c.b16 %v1466, %v1450
  %v1675 = vpack.c.b16 %v1467, %v1451
  %v1676 = vpack.c.b16 %v1484, %v1468
  %v1677 = vpack.c.b16 %v1485, %v1469
  %v1678 = vpack.c.b16 %v1486, %v1470
  %v1679 = vpack.c.b16 %v1487, %v1471
  %v1680 = vpack.c.b16 %v1488, %v1472
  %v1681 = vpack.c.b16 %v1489, %v1473
  %v1682 = vpack.c.b16 %v1490, %v1474
  %v1683 = vpack.c.b16 %v1491, %v1475
  %v1684 = vpack.c.b16 %v1492, %v1476
  %v1685 = vpack.c.b16 %v1493, %v1477
  %v1686 = vpack.c.b16 %v1494, %v1478
  %v1687 = vpack.c.b16 %v1495, %v1479
  %v1688 = vpack.c.b16 %v1496, %v1480
  %v1689 = vpack.c.b16 %v1497, %v1481
  %v1690 = vpack.c.b16 %v1498, %v1482
  %v1691 = vpack.c.b16 %v1499, %v1483
  %v1692 = vpack.c.b16 %v1516, %v1500
  %v1693 = vpack.c.b16 %v1517, %v1501
  %v1694 = vpack.c.b16 %v1518, %v1502
  %v1695 = vpack.c.b16 %v1519, %v1503
  %v1696 = vpack.c.b16 %v1520, %v1504
  %v1697 = vpack.c.b16 %v1521, %v1505
  %v1698 = vpack.c.b16 %v1522, %v1506
  %v1699 = vpack.c.b16 %v1523, %v1507
  %v1700 = vpack.c.b16 %v1524, %v1508
  %v1701 = vpack.c.b16 %v1525, %v1509
  %v1702 = vpack.c.b16 %v1526, %v1510
  %v1703 = vpack.c.b16 %v1527, %v1511
  %v1704 = vpack.c.b16 %v1528, %v1512
  %v1705 = vpack.c.b16 %v1529, %v1513
  %v1706 = vpack.c.b16 %v1530, %v1514
  %v1707 = vpack.c.b16 %v1531, %v1515
  %v1708 = vpack.c.b16 %v1548, %v1532
  %v1709 = vpack.c.b16 %v1549, %v1533
  %v1710 = vpack.c.b16 %v1550, %v1534
  %v1711 = vpack.c.b16 %v1551, %v1535
  %v1712 = vpack.c.b16 %v1552, %v1536
  %v1713 = vpack.c.b16 %v1553, %v1537
  %v1714 = vpack.c.b16 %v1554, %v1538
  %v1715 = vpack.c.b16 %v1555, %v1539
  %v1716 = vpack.c.b16 %v1556, %v1540
  %v1717 = vpack.c.b16 %v1557, %v1541
  %v1718 = vpack.c.b16 %v1558, %v1542
  %v1719 = vpack.c.b16 %v1559, %v1543
  %v1720 = vpack.c.b16 %v1560, %v1544
  %v1721 = vpack.c.b16 %v1561, %v1545
  %v1722 = vpack.c.b16 %v1562, %v1546
  %v1723 = vpack.c.b16 %v1563, %v1547
  %v1724 = vpack.c.b16 %v1580, %v1564
  %v1725 = vpack.c.b16 %v1581, %v1565
  %v1726 = vpack.c.b16 %v1582, %v1566
  %v1727 = vpack.c.b16 %v1583, %v1567
  %v1728 = vpack.c.b16 %v1584, %v1568
  %v1729 = vpack.c.b16 %v1585, %v1569
  %v1730 = vpack.c.b16 %v1586, %v1570
  %v1731 = vpack.c.b16 %v1587, %v1571
  %v1732 = vpack.c.b16 %v1588, %v1572
  %v1733 = vpack.c.b16 %v1589, %v1573
  %v1734 = vpack.c.b16 %v1590, %v1574
  %v1735 = vpack.c.b16 %v1591, %v1575
  %v1736 = vpack.c.b16 %v1592, %v1576
  %v1737 = vpack.c.b16 %v1593, %v1577
  %v1738 = vpack.c.b16 %v1594, %v1578
  %v1739 = vpack.c.b16 %v1595, %v1579
  %v1740 = vpack.c.b16 %v1612, %v1596
  %v1741 = vpack.c.b16 %v1613, %v1597
  %v1742 = vpack.c.b16 %v1614, %v1598
  %v1743 = vpack.c.b16 %v1615, %v1599
  %v1744 = vpack.c.b16 %v1616, %v1600
  %v1745 = vpack.c.b16 %v1617, %v1601
  %v1746 = vpack.c.b16 %v1618, %v1602
  %v1747 = vpack.c.b16 %v1619, %v1603
  %v1748 = vpack.c.b16 %v1620, %v1604
  %v1749 = vpack.c.b16 %v1621, %v1605
  %v1750 = vpack.c.b16 %v1622, %v1606
  %v1751 = vpack.c.b16 %v1623, %v1607
  %v1752 = vpack.c.b16 %v1624, %v1608
  %v1753 = vpack.c.b16 %v1625, %v1609
  %v1754 = vpack.c.b16 %v1626, %v1610
  %v1755 = vpack.c.b16 %v1627, %v1611
  %1884 = vmatprep.subr.bf16.mxu0 %v1629
  %1885 = vmatpush1.bf16.msra.mxu0 %v1628
  %1886 = vmatprep.subr.bf16.mxu0 %v1645
  %1887 = vmatpush1.bf16.msra.mxu0 %v1644
  %1888 = vmatprep.subr.bf16.mxu0 %v1661
  %1889 = vmatpush1.bf16.msra.mxu0 %v1660
  %1890 = vmatprep.subr.bf16.mxu0 %v1677
  %1891 = vmatpush1.bf16.msra.mxu0 %v1676
  %1892 = vmatprep.subr.bf16.mxu0 %v1693
  %1893 = vmatpush1.bf16.msra.mxu0 %v1692
  %1894 = vmatprep.subr.bf16.mxu0 %v1709
  %1895 = vmatpush1.bf16.msra.mxu0 %v1708
  %1896 = vmatprep.subr.bf16.mxu0 %v1725
  %1897 = vmatpush1.bf16.msra.mxu0 %v1724
  %1898 = vmatprep.subr.bf16.mxu0 %v1741
  %1899 = vmatpush1.bf16.msra.mxu0 %v1740
  %1900 = vmatprep.subr.bf16.mxu0 0
  %1901 = vmatpush1.bf16.msra.mxu0 0
  %1902 = vmatprep.subr.bf16.mxu0 0
  %1903 = vmatpush1.bf16.msra.mxu0 0
  %1904 = vmatprep.subr.bf16.mxu0 0
  %1905 = vmatpush1.bf16.msra.mxu0 0
  %1906 = vmatprep.subr.bf16.mxu0 0
  %1907 = vmatpush1.bf16.msra.mxu0 0
  %1908 = vmatprep.subr.bf16.mxu0 0
  %1909 = vmatpush1.bf16.msra.mxu0 0
  %1910 = vmatprep.subr.bf16.mxu0 0
  %1911 = vmatpush1.bf16.msra.mxu0 0
  %1912 = vmatprep.subr.bf16.mxu0 0
  %1913 = vmatpush1.bf16.msra.mxu0 0
  %1914 = vmatprep.subr.bf16.mxu0 0
  %1915 = vmatpush1.bf16.msra.mxu0 0
  %1916 = vmatprep.mubr.bf16.mxu0 0
  %1917 = vmatmul.mubr.bf16.gmra.mrb[0].mxu0 %v1031
  %v1918 = vpop.f32.mrb[0].mxu0
  %v1919 = vadd.f32 %v1167, %v1918
  %v1920 = vpop.f32.mrb[0].mxu0
  %v1921 = vadd.f32 %v1171, %v1920
  %v1922 = vpop.f32.mrb[0].mxu0
  %v1923 = vadd.f32 %v1167, %v1922
  %v1924 = vpop.f32.mrb[0].mxu0
  %v1925 = vadd.f32 %v1171, %v1924
  %1926 = vdwg.mxu0
  %1927 = vmatprep.subr.bf16.mxu0 %v1631
  %1928 = vmatpush1.bf16.msra.mxu0 %v1630
  %1929 = vmatprep.subr.bf16.mxu0 %v1647
  %1930 = vmatpush1.bf16.msra.mxu0 %v1646
  %1931 = vmatprep.subr.bf16.mxu0 %v1663
  %1932 = vmatpush1.bf16.msra.mxu0 %v1662
  %1933 = vmatprep.subr.bf16.mxu0 %v1679
  %1934 = vmatpush1.bf16.msra.mxu0 %v1678
  %1935 = vmatprep.subr.bf16.mxu0 %v1695
  %1936 = vmatpush1.bf16.msra.mxu0 %v1694
  %1937 = vmatprep.subr.bf16.mxu0 %v1711
  %1938 = vmatpush1.bf16.msra.mxu0 %v1710
  %1939 = vmatprep.subr.bf16.mxu0 %v1727
  %1940 = vmatpush1.bf16.msra.mxu0 %v1726
  %1941 = vmatprep.subr.bf16.mxu0 %v1743
  %1942 = vmatpush1.bf16.msra.mxu0 %v1742
  %1943 = vmatprep.subr.bf16.mxu0 0
  %1944 = vmatpush1.bf16.msra.mxu0 0
  %1945 = vmatprep.subr.bf16.mxu0 0
  %1946 = vmatpush1.bf16.msra.mxu0 0
  %1947 = vmatprep.subr.bf16.mxu0 0
  %1948 = vmatpush1.bf16.msra.mxu0 0
  %1949 = vmatprep.subr.bf16.mxu0 0
  %1950 = vmatpush1.bf16.msra.mxu0 0
  %1951 = vmatprep.subr.bf16.mxu0 0
  %1952 = vmatpush1.bf16.msra.mxu0 0
  %1953 = vmatprep.subr.bf16.mxu0 0
  %1954 = vmatpush1.bf16.msra.mxu0 0
  %1955 = vmatprep.subr.bf16.mxu0 0
  %1956 = vmatpush1.bf16.msra.mxu0 0
  %1957 = vmatprep.subr.bf16.mxu0 0
  %1958 = vmatpush1.bf16.msra.mxu0 0
  %1959 = vmatprep.mubr.bf16.mxu0 0
  %1960 = vmatmul.mubr.bf16.gmra.mrb[0].mxu0 %v1031
  %v1961 = vpop.f32.mrb[0].mxu0
  %v1962 = vadd.f32 %v1175, %v1961
  %v1963 = vpop.f32.mrb[0].mxu0
  %v1964 = vadd.f32 %v1179, %v1963
  %v1965 = vpop.f32.mrb[0].mxu0
  %v1966 = vadd.f32 %v1175, %v1965
  %v1967 = vpop.f32.mrb[0].mxu0
  %v1968 = vadd.f32 %v1179, %v1967
  %1969 = vdwg.mxu0
  %1970 = vmatprep.subr.bf16.mxu0 %v1633
  %1971 = vmatpush1.bf16.msra.mxu0 %v1632
  %1972 = vmatprep.subr.bf16.mxu0 %v1649
  %1973 = vmatpush1.bf16.msra.mxu0 %v1648
  %1974 = vmatprep.subr.bf16.mxu0 %v1665
  %1975 = vmatpush1.bf16.msra.mxu0 %v1664
  %1976 = vmatprep.subr.bf16.mxu0 %v1681
  %1977 = vmatpush1.bf16.msra.mxu0 %v1680
  %1978 = vmatprep.subr.bf16.mxu0 %v1697
  %1979 = vmatpush1.bf16.msra.mxu0 %v1696
  %1980 = vmatprep.subr.bf16.mxu0 %v1713
  %1981 = vmatpush1.bf16.msra.mxu0 %v1712
  %1982 = vmatprep.subr.bf16.mxu0 %v1729
  %1983 = vmatpush1.bf16.msra.mxu0 %v1728
  %1984 = vmatprep.subr.bf16.mxu0 %v1745
  %1985 = vmatpush1.bf16.msra.mxu0 %v1744
  %1986 = vmatprep.subr.bf16.mxu0 0
  %1987 = vmatpush1.bf16.msra.mxu0 0
  %1988 = vmatprep.subr.bf16.mxu0 0
  %1989 = vmatpush1.bf16.msra.mxu0 0
  %1990 = vmatprep.subr.bf16.mxu0 0
  %1991 = vmatpush1.bf16.msra.mxu0 0
  %1992 = vmatprep.subr.bf16.mxu0 0
  %1993 = vmatpush1.bf16.msra.mxu0 0
  %1994 = vmatprep.subr.bf16.mxu0 0
  %1995 = vmatpush1.bf16.msra.mxu0 0
  %1996 = vmatprep.subr.bf16.mxu0 0
  %1997 = vmatpush1.bf16.msra.mxu0 0
  %1998 = vmatprep.subr.bf16.mxu0 0
  %1999 = vmatpush1.bf16.msra.mxu0 0
  %2000 = vmatprep.subr.bf16.mxu0 0
  %2001 = vmatpush1.bf16.msra.mxu0 0
  %2002 = vmatprep.mubr.bf16.mxu0 0
  %2003 = vmatmul.mubr.bf16.gmra.mrb[0].mxu0 %v1031
  %v2004 = vpop.f32.mrb[0].mxu0
  %v2005 = vadd.f32 %v1183, %v2004
  %v2006 = vpop.f32.mrb[0].mxu0
  %v2007 = vadd.f32 %v1187, %v2006
  %v2008 = vpop.f32.mrb[0].mxu0
  %v2009 = vadd.f32 %v1183, %v2008
  %v2010 = vpop.f32.mrb[0].mxu0
  %v2011 = vadd.f32 %v1187, %v2010
  %2012 = vdwg.mxu0
  %2013 = vmatprep.subr.bf16.mxu0 %v1635
  %2014 = vmatpush1.bf16.msra.mxu0 %v1634
  %2015 = vmatprep.subr.bf16.mxu0 %v1651
  %2016 = vmatpush1.bf16.msra.mxu0 %v1650
  %2017 = vmatprep.subr.bf16.mxu0 %v1667
  %2018 = vmatpush1.bf16.msra.mxu0 %v1666
  %2019 = vmatprep.subr.bf16.mxu0 %v1683
  %2020 = vmatpush1.bf16.msra.mxu0 %v1682
  %2021 = vmatprep.subr.bf16.mxu0 %v1699
  %2022 = vmatpush1.bf16.msra.mxu0 %v1698
  %2023 = vmatprep.subr.bf16.mxu0 %v1715
  %2024 = vmatpush1.bf16.msra.mxu0 %v1714
  %2025 = vmatprep.subr.bf16.mxu0 %v1731
  %2026 = vmatpush1.bf16.msra.mxu0 %v1730
  %2027 = vmatprep.subr.bf16.mxu0 %v1747
  %2028 = vmatpush1.bf16.msra.mxu0 %v1746
  %2029 = vmatprep.subr.bf16.mxu0 0
  %2030 = vmatpush1.bf16.msra.mxu0 0
  %2031 = vmatprep.subr.bf16.mxu0 0
  %2032 = vmatpush1.bf16.msra.mxu0 0
  %2033 = vmatprep.subr.bf16.mxu0 0
  %2034 = vmatpush1.bf16.msra.mxu0 0
  %2035 = vmatprep.subr.bf16.mxu0 0
  %2036 = vmatpush1.bf16.msra.mxu0 0
  %2037 = vmatprep.subr.bf16.mxu0 0
  %2038 = vmatpush1.bf16.msra.mxu0 0
  %2039 = vmatprep.subr.bf16.mxu0 0
  %2040 = vmatpush1.bf16.msra.mxu0 0
  %2041 = vmatprep.subr.bf16.mxu0 0
  %2042 = vmatpush1.bf16.msra.mxu0 0
  %2043 = vmatprep.subr.bf16.mxu0 0
  %2044 = vmatpush1.bf16.msra.mxu0 0
  %2045 = vmatprep.mubr.bf16.mxu0 0
  %2046 = vmatmul.mubr.bf16.gmra.mrb[0].mxu0 %v1031
  %v2047 = vpop.f32.mrb[0].mxu0
  %v2048 = vadd.f32 %v1191, %v2047
  %v2049 = vpop.f32.mrb[0].mxu0
  %v2050 = vadd.f32 %v1195, %v2049
  %v2051 = vpop.f32.mrb[0].mxu0
  %v2052 = vadd.f32 %v1191, %v2051
  %v2053 = vpop.f32.mrb[0].mxu0
  %v2054 = vadd.f32 %v1195, %v2053
  %2055 = vdwg.mxu0
  %2056 = vmatprep.subr.bf16.mxu0 %v1637
  %2057 = vmatpush1.bf16.msra.mxu0 %v1636
  %2058 = vmatprep.subr.bf16.mxu0 %v1653
  %2059 = vmatpush1.bf16.msra.mxu0 %v1652
  %2060 = vmatprep.subr.bf16.mxu0 %v1669
  %2061 = vmatpush1.bf16.msra.mxu0 %v1668
  %2062 = vmatprep.subr.bf16.mxu0 %v1685
  %2063 = vmatpush1.bf16.msra.mxu0 %v1684
  %2064 = vmatprep.subr.bf16.mxu0 %v1701
  %2065 = vmatpush1.bf16.msra.mxu0 %v1700
  %2066 = vmatprep.subr.bf16.mxu0 %v1717
  %2067 = vmatpush1.bf16.msra.mxu0 %v1716
  %2068 = vmatprep.subr.bf16.mxu0 %v1733
  %2069 = vmatpush1.bf16.msra.mxu0 %v1732
  %2070 = vmatprep.subr.bf16.mxu0 %v1749
  %2071 = vmatpush1.bf16.msra.mxu0 %v1748
  %2072 = vmatprep.subr.bf16.mxu0 0
  %2073 = vmatpush1.bf16.msra.mxu0 0
  %2074 = vmatprep.subr.bf16.mxu0 0
  %2075 = vmatpush1.bf16.msra.mxu0 0
  %2076 = vmatprep.subr.bf16.mxu0 0
  %2077 = vmatpush1.bf16.msra.mxu0 0
  %2078 = vmatprep.subr.bf16.mxu0 0
  %2079 = vmatpush1.bf16.msra.mxu0 0
  %2080 = vmatprep.subr.bf16.mxu0 0
  %2081 = vmatpush1.bf16.msra.mxu0 0
  %2082 = vmatprep.subr.bf16.mxu0 0
  %2083 = vmatpush1.bf16.msra.mxu0 0
  %2084 = vmatprep.subr.bf16.mxu0 0
  %2085 = vmatpush1.bf16.msra.mxu0 0
  %2086 = vmatprep.subr.bf16.mxu0 0
  %2087 = vmatpush1.bf16.msra.mxu0 0
  %2088 = vmatprep.mubr.bf16.mxu0 0
  %2089 = vmatmul.mubr.bf16.gmra.mrb[0].mxu0 %v1031
  %v2090 = vpop.f32.mrb[0].mxu0
  %v2091 = vadd.f32 %v1199, %v2090
  %v2092 = vpop.f32.mrb[0].mxu0
  %v2093 = vadd.f32 %v1203, %v2092
  %v2094 = vpop.f32.mrb[0].mxu0
  %v2095 = vadd.f32 %v1199, %v2094
  %v2096 = vpop.f32.mrb[0].mxu0
  %v2097 = vadd.f32 %v1203, %v2096
  %2098 = vdwg.mxu0
  %2099 = vmatprep.subr.bf16.mxu0 %v1639
  %2100 = vmatpush1.bf16.msra.mxu0 %v1638
  %2101 = vmatprep.subr.bf16.mxu0 %v1655
  %2102 = vmatpush1.bf16.msra.mxu0 %v1654
  %2103 = vmatprep.subr.bf16.mxu0 %v1671
  %2104 = vmatpush1.bf16.msra.mxu0 %v1670
  %2105 = vmatprep.subr.bf16.mxu0 %v1687
  %2106 = vmatpush1.bf16.msra.mxu0 %v1686
  %2107 = vmatprep.subr.bf16.mxu0 %v1703
  %2108 = vmatpush1.bf16.msra.mxu0 %v1702
  %2109 = vmatprep.subr.bf16.mxu0 %v1719
  %2110 = vmatpush1.bf16.msra.mxu0 %v1718
  %2111 = vmatprep.subr.bf16.mxu0 %v1735
  %2112 = vmatpush1.bf16.msra.mxu0 %v1734
  %2113 = vmatprep.subr.bf16.mxu0 %v1751
  %2114 = vmatpush1.bf16.msra.mxu0 %v1750
  %2115 = vmatprep.subr.bf16.mxu0 0
  %2116 = vmatpush1.bf16.msra.mxu0 0
  %2117 = vmatprep.subr.bf16.mxu0 0
  %2118 = vmatpush1.bf16.msra.mxu0 0
  %2119 = vmatprep.subr.bf16.mxu0 0
  %2120 = vmatpush1.bf16.msra.mxu0 0
  %2121 = vmatprep.subr.bf16.mxu0 0
  %2122 = vmatpush1.bf16.msra.mxu0 0
  %2123 = vmatprep.subr.bf16.mxu0 0
  %2124 = vmatpush1.bf16.msra.mxu0 0
  %2125 = vmatprep.subr.bf16.mxu0 0
  %2126 = vmatpush1.bf16.msra.mxu0 0
  %2127 = vmatprep.subr.bf16.mxu0 0
  %2128 = vmatpush1.bf16.msra.mxu0 0
  %2129 = vmatprep.subr.bf16.mxu0 0
  %2130 = vmatpush1.bf16.msra.mxu0 0
  %2131 = vmatprep.mubr.bf16.mxu0 0
  %2132 = vmatmul.mubr.bf16.gmra.mrb[0].mxu0 %v1031
  %v2133 = vpop.f32.mrb[0].mxu0
  %v2134 = vadd.f32 %v1207, %v2133
  %v2135 = vpop.f32.mrb[0].mxu0
  %v2136 = vadd.f32 %v1211, %v2135
  %v2137 = vpop.f32.mrb[0].mxu0
  %v2138 = vadd.f32 %v1207, %v2137
  %v2139 = vpop.f32.mrb[0].mxu0
  %v2140 = vadd.f32 %v1211, %v2139
  %2141 = vdwg.mxu0
  %2142 = vmatprep.subr.bf16.mxu0 %v1641
  %2143 = vmatpush1.bf16.msra.mxu0 %v1640
  %2144 = vmatprep.subr.bf16.mxu0 %v1657
  %2145 = vmatpush1.bf16.msra.mxu0 %v1656
  %2146 = vmatprep.subr.bf16.mxu0 %v1673
  %2147 = vmatpush1.bf16.msra.mxu0 %v1672
  %2148 = vmatprep.subr.bf16.mxu0 %v1689
  %2149 = vmatpush1.bf16.msra.mxu0 %v1688
  %2150 = vmatprep.subr.bf16.mxu0 %v1705
  %2151 = vmatpush1.bf16.msra.mxu0 %v1704
  %2152 = vmatprep.subr.bf16.mxu0 %v1721
  %2153 = vmatpush1.bf16.msra.mxu0 %v1720
  %2154 = vmatprep.subr.bf16.mxu0 %v1737
  %2155 = vmatpush1.bf16.msra.mxu0 %v1736
  %2156 = vmatprep.subr.bf16.mxu0 %v1753
  %2157 = vmatpush1.bf16.msra.mxu0 %v1752
  %2158 = vmatprep.subr.bf16.mxu0 0
  %2159 = vmatpush1.bf16.msra.mxu0 0
  %2160 = vmatprep.subr.bf16.mxu0 0
  %2161 = vmatpush1.bf16.msra.mxu0 0
  %2162 = vmatprep.subr.bf16.mxu0 0
  %2163 = vmatpush1.bf16.msra.mxu0 0
  %2164 = vmatprep.subr.bf16.mxu0 0
  %2165 = vmatpush1.bf16.msra.mxu0 0
  %2166 = vmatprep.subr.bf16.mxu0 0
  %2167 = vmatpush1.bf16.msra.mxu0 0
  %2168 = vmatprep.subr.bf16.mxu0 0
  %2169 = vmatpush1.bf16.msra.mxu0 0
  %2170 = vmatprep.subr.bf16.mxu0 0
  %2171 = vmatpush1.bf16.msra.mxu0 0
  %2172 = vmatprep.subr.bf16.mxu0 0
  %2173 = vmatpush1.bf16.msra.mxu0 0
  %2174 = vmatprep.mubr.bf16.mxu0 0
  %2175 = vmatmul.mubr.bf16.gmra.mrb[0].mxu0 %v1031
  %v2176 = vpop.f32.mrb[0].mxu0
  %v2177 = vadd.f32 %v1215, %v2176
  %v2178 = vpop.f32.mrb[0].mxu0
  %v2179 = vadd.f32 %v1219, %v2178
  %v2180 = vpop.f32.mrb[0].mxu0
  %v2181 = vadd.f32 %v1215, %v2180
  %v2182 = vpop.f32.mrb[0].mxu0
  %v2183 = vadd.f32 %v1219, %v2182
  %2184 = vdwg.mxu0
  %2185 = vmatprep.subr.bf16.mxu0 %v1643
  %2186 = vmatpush1.bf16.msra.mxu0 %v1642
  %2187 = vmatprep.subr.bf16.mxu0 %v1659
  %2188 = vmatpush1.bf16.msra.mxu0 %v1658
  %2189 = vmatprep.subr.bf16.mxu0 %v1675
  %2190 = vmatpush1.bf16.msra.mxu0 %v1674
  %2191 = vmatprep.subr.bf16.mxu0 %v1691
  %2192 = vmatpush1.bf16.msra.mxu0 %v1690
  %2193 = vmatprep.subr.bf16.mxu0 %v1707
  %2194 = vmatpush1.bf16.msra.mxu0 %v1706
  %2195 = vmatprep.subr.bf16.mxu0 %v1723
  %2196 = vmatpush1.bf16.msra.mxu0 %v1722
  %2197 = vmatprep.subr.bf16.mxu0 %v1739
  %2198 = vmatpush1.bf16.msra.mxu0 %v1738
  %2199 = vmatprep.subr.bf16.mxu0 %v1755
  %2200 = vmatpush1.bf16.msra.mxu0 %v1754
  %2201 = vmatprep.subr.bf16.mxu0 0
  %2202 = vmatpush1.bf16.msra.mxu0 0
  %2203 = vmatprep.subr.bf16.mxu0 0
  %2204 = vmatpush1.bf16.msra.mxu0 0
  %2205 = vmatprep.subr.bf16.mxu0 0
  %2206 = vmatpush1.bf16.msra.mxu0 0
  %2207 = vmatprep.subr.bf16.mxu0 0
  %2208 = vmatpush1.bf16.msra.mxu0 0
  %2209 = vmatprep.subr.bf16.mxu0 0
  %2210 = vmatpush1.bf16.msra.mxu0 0
  %2211 = vmatprep.subr.bf16.mxu0 0
  %2212 = vmatpush1.bf16.msra.mxu0 0
  %2213 = vmatprep.subr.bf16.mxu0 0
  %2214 = vmatpush1.bf16.msra.mxu0 0
  %2215 = vmatprep.subr.bf16.mxu0 0
  %2216 = vmatpush1.bf16.msra.mxu0 0
  %2217 = vmatprep.mubr.bf16.mxu0 0
  %2218 = vmatmul.mubr.bf16.gmra.mrb[0].mxu0 %v1031
  %v2219 = vpop.f32.mrb[0].mxu0
  %v2220 = vadd.f32 %v1223, %v2219
  %v2221 = vpop.f32.mrb[0].mxu0
  %v2222 = vadd.f32 %v1227, %v2221
  %v2223 = vpop.f32.mrb[0].mxu0
  %v2224 = vadd.f32 %v1223, %v2223
  %v2225 = vpop.f32.mrb[0].mxu0
  %v2226 = vadd.f32 %v1227, %v2225
  %2227 = vdwg.mxu0
  %v2228 = vmax.f32 %v1919, 0.0
  %v2229 = vmax.f32 %v1921, 0.0
  %v2230 = vmax.f32 %v1962, 0.0
  %v2231 = vmax.f32 %v1964, 0.0
  %v2232 = vmax.f32 %v2005, 0.0
  %v2233 = vmax.f32 %v2007, 0.0
  %v2234 = vmax.f32 %v2048, 0.0
  %v2235 = vmax.f32 %v2050, 0.0
  %v2236 = vmax.f32 %v2091, 0.0
  %v2237 = vmax.f32 %v2093, 0.0
  %v2238 = vmax.f32 %v2134, 0.0
  %v2239 = vmax.f32 %v2136, 0.0
  %v2240 = vmax.f32 %v2177, 0.0
  %v2241 = vmax.f32 %v2179, 0.0
  %v2242 = vmax.f32 %v2220, 0.0
  %v2243 = vmax.f32 %v2222, 0.0
  %v2244 = vmax.f32 %v1923, 0.0
  %v2245 = vmax.f32 %v1925, 0.0
  %v2246 = vmax.f32 %v1966, 0.0
  %v2247 = vmax.f32 %v1968, 0.0
  %v2248 = vmax.f32 %v2009, 0.0
  %v2249 = vmax.f32 %v2011, 0.0
  %v2250 = vmax.f32 %v2052, 0.0
  %v2251 = vmax.f32 %v2054, 0.0
  %v2252 = vmax.f32 %v2095, 0.0
  %v2253 = vmax.f32 %v2097, 0.0
  %v2254 = vmax.f32 %v2138, 0.0
  %v2255 = vmax.f32 %v2140, 0.0
  %v2256 = vmax.f32 %v2181, 0.0
  %v2257 = vmax.f32 %v2183, 0.0
  %v2258 = vmax.f32 %v2224, 0.0
  %v2259 = vmax.f32 %v2226, 0.0
  %v2260 = vpack.c.bf16 %v2244, %v2228
  %v2261 = vpack.c.bf16 %v2245, %v2229
  %v2262 = vpack.c.bf16 %v2246, %v2230
  %v2263 = vpack.c.bf16 %v2247, %v2231
  %v2264 = vpack.c.bf16 %v2248, %v2232
  %v2265 = vpack.c.bf16 %v2249, %v2233
  %v2266 = vpack.c.bf16 %v2250, %v2234
  %v2267 = vpack.c.bf16 %v2251, %v2235
  %v2268 = vpack.c.bf16 %v2252, %v2236
  %v2269 = vpack.c.bf16 %v2253, %v2237
  %v2270 = vpack.c.bf16 %v2254, %v2238
  %v2271 = vpack.c.bf16 %v2255, %v2239
  %v2272 = vpack.c.bf16 %v2256, %v2240
  %v2273 = vpack.c.bf16 %v2257, %v2241
  %v2274 = vpack.c.bf16 %v2258, %v2242
  %v2275 = vpack.c.bf16 %v2259, %v2243
  %v2276 = vld [vmem:[%s6] sm:$0xf]
  %v2277 = vld [vmem:[%s6 + $0x4] sm:$0xf]
  %v2278 = vld [vmem:[%s6 + $0x8] sm:$0xf]
  %v2279 = vld [vmem:[%s6 + $0xc] sm:$0xf]
  %v2280 = vld [vmem:[%s6 + $0x10] sm:$0xf]
  %v2281 = vld [vmem:[%s6 + $0x14] sm:$0xf]
  %v2282 = vld [vmem:[%s6 + $0x18] sm:$0xf]
  %v2283 = vld [vmem:[%s6 + $0x1c] sm:$0xf]
  %v2284 = vld [vmem:[%s6 + $0x20] sm:$0xf]
  %v2285 = vld [vmem:[%s6 + $0x24] sm:$0xf]
  %v2286 = vld [vmem:[%s6 + $0x28] sm:$0xf]
  %v2287 = vld [vmem:[%s6 + $0x2c] sm:$0xf]
  %v2288 = vld [vmem:[%s6 + $0x30] sm:$0xf]
  %v2289 = vld [vmem:[%s6 + $0x34] sm:$0xf]
  %v2290 = vld [vmem:[%s6 + $0x38] sm:$0xf]
  %v2291 = vld [vmem:[%s6 + $0x3c] sm:$0xf]
  %v2292 = vld [vmem:[%s6 + $0x40] sm:$0xf]
  %v2293 = vld [vmem:[%s6 + $0x44] sm:$0xf]
  %v2294 = vld [vmem:[%s6 + $0x48] sm:$0xf]
  %v2295 = vld [vmem:[%s6 + $0x4c] sm:$0xf]
  %v2296 = vld [vmem:[%s6 + $0x50] sm:$0xf]
  %v2297 = vld [vmem:[%s6 + $0x54] sm:$0xf]
  %v2298 = vld [vmem:[%s6 + $0x58] sm:$0xf]
  %v2299 = vld [vmem:[%s6 + $0x5c] sm:$0xf]
  %v2300 = vld [vmem:[%s6 + $0x60] sm:$0xf]
  %v2301 = vld [vmem:[%s6 + $0x64] sm:$0xf]
  %v2302 = vld [vmem:[%s6 + $0x68] sm:$0xf]
  %v2303 = vld [vmem:[%s6 + $0x6c] sm:$0xf]
  %v2304 = vld [vmem:[%s6 + $0x70] sm:$0xf]
  %v2305 = vld [vmem:[%s6 + $0x74] sm:$0xf]
  %v2306 = vld [vmem:[%s6 + $0x78] sm:$0xf]
  %v2307 = vld [vmem:[%s6 + $0x7c] sm:$0xf]
  %v2308 = vld [vmem:[%s6 + $0x80] sm:$0xf]
  %v2309 = vld [vmem:[%s6 + $0x84] sm:$0xf]
  %v2310 = vld [vmem:[%s6 + $0x88] sm:$0xf]
  %v2311 = vld [vmem:[%s6 + $0x8c] sm:$0xf]
  %v2312 = vld [vmem:[%s6 + $0x90] sm:$0xf]
  %v2313 = vld [vmem:[%s6 + $0x94] sm:$0xf]
  %v2314 = vld [vmem:[%s6 + $0x98] sm:$0xf]
  %v2315 = vld [vmem:[%s6 + $0x9c] sm:$0xf]
  %v2316 = vld [vmem:[%s6 + $0xa0] sm:$0xf]
  %v2317 = vld [vmem:[%s6 + $0xa4] sm:$0xf]
  %v2318 = vld [vmem:[%s6 + $0xa8] sm:$0xf]
  %v2319 = vld [vmem:[%s6 + $0xac] sm:$0xf]
  %v2320 = vld [vmem:[%s6 + $0xb0] sm:$0xf]
  %v2321 = vld [vmem:[%s6 + $0xb4] sm:$0xf]
  %v2322 = vld [vmem:[%s6 + $0xb8] sm:$0xf]
  %v2323 = vld [vmem:[%s6 + $0xbc] sm:$0xf]
  %v2324 = vld [vmem:[%s6 + $0xc0] sm:$0xf]
  %v2325 = vld [vmem:[%s6 + $0xc4] sm:$0xf]
  %v2326 = vld [vmem:[%s6 + $0xc8] sm:$0xf]
  %v2327 = vld [vmem:[%s6 + $0xcc] sm:$0xf]
  %v2328 = vld [vmem:[%s6 + $0xd0] sm:$0xf]
  %v2329 = vld [vmem:[%s6 + $0xd4] sm:$0xf]
  %v2330 = vld [vmem:[%s6 + $0xd8] sm:$0xf]
  %v2331 = vld [vmem:[%s6 + $0xdc] sm:$0xf]
  %v2332 = vld [vmem:[%s6 + $0xe0] sm:$0xf]
  %v2333 = vld [vmem:[%s6 + $0xe4] sm:$0xf]
  %v2334 = vld [vmem:[%s6 + $0xe8] sm:$0xf]
  %v2335 = vld [vmem:[%s6 + $0xec] sm:$0xf]
  %v2336 = vld [vmem:[%s6 + $0xf0] sm:$0xf]
  %v2337 = vld [vmem:[%s6 + $0xf4] sm:$0xf]
  %v2338 = vld [vmem:[%s6 + $0xf8] sm:$0xf]
  %v2339 = vld [vmem:[%s6 + $0xfc] sm:$0xf]
  %v2340 = vld [vmem:[%s6 + $0x100] sm:$0xf]
  %v2341 = vld [vmem:[%s6 + $0x104] sm:$0xf]
  %v2342 = vld [vmem:[%s6 + $0x108] sm:$0xf]
  %v2343 = vld [vmem:[%s6 + $0x10c] sm:$0xf]
  %v2344 = vld [vmem:[%s6 + $0x110] sm:$0xf]
  %v2345 = vld [vmem:[%s6 + $0x114] sm:$0xf]
  %v2346 = vld [vmem:[%s6 + $0x118] sm:$0xf]
  %v2347 = vld [vmem:[%s6 + $0x11c] sm:$0xf]
  %v2348 = vld [vmem:[%s6 + $0x120] sm:$0xf]
  %v2349 = vld [vmem:[%s6 + $0x124] sm:$0xf]
  %v2350 = vld [vmem:[%s6 + $0x128] sm:$0xf]
  %v2351 = vld [vmem:[%s6 + $0x12c] sm:$0xf]
  %v2352 = vld [vmem:[%s6 + $0x130] sm:$0xf]
  %v2353 = vld [vmem:[%s6 + $0x134] sm:$0xf]
  %v2354 = vld [vmem:[%s6 + $0x138] sm:$0xf]
  %v2355 = vld [vmem:[%s6 + $0x13c] sm:$0xf]
  %v2356 = vld [vmem:[%s6 + $0x140] sm:$0xf]
  %v2357 = vld [vmem:[%s6 + $0x144] sm:$0xf]
  %v2358 = vld [vmem:[%s6 + $0x148] sm:$0xf]
  %v2359 = vld [vmem:[%s6 + $0x14c] sm:$0xf]
  %v2360 = vld [vmem:[%s6 + $0x150] sm:$0xf]
  %v2361 = vld [vmem:[%s6 + $0x154] sm:$0xf]
  %v2362 = vld [vmem:[%s6 + $0x158] sm:$0xf]
  %v2363 = vld [vmem:[%s6 + $0x15c] sm:$0xf]
  %v2364 = vld [vmem:[%s6 + $0x160] sm:$0xf]
  %v2365 = vld [vmem:[%s6 + $0x164] sm:$0xf]
  %v2366 = vld [vmem:[%s6 + $0x168] sm:$0xf]
  %v2367 = vld [vmem:[%s6 + $0x16c] sm:$0xf]
  %v2368 = vld [vmem:[%s6 + $0x170] sm:$0xf]
  %v2369 = vld [vmem:[%s6 + $0x174] sm:$0xf]
  %v2370 = vld [vmem:[%s6 + $0x178] sm:$0xf]
  %v2371 = vld [vmem:[%s6 + $0x17c] sm:$0xf]
  %v2372 = vld [vmem:[%s6 + $0x180] sm:$0xf]
  %v2373 = vld [vmem:[%s6 + $0x184] sm:$0xf]
  %v2374 = vld [vmem:[%s6 + $0x188] sm:$0xf]
  %v2375 = vld [vmem:[%s6 + $0x18c] sm:$0xf]
  %v2376 = vld [vmem:[%s6 + $0x190] sm:$0xf]
  %v2377 = vld [vmem:[%s6 + $0x194] sm:$0xf]
  %v2378 = vld [vmem:[%s6 + $0x198] sm:$0xf]
  %v2379 = vld [vmem:[%s6 + $0x19c] sm:$0xf]
  %v2380 = vld [vmem:[%s6 + $0x1a0] sm:$0xf]
  %v2381 = vld [vmem:[%s6 + $0x1a4] sm:$0xf]
  %v2382 = vld [vmem:[%s6 + $0x1a8] sm:$0xf]
  %v2383 = vld [vmem:[%s6 + $0x1ac] sm:$0xf]
  %v2384 = vld [vmem:[%s6 + $0x1b0] sm:$0xf]
  %v2385 = vld [vmem:[%s6 + $0x1b4] sm:$0xf]
  %v2386 = vld [vmem:[%s6 + $0x1b8] sm:$0xf]
  %v2387 = vld [vmem:[%s6 + $0x1bc] sm:$0xf]
  %v2388 = vld [vmem:[%s6 + $0x1c0] sm:$0xf]
  %v2389 = vld [vmem:[%s6 + $0x1c4] sm:$0xf]
  %v2390 = vld [vmem:[%s6 + $0x1c8] sm:$0xf]
  %v2391 = vld [vmem:[%s6 + $0x1cc] sm:$0xf]
  %v2392 = vld [vmem:[%s6 + $0x1d0] sm:$0xf]
  %v2393 = vld [vmem:[%s6 + $0x1d4] sm:$0xf]
  %v2394 = vld [vmem:[%s6 + $0x1d8] sm:$0xf]
  %v2395 = vld [vmem:[%s6 + $0x1dc] sm:$0xf]
  %v2396 = vld [vmem:[%s6 + $0x1e0] sm:$0xf]
  %v2397 = vld [vmem:[%s6 + $0x1e4] sm:$0xf]
  %v2398 = vld [vmem:[%s6 + $0x1e8] sm:$0xf]
  %v2399 = vld [vmem:[%s6 + $0x1ec] sm:$0xf]
  %v2400 = vld [vmem:[%s6 + $0x1f0] sm:$0xf]
  %v2401 = vld [vmem:[%s6 + $0x1f4] sm:$0xf]
  %v2402 = vld [vmem:[%s6 + $0x1f8] sm:$0xf]
  %v2403 = vld [vmem:[%s6 + $0x1fc] sm:$0xf]
  %v2404 = vld [vmem:[%s6 + $0x200] sm:$0xf]
  %v2405 = vld [vmem:[%s6 + $0x204] sm:$0xf]
  %v2406 = vld [vmem:[%s6 + $0x208] sm:$0xf]
  %v2407 = vld [vmem:[%s6 + $0x20c] sm:$0xf]
  %v2408 = vld [vmem:[%s6 + $0x210] sm:$0xf]
  %v2409 = vld [vmem:[%s6 + $0x214] sm:$0xf]
  %v2410 = vld [vmem:[%s6 + $0x218] sm:$0xf]
  %v2411 = vld [vmem:[%s6 + $0x21c] sm:$0xf]
  %v2412 = vld [vmem:[%s6 + $0x220] sm:$0xf]
  %v2413 = vld [vmem:[%s6 + $0x224] sm:$0xf]
  %v2414 = vld [vmem:[%s6 + $0x228] sm:$0xf]
  %v2415 = vld [vmem:[%s6 + $0x22c] sm:$0xf]
  %v2416 = vld [vmem:[%s6 + $0x230] sm:$0xf]
  %v2417 = vld [vmem:[%s6 + $0x234] sm:$0xf]
  %v2418 = vld [vmem:[%s6 + $0x238] sm:$0xf]
  %v2419 = vld [vmem:[%s6 + $0x23c] sm:$0xf]
  %v2420 = vld [vmem:[%s6 + $0x240] sm:$0xf]
  %v2421 = vld [vmem:[%s6 + $0x244] sm:$0xf]
  %v2422 = vld [vmem:[%s6 + $0x248] sm:$0xf]
  %v2423 = vld [vmem:[%s6 + $0x24c] sm:$0xf]
  %v2424 = vld [vmem:[%s6 + $0x250] sm:$0xf]
  %v2425 = vld [vmem:[%s6 + $0x254] sm:$0xf]
  %v2426 = vld [vmem:[%s6 + $0x258] sm:$0xf]
  %v2427 = vld [vmem:[%s6 + $0x25c] sm:$0xf]
  %v2428 = vld [vmem:[%s6 + $0x260] sm:$0xf]
  %v2429 = vld [vmem:[%s6 + $0x264] sm:$0xf]
  %v2430 = vld [vmem:[%s6 + $0x268] sm:$0xf]
  %v2431 = vld [vmem:[%s6 + $0x26c] sm:$0xf]
  %v2432 = vld [vmem:[%s6 + $0x270] sm:$0xf]
  %v2433 = vld [vmem:[%s6 + $0x274] sm:$0xf]
  %v2434 = vld [vmem:[%s6 + $0x278] sm:$0xf]
  %v2435 = vld [vmem:[%s6 + $0x27c] sm:$0xf]
  %v2436 = vld [vmem:[%s6 + $0x280] sm:$0xf]
  %v2437 = vld [vmem:[%s6 + $0x284] sm:$0xf]
  %v2438 = vld [vmem:[%s6 + $0x288] sm:$0xf]
  %v2439 = vld [vmem:[%s6 + $0x28c] sm:$0xf]
  %v2440 = vld [vmem:[%s6 + $0x290] sm:$0xf]
  %v2441 = vld [vmem:[%s6 + $0x294] sm:$0xf]
  %v2442 = vld [vmem:[%s6 + $0x298] sm:$0xf]
  %v2443 = vld [vmem:[%s6 + $0x29c] sm:$0xf]
  %v2444 = vld [vmem:[%s6 + $0x2a0] sm:$0xf]
  %v2445 = vld [vmem:[%s6 + $0x2a4] sm:$0xf]
  %v2446 = vld [vmem:[%s6 + $0x2a8] sm:$0xf]
  %v2447 = vld [vmem:[%s6 + $0x2ac] sm:$0xf]
  %v2448 = vld [vmem:[%s6 + $0x2b0] sm:$0xf]
  %v2449 = vld [vmem:[%s6 + $0x2b4] sm:$0xf]
  %v2450 = vld [vmem:[%s6 + $0x2b8] sm:$0xf]
  %v2451 = vld [vmem:[%s6 + $0x2bc] sm:$0xf]
  %v2452 = vld [vmem:[%s6 + $0x2c0] sm:$0xf]
  %v2453 = vld [vmem:[%s6 + $0x2c4] sm:$0xf]
  %v2454 = vld [vmem:[%s6 + $0x2c8] sm:$0xf]
  %v2455 = vld [vmem:[%s6 + $0x2cc] sm:$0xf]
  %v2456 = vld [vmem:[%s6 + $0x2d0] sm:$0xf]
  %v2457 = vld [vmem:[%s6 + $0x2d4] sm:$0xf]
  %v2458 = vld [vmem:[%s6 + $0x2d8] sm:$0xf]
  %v2459 = vld [vmem:[%s6 + $0x2dc] sm:$0xf]
  %v2460 = vld [vmem:[%s6 + $0x2e0] sm:$0xf]
  %v2461 = vld [vmem:[%s6 + $0x2e4] sm:$0xf]
  %v2462 = vld [vmem:[%s6 + $0x2e8] sm:$0xf]
  %v2463 = vld [vmem:[%s6 + $0x2ec] sm:$0xf]
  %v2464 = vld [vmem:[%s6 + $0x2f0] sm:$0xf]
  %v2465 = vld [vmem:[%s6 + $0x2f4] sm:$0xf]
  %v2466 = vld [vmem:[%s6 + $0x2f8] sm:$0xf]
  %v2467 = vld [vmem:[%s6 + $0x2fc] sm:$0xf]
  %v2468 = vld [vmem:[%s6 + $0x300] sm:$0xf]
  %v2469 = vld [vmem:[%s6 + $0x304] sm:$0xf]
  %v2470 = vld [vmem:[%s6 + $0x308] sm:$0xf]
  %v2471 = vld [vmem:[%s6 + $0x30c] sm:$0xf]
  %v2472 = vld [vmem:[%s6 + $0x310] sm:$0xf]
  %v2473 = vld [vmem:[%s6 + $0x314] sm:$0xf]
  %v2474 = vld [vmem:[%s6 + $0x318] sm:$0xf]
  %v2475 = vld [vmem:[%s6 + $0x31c] sm:$0xf]
  %v2476 = vld [vmem:[%s6 + $0x320] sm:$0xf]
  %v2477 = vld [vmem:[%s6 + $0x324] sm:$0xf]
  %v2478 = vld [vmem:[%s6 + $0x328] sm:$0xf]
  %v2479 = vld [vmem:[%s6 + $0x32c] sm:$0xf]
  %v2480 = vld [vmem:[%s6 + $0x330] sm:$0xf]
  %v2481 = vld [vmem:[%s6 + $0x334] sm:$0xf]
  %v2482 = vld [vmem:[%s6 + $0x338] sm:$0xf]
  %v2483 = vld [vmem:[%s6 + $0x33c] sm:$0xf]
  %v2484 = vld [vmem:[%s6 + $0x340] sm:$0xf]
  %v2485 = vld [vmem:[%s6 + $0x344] sm:$0xf]
  %v2486 = vld [vmem:[%s6 + $0x348] sm:$0xf]
  %v2487 = vld [vmem:[%s6 + $0x34c] sm:$0xf]
  %v2488 = vld [vmem:[%s6 + $0x350] sm:$0xf]
  %v2489 = vld [vmem:[%s6 + $0x354] sm:$0xf]
  %v2490 = vld [vmem:[%s6 + $0x358] sm:$0xf]
  %v2491 = vld [vmem:[%s6 + $0x35c] sm:$0xf]
  %v2492 = vld [vmem:[%s6 + $0x360] sm:$0xf]
  %v2493 = vld [vmem:[%s6 + $0x364] sm:$0xf]
  %v2494 = vld [vmem:[%s6 + $0x368] sm:$0xf]
  %v2495 = vld [vmem:[%s6 + $0x36c] sm:$0xf]
  %v2496 = vld [vmem:[%s6 + $0x370] sm:$0xf]
  %v2497 = vld [vmem:[%s6 + $0x374] sm:$0xf]
  %v2498 = vld [vmem:[%s6 + $0x378] sm:$0xf]
  %v2499 = vld [vmem:[%s6 + $0x37c] sm:$0xf]
  %v2500 = vld [vmem:[%s6 + $0x380] sm:$0xf]
  %v2501 = vld [vmem:[%s6 + $0x384] sm:$0xf]
  %v2502 = vld [vmem:[%s6 + $0x388] sm:$0xf]
  %v2503 = vld [vmem:[%s6 + $0x38c] sm:$0xf]
  %v2504 = vld [vmem:[%s6 + $0x390] sm:$0xf]
  %v2505 = vld [vmem:[%s6 + $0x394] sm:$0xf]
  %v2506 = vld [vmem:[%s6 + $0x398] sm:$0xf]
  %v2507 = vld [vmem:[%s6 + $0x39c] sm:$0xf]
  %v2508 = vld [vmem:[%s6 + $0x3a0] sm:$0xf]
  %v2509 = vld [vmem:[%s6 + $0x3a4] sm:$0xf]
  %v2510 = vld [vmem:[%s6 + $0x3a8] sm:$0xf]
  %v2511 = vld [vmem:[%s6 + $0x3ac] sm:$0xf]
  %v2512 = vld [vmem:[%s6 + $0x3b0] sm:$0xf]
  %v2513 = vld [vmem:[%s6 + $0x3b4] sm:$0xf]
  %v2514 = vld [vmem:[%s6 + $0x3b8] sm:$0xf]
  %v2515 = vld [vmem:[%s6 + $0x3bc] sm:$0xf]
  %v2516 = vld [vmem:[%s6 + $0x3c0] sm:$0xf]
  %v2517 = vld [vmem:[%s6 + $0x3c4] sm:$0xf]
  %v2518 = vld [vmem:[%s6 + $0x3c8] sm:$0xf]
  %v2519 = vld [vmem:[%s6 + $0x3cc] sm:$0xf]
  %v2520 = vld [vmem:[%s6 + $0x3d0] sm:$0xf]
  %v2521 = vld [vmem:[%s6 + $0x3d4] sm:$0xf]
  %v2522 = vld [vmem:[%s6 + $0x3d8] sm:$0xf]
  %v2523 = vld [vmem:[%s6 + $0x3dc] sm:$0xf]
  %v2524 = vld [vmem:[%s6 + $0x3e0] sm:$0xf]
  %v2525 = vld [vmem:[%s6 + $0x3e4] sm:$0xf]
  %v2526 = vld [vmem:[%s6 + $0x3e8] sm:$0xf]
  %v2527 = vld [vmem:[%s6 + $0x3ec] sm:$0xf]
  %v2528 = vld [vmem:[%s6 + $0x3f0] sm:$0xf]
  %v2529 = vld [vmem:[%s6 + $0x3f4] sm:$0xf]
  %v2530 = vld [vmem:[%s6 + $0x3f8] sm:$0xf]
  %v2531 = vld [vmem:[%s6 + $0x3fc] sm:$0xf]
  %v2532 = vld [vmem:[%s2 + $0x9] sm:$0x1]
  %v2533 = vlaneseq
  %v2534 = vshrl.u32 %v2533, 7
  %v2535 = vsub.s32 0, %v2534
  %v2536 = vrot.slane %v2532, %v2535
  %v2793 = vunpack.c.l.b16 %v2276
  %v2794 = vunpack.c.l.b16 %v2277
  %v2795 = vunpack.c.l.b16 %v2278
  %v2796 = vunpack.c.l.b16 %v2279
  %v2797 = vunpack.c.l.b16 %v2280
  %v2798 = vunpack.c.l.b16 %v2281
  %v2799 = vunpack.c.l.b16 %v2282
  %v2800 = vunpack.c.l.b16 %v2283
  %v2801 = vunpack.c.l.b16 %v2284
  %v2802 = vunpack.c.l.b16 %v2285
  %v2803 = vunpack.c.l.b16 %v2286
  %v2804 = vunpack.c.l.b16 %v2287
  %v2805 = vunpack.c.l.b16 %v2288
  %v2806 = vunpack.c.l.b16 %v2289
  %v2807 = vunpack.c.l.b16 %v2290
  %v2808 = vunpack.c.l.b16 %v2291
  %v2809 = vunpack.c.l.b16 %v2292
  %v2810 = vunpack.c.l.b16 %v2293
  %v2811 = vunpack.c.l.b16 %v2294
  %v2812 = vunpack.c.l.b16 %v2295
  %v2813 = vunpack.c.l.b16 %v2296
  %v2814 = vunpack.c.l.b16 %v2297
  %v2815 = vunpack.c.l.b16 %v2298
  %v2816 = vunpack.c.l.b16 %v2299
  %v2817 = vunpack.c.l.b16 %v2300
  %v2818 = vunpack.c.l.b16 %v2301
  %v2819 = vunpack.c.l.b16 %v2302
  %v2820 = vunpack.c.l.b16 %v2303
  %v2821 = vunpack.c.l.b16 %v2304
  %v2822 = vunpack.c.l.b16 %v2305
  %v2823 = vunpack.c.l.b16 %v2306
  %v2824 = vunpack.c.l.b16 %v2307
  %v2825 = vunpack.c.l.b16 %v2308
  %v2826 = vunpack.c.l.b16 %v2309
  %v2827 = vunpack.c.l.b16 %v2310
  %v2828 = vunpack.c.l.b16 %v2311
  %v2829 = vunpack.c.l.b16 %v2312
  %v2830 = vunpack.c.l.b16 %v2313
  %v2831 = vunpack.c.l.b16 %v2314
  %v2832 = vunpack.c.l.b16 %v2315
  %v2833 = vunpack.c.l.b16 %v2316
  %v2834 = vunpack.c.l.b16 %v2317
  %v2835 = vunpack.c.l.b16 %v2318
  %v2836 = vunpack.c.l.b16 %v2319
  %v2837 = vunpack.c.l.b16 %v2320
  %v2838 = vunpack.c.l.b16 %v2321
  %v2839 = vunpack.c.l.b16 %v2322
  %v2840 = vunpack.c.l.b16 %v2323
  %v2841 = vunpack.c.l.b16 %v2324
  %v2842 = vunpack.c.l.b16 %v2325
  %v2843 = vunpack.c.l.b16 %v2326
  %v2844 = vunpack.c.l.b16 %v2327
  %v2845 = vunpack.c.l.b16 %v2328
  %v2846 = vunpack.c.l.b16 %v2329
  %v2847 = vunpack.c.l.b16 %v2330
  %v2848 = vunpack.c.l.b16 %v2331
  %v2849 = vunpack.c.l.b16 %v2332
  %v2850 = vunpack.c.l.b16 %v2333
  %v2851 = vunpack.c.l.b16 %v2334
  %v2852 = vunpack.c.l.b16 %v2335
  %v2853 = vunpack.c.l.b16 %v2336
  %v2854 = vunpack.c.l.b16 %v2337
  %v2855 = vunpack.c.l.b16 %v2338
  %v2856 = vunpack.c.l.b16 %v2339
  %v2857 = vunpack.c.l.b16 %v2340
  %v2858 = vunpack.c.l.b16 %v2341
  %v2859 = vunpack.c.l.b16 %v2342
  %v2860 = vunpack.c.l.b16 %v2343
  %v2861 = vunpack.c.l.b16 %v2344
  %v2862 = vunpack.c.l.b16 %v2345
  %v2863 = vunpack.c.l.b16 %v2346
  %v2864 = vunpack.c.l.b16 %v2347
  %v2865 = vunpack.c.l.b16 %v2348
  %v2866 = vunpack.c.l.b16 %v2349
  %v2867 = vunpack.c.l.b16 %v2350
  %v2868 = vunpack.c.l.b16 %v2351
  %v2869 = vunpack.c.l.b16 %v2352
  %v2870 = vunpack.c.l.b16 %v2353
  %v2871 = vunpack.c.l.b16 %v2354
  %v2872 = vunpack.c.l.b16 %v2355
  %v2873 = vunpack.c.l.b16 %v2356
  %v2874 = vunpack.c.l.b16 %v2357
  %v2875 = vunpack.c.l.b16 %v2358
  %v2876 = vunpack.c.l.b16 %v2359
  %v2877 = vunpack.c.l.b16 %v2360
  %v2878 = vunpack.c.l.b16 %v2361
  %v2879 = vunpack.c.l.b16 %v2362
  %v2880 = vunpack.c.l.b16 %v2363
  %v2881 = vunpack.c.l.b16 %v2364
  %v2882 = vunpack.c.l.b16 %v2365
  %v2883 = vunpack.c.l.b16 %v2366
  %v2884 = vunpack.c.l.b16 %v2367
  %v2885 = vunpack.c.l.b16 %v2368
  %v2886 = vunpack.c.l.b16 %v2369
  %v2887 = vunpack.c.l.b16 %v2370
  %v2888 = vunpack.c.l.b16 %v2371
  %v2889 = vunpack.c.l.b16 %v2372
  %v2890 = vunpack.c.l.b16 %v2373
  %v2891 = vunpack.c.l.b16 %v2374
  %v2892 = vunpack.c.l.b16 %v2375
  %v2893 = vunpack.c.l.b16 %v2376
  %v2894 = vunpack.c.l.b16 %v2377
  %v2895 = vunpack.c.l.b16 %v2378
  %v2896 = vunpack.c.l.b16 %v2379
  %v2897 = vunpack.c.l.b16 %v2380
  %v2898 = vunpack.c.l.b16 %v2381
  %v2899 = vunpack.c.l.b16 %v2382
  %v2900 = vunpack.c.l.b16 %v2383
  %v2901 = vunpack.c.l.b16 %v2384
  %v2902 = vunpack.c.l.b16 %v2385
  %v2903 = vunpack.c.l.b16 %v2386
  %v2904 = vunpack.c.l.b16 %v2387
  %v2905 = vunpack.c.l.b16 %v2388
  %v2906 = vunpack.c.l.b16 %v2389
  %v2907 = vunpack.c.l.b16 %v2390
  %v2908 = vunpack.c.l.b16 %v2391
  %v2909 = vunpack.c.l.b16 %v2392
  %v2910 = vunpack.c.l.b16 %v2393
  %v2911 = vunpack.c.l.b16 %v2394
  %v2912 = vunpack.c.l.b16 %v2395
  %v2913 = vunpack.c.l.b16 %v2396
  %v2914 = vunpack.c.l.b16 %v2397
  %v2915 = vunpack.c.l.b16 %v2398
  %v2916 = vunpack.c.l.b16 %v2399
  %v2917 = vunpack.c.l.b16 %v2400
  %v2918 = vunpack.c.l.b16 %v2401
  %v2919 = vunpack.c.l.b16 %v2402
  %v2920 = vunpack.c.l.b16 %v2403
  %v2921 = vunpack.c.l.b16 %v2404
  %v2922 = vunpack.c.l.b16 %v2405
  %v2923 = vunpack.c.l.b16 %v2406
  %v2924 = vunpack.c.l.b16 %v2407
  %v2925 = vunpack.c.l.b16 %v2408
  %v2926 = vunpack.c.l.b16 %v2409
  %v2927 = vunpack.c.l.b16 %v2410
  %v2928 = vunpack.c.l.b16 %v2411
  %v2929 = vunpack.c.l.b16 %v2412
  %v2930 = vunpack.c.l.b16 %v2413
  %v2931 = vunpack.c.l.b16 %v2414
  %v2932 = vunpack.c.l.b16 %v2415
  %v2933 = vunpack.c.l.b16 %v2416
  %v2934 = vunpack.c.l.b16 %v2417
  %v2935 = vunpack.c.l.b16 %v2418
  %v2936 = vunpack.c.l.b16 %v2419
  %v2937 = vunpack.c.l.b16 %v2420
  %v2938 = vunpack.c.l.b16 %v2421
  %v2939 = vunpack.c.l.b16 %v2422
  %v2940 = vunpack.c.l.b16 %v2423
  %v2941 = vunpack.c.l.b16 %v2424
  %v2942 = vunpack.c.l.b16 %v2425
  %v2943 = vunpack.c.l.b16 %v2426
  %v2944 = vunpack.c.l.b16 %v2427
  %v2945 = vunpack.c.l.b16 %v2428
  %v2946 = vunpack.c.l.b16 %v2429
  %v2947 = vunpack.c.l.b16 %v2430
  %v2948 = vunpack.c.l.b16 %v2431
  %v2949 = vunpack.c.l.b16 %v2432
  %v2950 = vunpack.c.l.b16 %v2433
  %v2951 = vunpack.c.l.b16 %v2434
  %v2952 = vunpack.c.l.b16 %v2435
  %v2953 = vunpack.c.l.b16 %v2436
  %v2954 = vunpack.c.l.b16 %v2437
  %v2955 = vunpack.c.l.b16 %v2438
  %v2956 = vunpack.c.l.b16 %v2439
  %v2957 = vunpack.c.l.b16 %v2440
  %v2958 = vunpack.c.l.b16 %v2441
  %v2959 = vunpack.c.l.b16 %v2442
  %v2960 = vunpack.c.l.b16 %v2443
  %v2961 = vunpack.c.l.b16 %v2444
  %v2962 = vunpack.c.l.b16 %v2445
  %v2963 = vunpack.c.l.b16 %v2446
  %v2964 = vunpack.c.l.b16 %v2447
  %v2965 = vunpack.c.l.b16 %v2448
  %v2966 = vunpack.c.l.b16 %v2449
  %v2967 = vunpack.c.l.b16 %v2450
  %v2968 = vunpack.c.l.b16 %v2451
  %v2969 = vunpack.c.l.b16 %v2452
  %v2970 = vunpack.c.l.b16 %v2453
  %v2971 = vunpack.c.l.b16 %v2454
  %v2972 = vunpack.c.l.b16 %v2455
  %v2973 = vunpack.c.l.b16 %v2456
  %v2974 = vunpack.c.l.b16 %v2457
  %v2975 = vunpack.c.l.b16 %v2458
  %v2976 = vunpack.c.l.b16 %v2459
  %v2977 = vunpack.c.l.b16 %v2460
  %v2978 = vunpack.c.l.b16 %v2461
  %v2979 = vunpack.c.l.b16 %v2462
  %v2980 = vunpack.c.l.b16 %v2463
  %v2981 = vunpack.c.l.b16 %v2464
  %v2982 = vunpack.c.l.b16 %v2465
  %v2983 = vunpack.c.l.b16 %v2466
  %v2984 = vunpack.c.l.b16 %v2467
  %v2985 = vunpack.c.l.b16 %v2468
  %v2986 = vunpack.c.l.b16 %v2469
  %v2987 = vunpack.c.l.b16 %v2470
  %v2988 = vunpack.c.l.b16 %v2471
  %v2989 = vunpack.c.l.b16 %v2472
  %v2990 = vunpack.c.l.b16 %v2473
  %v2991 = vunpack.c.l.b16 %v2474
  %v2992 = vunpack.c.l.b16 %v2475
  %v2993 = vunpack.c.l.b16 %v2476
  %v2994 = vunpack.c.l.b16 %v2477
  %v2995 = vunpack.c.l.b16 %v2478
  %v2996 = vunpack.c.l.b16 %v2479
  %v2997 = vunpack.c.l.b16 %v2480
  %v2998 = vunpack.c.l.b16 %v2481
  %v2999 = vunpack.c.l.b16 %v2482
  %v3000 = vunpack.c.l.b16 %v2483
  %v3001 = vunpack.c.l.b16 %v2484
  %v3002 = vunpack.c.l.b16 %v2485
  %v3003 = vunpack.c.l.b16 %v2486
  %v3004 = vunpack.c.l.b16 %v2487
  %v3005 = vunpack.c.l.b16 %v2488
  %v3006 = vunpack.c.l.b16 %v2489
  %v3007 = vunpack.c.l.b16 %v2490
  %v3008 = vunpack.c.l.b16 %v2491
  %v3009 = vunpack.c.l.b16 %v2492
  %v3010 = vunpack.c.l.b16 %v2493
  %v3011 = vunpack.c.l.b16 %v2494
  %v3012 = vunpack.c.l.b16 %v2495
  %v3013 = vunpack.c.l.b16 %v2496
  %v3014 = vunpack.c.l.b16 %v2497
  %v3015 = vunpack.c.l.b16 %v2498
  %v3016 = vunpack.c.l.b16 %v2499
  %v3017 = vunpack.c.l.b16 %v2500
  %v3018 = vunpack.c.l.b16 %v2501
  %v3019 = vunpack.c.l.b16 %v2502
  %v3020 = vunpack.c.l.b16 %v2503
  %v3021 = vunpack.c.l.b16 %v2504
  %v3022 = vunpack.c.l.b16 %v2505
  %v3023 = vunpack.c.l.b16 %v2506
  %v3024 = vunpack.c.l.b16 %v2507
  %v3025 = vunpack.c.l.b16 %v2508
  %v3026 = vunpack.c.l.b16 %v2509
  %v3027 = vunpack.c.l.b16 %v2510
  %v3028 = vunpack.c.l.b16 %v2511
  %v3029 = vunpack.c.l.b16 %v2512
  %v3030 = vunpack.c.l.b16 %v2513
  %v3031 = vunpack.c.l.b16 %v2514
  %v3032 = vunpack.c.l.b16 %v2515
  %v3033 = vunpack.c.l.b16 %v2516
  %v3034 = vunpack.c.l.b16 %v2517
  %v3035 = vunpack.c.l.b16 %v2518
  %v3036 = vunpack.c.l.b16 %v2519
  %v3037 = vunpack.c.l.b16 %v2520
  %v3038 = vunpack.c.l.b16 %v2521
  %v3039 = vunpack.c.l.b16 %v2522
  %v3040 = vunpack.c.l.b16 %v2523
  %v3041 = vunpack.c.l.b16 %v2524
  %v3042 = vunpack.c.l.b16 %v2525
  %v3043 = vunpack.c.l.b16 %v2526
  %v3044 = vunpack.c.l.b16 %v2527
  %v3045 = vunpack.c.l.b16 %v2528
  %v3046 = vunpack.c.l.b16 %v2529
  %v3047 = vunpack.c.l.b16 %v2530
  %v3048 = vunpack.c.l.b16 %v2531
  %v3049 = vpack.c.b16 %v2794, %v2793
  %v3050 = vpack.c.b16 %v2796, %v2795
  %v3051 = vpack.c.b16 %v2798, %v2797
  %v3052 = vpack.c.b16 %v2800, %v2799
  %v3053 = vpack.c.b16 %v2802, %v2801
  %v3054 = vpack.c.b16 %v2804, %v2803
  %v3055 = vpack.c.b16 %v2806, %v2805
  %v3056 = vpack.c.b16 %v2808, %v2807
  %v3057 = vpack.c.b16 %v2810, %v2809
  %v3058 = vpack.c.b16 %v2812, %v2811
  %v3059 = vpack.c.b16 %v2814, %v2813
  %v3060 = vpack.c.b16 %v2816, %v2815
  %v3061 = vpack.c.b16 %v2818, %v2817
  %v3062 = vpack.c.b16 %v2820, %v2819
  %v3063 = vpack.c.b16 %v2822, %v2821
  %v3064 = vpack.c.b16 %v2824, %v2823
  %v3065 = vpack.c.b16 %v2826, %v2825
  %v3066 = vpack.c.b16 %v2828, %v2827
  %v3067 = vpack.c.b16 %v2830, %v2829
  %v3068 = vpack.c.b16 %v2832, %v2831
  %v3069 = vpack.c.b16 %v2834, %v2833
  %v3070 = vpack.c.b16 %v2836, %v2835
  %v3071 = vpack.c.b16 %v2838, %v2837
  %v3072 = vpack.c.b16 %v2840, %v2839
  %v3073 = vpack.c.b16 %v2842, %v2841
  %v3074 = vpack.c.b16 %v2844, %v2843
  %v3075 = vpack.c.b16 %v2846, %v2845
  %v3076 = vpack.c.b16 %v2848, %v2847
  %v3077 = vpack.c.b16 %v2850, %v2849
  %v3078 = vpack.c.b16 %v2852, %v2851
  %v3079 = vpack.c.b16 %v2854, %v2853
  %v3080 = vpack.c.b16 %v2856, %v2855
  %v3081 = vpack.c.b16 %v2858, %v2857
  %v3082 = vpack.c.b16 %v2860, %v2859
  %v3083 = vpack.c.b16 %v2862, %v2861
  %v3084 = vpack.c.b16 %v2864, %v2863
  %v3085 = vpack.c.b16 %v2866, %v2865
  %v3086 = vpack.c.b16 %v2868, %v2867
  %v3087 = vpack.c.b16 %v2870, %v2869
  %v3088 = vpack.c.b16 %v2872, %v2871
  %v3089 = vpack.c.b16 %v2874, %v2873
  %v3090 = vpack.c.b16 %v2876, %v2875
  %v3091 = vpack.c.b16 %v2878, %v2877
  %v3092 = vpack.c.b16 %v2880, %v2879
  %v3093 = vpack.c.b16 %v2882, %v2881
  %v3094 = vpack.c.b16 %v2884, %v2883
  %v3095 = vpack.c.b16 %v2886, %v2885
  %v3096 = vpack.c.b16 %v2888, %v2887
  %v3097 = vpack.c.b16 %v2890, %v2889
  %v3098 = vpack.c.b16 %v2892, %v2891
  %v3099 = vpack.c.b16 %v2894, %v2893
  %v3100 = vpack.c.b16 %v2896, %v2895
  %v3101 = vpack.c.b16 %v2898, %v2897
  %v3102 = vpack.c.b16 %v2900, %v2899
  %v3103 = vpack.c.b16 %v2902, %v2901
  %v3104 = vpack.c.b16 %v2904, %v2903
  %v3105 = vpack.c.b16 %v2906, %v2905
  %v3106 = vpack.c.b16 %v2908, %v2907
  %v3107 = vpack.c.b16 %v2910, %v2909
  %v3108 = vpack.c.b16 %v2912, %v2911
  %v3109 = vpack.c.b16 %v2914, %v2913
  %v3110 = vpack.c.b16 %v2916, %v2915
  %v3111 = vpack.c.b16 %v2918, %v2917
  %v3112 = vpack.c.b16 %v2920, %v2919
  %v3113 = vpack.c.b16 %v2922, %v2921
  %v3114 = vpack.c.b16 %v2924, %v2923
  %v3115 = vpack.c.b16 %v2926, %v2925
  %v3116 = vpack.c.b16 %v2928, %v2927
  %v3117 = vpack.c.b16 %v2930, %v2929
  %v3118 = vpack.c.b16 %v2932, %v2931
  %v3119 = vpack.c.b16 %v2934, %v2933
  %v3120 = vpack.c.b16 %v2936, %v2935
  %v3121 = vpack.c.b16 %v2938, %v2937
  %v3122 = vpack.c.b16 %v2940, %v2939
  %v3123 = vpack.c.b16 %v2942, %v2941
  %v3124 = vpack.c.b16 %v2944, %v2943
  %v3125 = vpack.c.b16 %v2946, %v2945
  %v3126 = vpack.c.b16 %v2948, %v2947
  %v3127 = vpack.c.b16 %v2950, %v2949
  %v3128 = vpack.c.b16 %v2952, %v2951
  %v3129 = vpack.c.b16 %v2954, %v2953
  %v3130 = vpack.c.b16 %v2956, %v2955
  %v3131 = vpack.c.b16 %v2958, %v2957
  %v3132 = vpack.c.b16 %v2960, %v2959
  %v3133 = vpack.c.b16 %v2962, %v2961
  %v3134 = vpack.c.b16 %v2964, %v2963
  %v3135 = vpack.c.b16 %v2966, %v2965
  %v3136 = vpack.c.b16 %v2968, %v2967
  %v3137 = vpack.c.b16 %v2970, %v2969
  %v3138 = vpack.c.b16 %v2972, %v2971
  %v3139 = vpack.c.b16 %v2974, %v2973
  %v3140 = vpack.c.b16 %v2976, %v2975
  %v3141 = vpack.c.b16 %v2978, %v2977
  %v3142 = vpack.c.b16 %v2980, %v2979
  %v3143 = vpack.c.b16 %v2982, %v2981
  %v3144 = vpack.c.b16 %v2984, %v2983
  %v3145 = vpack.c.b16 %v2986, %v2985
  %v3146 = vpack.c.b16 %v2988, %v2987
  %v3147 = vpack.c.b16 %v2990, %v2989
  %v3148 = vpack.c.b16 %v2992, %v2991
  %v3149 = vpack.c.b16 %v2994, %v2993
  %v3150 = vpack.c.b16 %v2996, %v2995
  %v3151 = vpack.c.b16 %v2998, %v2997
  %v3152 = vpack.c.b16 %v3000, %v2999
  %v3153 = vpack.c.b16 %v3002, %v3001
  %v3154 = vpack.c.b16 %v3004, %v3003
  %v3155 = vpack.c.b16 %v3006, %v3005
  %v3156 = vpack.c.b16 %v3008, %v3007
  %v3157 = vpack.c.b16 %v3010, %v3009
  %v3158 = vpack.c.b16 %v3012, %v3011
  %v3159 = vpack.c.b16 %v3014, %v3013
  %v3160 = vpack.c.b16 %v3016, %v3015
  %v3161 = vpack.c.b16 %v3018, %v3017
  %v3162 = vpack.c.b16 %v3020, %v3019
  %v3163 = vpack.c.b16 %v3022, %v3021
  %v3164 = vpack.c.b16 %v3024, %v3023
  %v3165 = vpack.c.b16 %v3026, %v3025
  %v3166 = vpack.c.b16 %v3028, %v3027
  %v3167 = vpack.c.b16 %v3030, %v3029
  %v3168 = vpack.c.b16 %v3032, %v3031
  %v3169 = vpack.c.b16 %v3034, %v3033
  %v3170 = vpack.c.b16 %v3036, %v3035
  %v3171 = vpack.c.b16 %v3038, %v3037
  %v3172 = vpack.c.b16 %v3040, %v3039
  %v3173 = vpack.c.b16 %v3042, %v3041
  %v3174 = vpack.c.b16 %v3044, %v3043
  %v3175 = vpack.c.b16 %v3046, %v3045
  %v3176 = vpack.c.b16 %v3048, %v3047
  %3305 = vmatprep.subr.bf16.mxu0 0
  %3306 = vmatpush1.bf16.msra.mxu0 %v3049
  %3307 = vmatprep.subr.bf16.mxu0 0
  %3308 = vmatpush1.bf16.msra.mxu0 %v3050
  %3309 = vmatprep.subr.bf16.mxu0 0
  %3310 = vmatpush1.bf16.msra.mxu0 %v3051
  %3311 = vmatprep.subr.bf16.mxu0 0
  %3312 = vmatpush1.bf16.msra.mxu0 %v3052
  %3313 = vmatprep.subr.bf16.mxu0 0
  %3314 = vmatpush1.bf16.msra.mxu0 %v3053
  %3315 = vmatprep.subr.bf16.mxu0 0
  %3316 = vmatpush1.bf16.msra.mxu0 %v3054
  %3317 = vmatprep.subr.bf16.mxu0 0
  %3318 = vmatpush1.bf16.msra.mxu0 %v3055
  %3319 = vmatprep.subr.bf16.mxu0 0
  %3320 = vmatpush1.bf16.msra.mxu0 %v3056
  %3321 = vmatprep.subr.bf16.mxu0 0
  %3322 = vmatpush1.bf16.msra.mxu0 %v3057
  %3323 = vmatprep.subr.bf16.mxu0 0
  %3324 = vmatpush1.bf16.msra.mxu0 %v3058
  %3325 = vmatprep.subr.bf16.mxu0 0
  %3326 = vmatpush1.bf16.msra.mxu0 %v3059
  %3327 = vmatprep.subr.bf16.mxu0 0
  %3328 = vmatpush1.bf16.msra.mxu0 %v3060
  %3329 = vmatprep.subr.bf16.mxu0 0
  %3330 = vmatpush1.bf16.msra.mxu0 %v3061
  %3331 = vmatprep.subr.bf16.mxu0 0
  %3332 = vmatpush1.bf16.msra.mxu0 %v3062
  %3333 = vmatprep.subr.bf16.mxu0 0
  %3334 = vmatpush1.bf16.msra.mxu0 %v3063
  %3335 = vmatprep.subr.bf16.mxu0 0
  %3336 = vmatpush1.bf16.msra.mxu0 %v3064
  %3337 = vmatprep.mubr.bf16.mxu0 %v2261
  %3338 = vmatmul.mubr.bf16.gmra.mrb[0].mxu0 %v2260
  %v3339 = vpop.f32.mrb[0].mxu0
  %v3340 = vadd.f32 %v2536, %v3339
  %v3341 = vpop.f32.mrb[0].mxu0
  %v3342 = vpop.f32.mrb[0].mxu0
  %v3343 = vadd.f32 %v2536, %v3342
  %v3344 = vpop.f32.mrb[0].mxu0
  %3345 = vdwg.mxu0
  %3346 = vmatprep.subr.bf16.mxu0 0
  %3347 = vmatpush1.bf16.msra.mxu0 %v3065
  %3348 = vmatprep.subr.bf16.mxu0 0
  %3349 = vmatpush1.bf16.msra.mxu0 %v3066
  %3350 = vmatprep.subr.bf16.mxu0 0
  %3351 = vmatpush1.bf16.msra.mxu0 %v3067
  %3352 = vmatprep.subr.bf16.mxu0 0
  %3353 = vmatpush1.bf16.msra.mxu0 %v3068
  %3354 = vmatprep.subr.bf16.mxu0 0
  %3355 = vmatpush1.bf16.msra.mxu0 %v3069
  %3356 = vmatprep.subr.bf16.mxu0 0
  %3357 = vmatpush1.bf16.msra.mxu0 %v3070
  %3358 = vmatprep.subr.bf16.mxu0 0
  %3359 = vmatpush1.bf16.msra.mxu0 %v3071
  %3360 = vmatprep.subr.bf16.mxu0 0
  %3361 = vmatpush1.bf16.msra.mxu0 %v3072
  %3362 = vmatprep.subr.bf16.mxu0 0
  %3363 = vmatpush1.bf16.msra.mxu0 %v3073
  %3364 = vmatprep.subr.bf16.mxu0 0
  %3365 = vmatpush1.bf16.msra.mxu0 %v3074
  %3366 = vmatprep.subr.bf16.mxu0 0
  %3367 = vmatpush1.bf16.msra.mxu0 %v3075
  %3368 = vmatprep.subr.bf16.mxu0 0
  %3369 = vmatpush1.bf16.msra.mxu0 %v3076
  %3370 = vmatprep.subr.bf16.mxu0 0
  %3371 = vmatpush1.bf16.msra.mxu0 %v3077
  %3372 = vmatprep.subr.bf16.mxu0 0
  %3373 = vmatpush1.bf16.msra.mxu0 %v3078
  %3374 = vmatprep.subr.bf16.mxu0 0
  %3375 = vmatpush1.bf16.msra.mxu0 %v3079
  %3376 = vmatprep.subr.bf16.mxu0 0
  %3377 = vmatpush1.bf16.msra.mxu0 %v3080
  %3378 = vmatprep.mubr.bf16.mxu0 %v2263
  %3379 = vmatmul.mubr.bf16.gmra.mrb[0].mxu0 %v2262
  %v3380 = vpop.f32.mrb[0].mxu0
  %v3381 = vadd.f32 %v3340, %v3380
  %v3382 = vpop.f32.mrb[0].mxu0
  %v3383 = vpop.f32.mrb[0].mxu0
  %v3384 = vadd.f32 %v3343, %v3383
  %v3385 = vpop.f32.mrb[0].mxu0
  %3386 = vdwg.mxu0
  %3387 = vmatprep.subr.bf16.mxu0 0
  %3388 = vmatpush1.bf16.msra.mxu0 %v3081
  %3389 = vmatprep.subr.bf16.mxu0 0
  %3390 = vmatpush1.bf16.msra.mxu0 %v3082
  %3391 = vmatprep.subr.bf16.mxu0 0
  %3392 = vmatpush1.bf16.msra.mxu0 %v3083
  %3393 = vmatprep.subr.bf16.mxu0 0
  %3394 = vmatpush1.bf16.msra.mxu0 %v3084
  %3395 = vmatprep.subr.bf16.mxu0 0
  %3396 = vmatpush1.bf16.msra.mxu0 %v3085
  %3397 = vmatprep.subr.bf16.mxu0 0
  %3398 = vmatpush1.bf16.msra.mxu0 %v3086
  %3399 = vmatprep.subr.bf16.mxu0 0
  %3400 = vmatpush1.bf16.msra.mxu0 %v3087
  %3401 = vmatprep.subr.bf16.mxu0 0
  %3402 = vmatpush1.bf16.msra.mxu0 %v3088
  %3403 = vmatprep.subr.bf16.mxu0 0
  %3404 = vmatpush1.bf16.msra.mxu0 %v3089
  %3405 = vmatprep.subr.bf16.mxu0 0
  %3406 = vmatpush1.bf16.msra.mxu0 %v3090
  %3407 = vmatprep.subr.bf16.mxu0 0
  %3408 = vmatpush1.bf16.msra.mxu0 %v3091
  %3409 = vmatprep.subr.bf16.mxu0 0
  %3410 = vmatpush1.bf16.msra.mxu0 %v3092
  %3411 = vmatprep.subr.bf16.mxu0 0
  %3412 = vmatpush1.bf16.msra.mxu0 %v3093
  %3413 = vmatprep.subr.bf16.mxu0 0
  %3414 = vmatpush1.bf16.msra.mxu0 %v3094
  %3415 = vmatprep.subr.bf16.mxu0 0
  %3416 = vmatpush1.bf16.msra.mxu0 %v3095
  %3417 = vmatprep.subr.bf16.mxu0 0
  %3418 = vmatpush1.bf16.msra.mxu0 %v3096
  %3419 = vmatprep.mubr.bf16.mxu0 %v2265
  %3420 = vmatmul.mubr.bf16.gmra.mrb[0].mxu0 %v2264
  %v3421 = vpop.f32.mrb[0].mxu0
  %v3422 = vadd.f32 %v3381, %v3421
  %v3423 = vpop.f32.mrb[0].mxu0
  %v3424 = vpop.f32.mrb[0].mxu0
  %v3425 = vadd.f32 %v3384, %v3424
  %v3426 = vpop.f32.mrb[0].mxu0
  %3427 = vdwg.mxu0
  %3428 = vmatprep.subr.bf16.mxu0 0
  %3429 = vmatpush1.bf16.msra.mxu0 %v3097
  %3430 = vmatprep.subr.bf16.mxu0 0
  %3431 = vmatpush1.bf16.msra.mxu0 %v3098
  %3432 = vmatprep.subr.bf16.mxu0 0
  %3433 = vmatpush1.bf16.msra.mxu0 %v3099
  %3434 = vmatprep.subr.bf16.mxu0 0
  %3435 = vmatpush1.bf16.msra.mxu0 %v3100
  %3436 = vmatprep.subr.bf16.mxu0 0
  %3437 = vmatpush1.bf16.msra.mxu0 %v3101
  %3438 = vmatprep.subr.bf16.mxu0 0
  %3439 = vmatpush1.bf16.msra.mxu0 %v3102
  %3440 = vmatprep.subr.bf16.mxu0 0
  %3441 = vmatpush1.bf16.msra.mxu0 %v3103
  %3442 = vmatprep.subr.bf16.mxu0 0
  %3443 = vmatpush1.bf16.msra.mxu0 %v3104
  %3444 = vmatprep.subr.bf16.mxu0 0
  %3445 = vmatpush1.bf16.msra.mxu0 %v3105
  %3446 = vmatprep.subr.bf16.mxu0 0
  %3447 = vmatpush1.bf16.msra.mxu0 %v3106
  %3448 = vmatprep.subr.bf16.mxu0 0
  %3449 = vmatpush1.bf16.msra.mxu0 %v3107
  %3450 = vmatprep.subr.bf16.mxu0 0
  %3451 = vmatpush1.bf16.msra.mxu0 %v3108
  %3452 = vmatprep.subr.bf16.mxu0 0
  %3453 = vmatpush1.bf16.msra.mxu0 %v3109
  %3454 = vmatprep.subr.bf16.mxu0 0
  %3455 = vmatpush1.bf16.msra.mxu0 %v3110
  %3456 = vmatprep.subr.bf16.mxu0 0
  %3457 = vmatpush1.bf16.msra.mxu0 %v3111
  %3458 = vmatprep.subr.bf16.mxu0 0
  %3459 = vmatpush1.bf16.msra.mxu0 %v3112
  %3460 = vmatprep.mubr.bf16.mxu0 %v2267
  %3461 = vmatmul.mubr.bf16.gmra.mrb[0].mxu0 %v2266
  %v3462 = vpop.f32.mrb[0].mxu0
  %v3463 = vadd.f32 %v3422, %v3462
  %v3464 = vpop.f32.mrb[0].mxu0
  %v3465 = vpop.f32.mrb[0].mxu0
  %v3466 = vadd.f32 %v3425, %v3465
  %v3467 = vpop.f32.mrb[0].mxu0
  %3468 = vdwg.mxu0
  %3469 = vmatprep.subr.bf16.mxu0 0
  %3470 = vmatpush1.bf16.msra.mxu0 %v3113
  %3471 = vmatprep.subr.bf16.mxu0 0
  %3472 = vmatpush1.bf16.msra.mxu0 %v3114
  %3473 = vmatprep.subr.bf16.mxu0 0
  %3474 = vmatpush1.bf16.msra.mxu0 %v3115
  %3475 = vmatprep.subr.bf16.mxu0 0
  %3476 = vmatpush1.bf16.msra.mxu0 %v3116
  %3477 = vmatprep.subr.bf16.mxu0 0
  %3478 = vmatpush1.bf16.msra.mxu0 %v3117
  %3479 = vmatprep.subr.bf16.mxu0 0
  %3480 = vmatpush1.bf16.msra.mxu0 %v3118
  %3481 = vmatprep.subr.bf16.mxu0 0
  %3482 = vmatpush1.bf16.msra.mxu0 %v3119
  %3483 = vmatprep.subr.bf16.mxu0 0
  %3484 = vmatpush1.bf16.msra.mxu0 %v3120
  %3485 = vmatprep.subr.bf16.mxu0 0
  %3486 = vmatpush1.bf16.msra.mxu0 %v3121
  %3487 = vmatprep.subr.bf16.mxu0 0
  %3488 = vmatpush1.bf16.msra.mxu0 %v3122
  %3489 = vmatprep.subr.bf16.mxu0 0
  %3490 = vmatpush1.bf16.msra.mxu0 %v3123
  %3491 = vmatprep.subr.bf16.mxu0 0
  %3492 = vmatpush1.bf16.msra.mxu0 %v3124
  %3493 = vmatprep.subr.bf16.mxu0 0
  %3494 = vmatpush1.bf16.msra.mxu0 %v3125
  %3495 = vmatprep.subr.bf16.mxu0 0
  %3496 = vmatpush1.bf16.msra.mxu0 %v3126
  %3497 = vmatprep.subr.bf16.mxu0 0
  %3498 = vmatpush1.bf16.msra.mxu0 %v3127
  %3499 = vmatprep.subr.bf16.mxu0 0
  %3500 = vmatpush1.bf16.msra.mxu0 %v3128
  %3501 = vmatprep.mubr.bf16.mxu0 %v2269
  %3502 = vmatmul.mubr.bf16.gmra.mrb[0].mxu0 %v2268
  %v3503 = vpop.f32.mrb[0].mxu0
  %v3504 = vadd.f32 %v3463, %v3503
  %v3505 = vpop.f32.mrb[0].mxu0
  %v3506 = vpop.f32.mrb[0].mxu0
  %v3507 = vadd.f32 %v3466, %v3506
  %v3508 = vpop.f32.mrb[0].mxu0
  %3509 = vdwg.mxu0
  %3510 = vmatprep.subr.bf16.mxu0 0
  %3511 = vmatpush1.bf16.msra.mxu0 %v3129
  %3512 = vmatprep.subr.bf16.mxu0 0
  %3513 = vmatpush1.bf16.msra.mxu0 %v3130
  %3514 = vmatprep.subr.bf16.mxu0 0
  %3515 = vmatpush1.bf16.msra.mxu0 %v3131
  %3516 = vmatprep.subr.bf16.mxu0 0
  %3517 = vmatpush1.bf16.msra.mxu0 %v3132
  %3518 = vmatprep.subr.bf16.mxu0 0
  %3519 = vmatpush1.bf16.msra.mxu0 %v3133
  %3520 = vmatprep.subr.bf16.mxu0 0
  %3521 = vmatpush1.bf16.msra.mxu0 %v3134
  %3522 = vmatprep.subr.bf16.mxu0 0
  %3523 = vmatpush1.bf16.msra.mxu0 %v3135
  %3524 = vmatprep.subr.bf16.mxu0 0
  %3525 = vmatpush1.bf16.msra.mxu0 %v3136
  %3526 = vmatprep.subr.bf16.mxu0 0
  %3527 = vmatpush1.bf16.msra.mxu0 %v3137
  %3528 = vmatprep.subr.bf16.mxu0 0
  %3529 = vmatpush1.bf16.msra.mxu0 %v3138
  %3530 = vmatprep.subr.bf16.mxu0 0
  %3531 = vmatpush1.bf16.msra.mxu0 %v3139
  %3532 = vmatprep.subr.bf16.mxu0 0
  %3533 = vmatpush1.bf16.msra.mxu0 %v3140
  %3534 = vmatprep.subr.bf16.mxu0 0
  %3535 = vmatpush1.bf16.msra.mxu0 %v3141
  %3536 = vmatprep.subr.bf16.mxu0 0
  %3537 = vmatpush1.bf16.msra.mxu0 %v3142
  %3538 = vmatprep.subr.bf16.mxu0 0
  %3539 = vmatpush1.bf16.msra.mxu0 %v3143
  %3540 = vmatprep.subr.bf16.mxu0 0
  %3541 = vmatpush1.bf16.msra.mxu0 %v3144
  %3542 = vmatprep.mubr.bf16.mxu0 %v2271
  %3543 = vmatmul.mubr.bf16.gmra.mrb[0].mxu0 %v2270
  %v3544 = vpop.f32.mrb[0].mxu0
  %v3545 = vadd.f32 %v3504, %v3544
  %v3546 = vpop.f32.mrb[0].mxu0
  %v3547 = vpop.f32.mrb[0].mxu0
  %v3548 = vadd.f32 %v3507, %v3547
  %v3549 = vpop.f32.mrb[0].mxu0
  %3550 = vdwg.mxu0
  %3551 = vmatprep.subr.bf16.mxu0 0
  %3552 = vmatpush1.bf16.msra.mxu0 %v3145
  %3553 = vmatprep.subr.bf16.mxu0 0
  %3554 = vmatpush1.bf16.msra.mxu0 %v3146
  %3555 = vmatprep.subr.bf16.mxu0 0
  %3556 = vmatpush1.bf16.msra.mxu0 %v3147
  %3557 = vmatprep.subr.bf16.mxu0 0
  %3558 = vmatpush1.bf16.msra.mxu0 %v3148
  %3559 = vmatprep.subr.bf16.mxu0 0
  %3560 = vmatpush1.bf16.msra.mxu0 %v3149
  %3561 = vmatprep.subr.bf16.mxu0 0
  %3562 = vmatpush1.bf16.msra.mxu0 %v3150
  %3563 = vmatprep.subr.bf16.mxu0 0
  %3564 = vmatpush1.bf16.msra.mxu0 %v3151
  %3565 = vmatprep.subr.bf16.mxu0 0
  %3566 = vmatpush1.bf16.msra.mxu0 %v3152
  %3567 = vmatprep.subr.bf16.mxu0 0
  %3568 = vmatpush1.bf16.msra.mxu0 %v3153
  %3569 = vmatprep.subr.bf16.mxu0 0
  %3570 = vmatpush1.bf16.msra.mxu0 %v3154
  %3571 = vmatprep.subr.bf16.mxu0 0
  %3572 = vmatpush1.bf16.msra.mxu0 %v3155
  %3573 = vmatprep.subr.bf16.mxu0 0
  %3574 = vmatpush1.bf16.msra.mxu0 %v3156
  %3575 = vmatprep.subr.bf16.mxu0 0
  %3576 = vmatpush1.bf16.msra.mxu0 %v3157
  %3577 = vmatprep.subr.bf16.mxu0 0
  %3578 = vmatpush1.bf16.msra.mxu0 %v3158
  %3579 = vmatprep.subr.bf16.mxu0 0
  %3580 = vmatpush1.bf16.msra.mxu0 %v3159
  %3581 = vmatprep.subr.bf16.mxu0 0
  %3582 = vmatpush1.bf16.msra.mxu0 %v3160
  %3583 = vmatprep.mubr.bf16.mxu0 %v2273
  %3584 = vmatmul.mubr.bf16.gmra.mrb[0].mxu0 %v2272
  %v3585 = vpop.f32.mrb[0].mxu0
  %v3586 = vadd.f32 %v3545, %v3585
  %v3587 = vpop.f32.mrb[0].mxu0
  %v3588 = vpop.f32.mrb[0].mxu0
  %v3589 = vadd.f32 %v3548, %v3588
  %v3590 = vpop.f32.mrb[0].mxu0
  %3591 = vdwg.mxu0
  %3592 = vmatprep.subr.bf16.mxu0 0
  %3593 = vmatpush1.bf16.msra.mxu0 %v3161
  %3594 = vmatprep.subr.bf16.mxu0 0
  %3595 = vmatpush1.bf16.msra.mxu0 %v3162
  %3596 = vmatprep.subr.bf16.mxu0 0
  %3597 = vmatpush1.bf16.msra.mxu0 %v3163
  %3598 = vmatprep.subr.bf16.mxu0 0
  %3599 = vmatpush1.bf16.msra.mxu0 %v3164
  %3600 = vmatprep.subr.bf16.mxu0 0
  %3601 = vmatpush1.bf16.msra.mxu0 %v3165
  %3602 = vmatprep.subr.bf16.mxu0 0
  %3603 = vmatpush1.bf16.msra.mxu0 %v3166
  %3604 = vmatprep.subr.bf16.mxu0 0
  %3605 = vmatpush1.bf16.msra.mxu0 %v3167
  %3606 = vmatprep.subr.bf16.mxu0 0
  %3607 = vmatpush1.bf16.msra.mxu0 %v3168
  %3608 = vmatprep.subr.bf16.mxu0 0
  %3609 = vmatpush1.bf16.msra.mxu0 %v3169
  %3610 = vmatprep.subr.bf16.mxu0 0
  %3611 = vmatpush1.bf16.msra.mxu0 %v3170
  %3612 = vmatprep.subr.bf16.mxu0 0
  %3613 = vmatpush1.bf16.msra.mxu0 %v3171
  %3614 = vmatprep.subr.bf16.mxu0 0
  %3615 = vmatpush1.bf16.msra.mxu0 %v3172
  %3616 = vmatprep.subr.bf16.mxu0 0
  %3617 = vmatpush1.bf16.msra.mxu0 %v3173
  %3618 = vmatprep.subr.bf16.mxu0 0
  %3619 = vmatpush1.bf16.msra.mxu0 %v3174
  %3620 = vmatprep.subr.bf16.mxu0 0
  %3621 = vmatpush1.bf16.msra.mxu0 %v3175
  %3622 = vmatprep.subr.bf16.mxu0 0
  %3623 = vmatpush1.bf16.msra.mxu0 %v3176
  %3624 = vmatprep.mubr.bf16.mxu0 %v2275
  %3625 = vmatmul.mubr.bf16.gmra.mrb[0].mxu0 %v2274
  %v3626 = vpop.f32.mrb[0].mxu0
  %v3627 = vadd.f32 %v3586, %v3626
  %v3628 = vpop.f32.mrb[0].mxu0
  %v3629 = vpop.f32.mrb[0].mxu0
  %v3630 = vadd.f32 %v3589, %v3629
  %v3631 = vpop.f32.mrb[0].mxu0
  %3632 = vdwg.mxu0
  %v3633 = vadd.f32 %v1029, %v3627
  %v3634 = vadd.f32 %v1030, %v3630
  %v3635 = vld [vmem:[%s2 + $0x7] sm:$0x1]
  %v3636 = vld [vmem:[%s2 + $0x8] sm:$0x1]
  %3637 = vadd.xlane.f32.xlu0 %v3633
  %v3638 = vpop.xlane.xlu0 %3637
  %3639 = vadd.xlane.f32.xlu0 %v3634
  %v3640 = vpop.xlane.xlu0 %3639
  %v3641 = vmul.f32 %v3638, 0.1
  %v3642 = vmul.f32 %v3640, 0.1
  %v3643 = vsub.f32 %v3633, %v3641
  %v3644 = vsub.f32 %v3634, %v3642
  %v3645 = vmul.f32 %v3643, %v588
  %v3646 = vmul.f32 %v3644, %v588
  %v3647 = vmul.f32 %v3645, %v3645
  %v3648 = vmul.f32 %v3646, %v3646
  %3649 = vadd.xlane.f32.xlu0 %v3647
  %v3650 = vpop.xlane.xlu0 %3649
  %3651 = vadd.xlane.f32.xlu0 %v3648
  %v3652 = vpop.xlane.xlu0 %3651
  %v3653 = vmul.f32 %v3650, 0.1
  %v3654 = vmul.f32 %v3652, 0.1
  %v3655 = vadd.f32 %v3653, 1e-05
  %v3656 = vadd.f32 %v3654, 1e-05
  %v3657 = vrsqrt.pop %v3655
  %v3658 = vrsqrt.pop %v3656
  %v3659 = vmul.f32 %v3645, %v3657
  %v3660 = vmul.f32 %v3646, %v3658
  %v3661 = vlaneseq
  %v3662 = vshrl.u32 %v3661, 7
  %v3663 = vsub.s32 0, %v3662
  %v3664 = vrot.slane %v3635, %v3663
  %v3665 = vmul.f32 %v3659, %v3664
  %v3666 = vmul.f32 %v3660, %v3664
  %v3667 = vlaneseq
  %v3668 = vshrl.u32 %v3667, 7
  %v3669 = vsub.s32 0, %v3668
  %v3670 = vrot.slane %v3636, %v3669
  %v3671 = vadd.f32 %v3665, %v3670
  %v3672 = vadd.f32 %v3666, %v3670
  %v3673 = vpack.c.bf16 %v3672, %v3671
  %v3674 = vld [vmem:[%s7] sm:$0xff]
  %v3675 = vld [vmem:[%s7 + $0x8] sm:$0xff]
  %v3676 = vld [vmem:[%s7 + $0x10] sm:$0xff]
  %v3677 = vld [vmem:[%s7 + $0x18] sm:$0xff]
  %v3678 = vld [vmem:[%s7 + $0x20] sm:$0xff]
  %v3679 = vld [vmem:[%s7 + $0x28] sm:$0xff]
  %v3680 = vld [vmem:[%s7 + $0x30] sm:$0xff]
  %v3681 = vld [vmem:[%s7 + $0x38] sm:$0xff]
  %v3682 = vld [vmem:[%s7 + $0x40] sm:$0xff]
  %v3683 = vld [vmem:[%s7 + $0x48] sm:$0xff]
  %v3684 = vld [vmem:[%s7 + $0x50] sm:$0xff]
  %v3685 = vld [vmem:[%s7 + $0x58] sm:$0xff]
  %v3686 = vld [vmem:[%s7 + $0x60] sm:$0xff]
  %v3687 = vld [vmem:[%s7 + $0x68] sm:$0xff]
  %v3688 = vld [vmem:[%s7 + $0x70] sm:$0xff]
  %v3689 = vld [vmem:[%s7 + $0x78] sm:$0xff]
  %v3690 = vld [vmem:[%s8] sm:$0x3]
  %v3692 = vlaneseq
  %v3693 = vshrl.u32 %v3692, 7
  %v3694 = vsub.s32 0, %v3693
  %v3695 = vrot.slane %v3690, %v3694
  %v3696 = vlaneseq
  %v3697 = vshrl.u32 %v3696, 7
  %v3698 = vsub.s32 1, %v3697
  %v3699 = vrot.slane %v3690, %v3698
  %v3718 = vunpack.c.l.b16 %v3674
  %v3719 = vunpack.c.h.b16 %v3674
  %v3720 = vunpack.c.l.b16 %v3675
  %v3721 = vunpack.c.h.b16 %v3675
  %v3722 = vunpack.c.l.b16 %v3676
  %v3723 = vunpack.c.h.b16 %v3676
  %v3724 = vunpack.c.l.b16 %v3677
  %v3725 = vunpack.c.h.b16 %v3677
  %v3726 = vunpack.c.l.b16 %v3678
  %v3727 = vunpack.c.h.b16 %v3678
  %v3728 = vunpack.c.l.b16 %v3679
  %v3729 = vunpack.c.h.b16 %v3679
  %v3730 = vunpack.c.l.b16 %v3680
  %v3731 = vunpack.c.h.b16 %v3680
  %v3732 = vunpack.c.l.b16 %v3681
  %v3733 = vunpack.c.h.b16 %v3681
  %v3734 = vunpack.c.l.b16 %v3682
  %v3735 = vunpack.c.h.b16 %v3682
  %v3736 = vunpack.c.l.b16 %v3683
  %v3737 = vunpack.c.h.b16 %v3683
  %v3738 = vunpack.c.l.b16 %v3684
  %v3739 = vunpack.c.h.b16 %v3684
  %v3740 = vunpack.c.l.b16 %v3685
  %v3741 = vunpack.c.h.b16 %v3685
  %v3742 = vunpack.c.l.b16 %v3686
  %v3743 = vunpack.c.h.b16 %v3686
  %v3744 = vunpack.c.l.b16 %v3687
  %v3745 = vunpack.c.h.b16 %v3687
  %v3746 = vunpack.c.l.b16 %v3688
  %v3747 = vunpack.c.h.b16 %v3688
  %v3748 = vunpack.c.l.b16 %v3689
  %v3749 = vunpack.c.h.b16 %v3689
  %v3750 = vpack.c.b16 %v3720, %v3718
  %v3751 = vpack.c.b16 %v3721, %v3719
  %v3752 = vpack.c.b16 %v3724, %v3722
  %v3753 = vpack.c.b16 %v3725, %v3723
  %v3754 = vpack.c.b16 %v3728, %v3726
  %v3755 = vpack.c.b16 %v3729, %v3727
  %v3756 = vpack.c.b16 %v3732, %v3730
  %v3757 = vpack.c.b16 %v3733, %v3731
  %v3758 = vpack.c.b16 %v3736, %v3734
  %v3759 = vpack.c.b16 %v3737, %v3735
  %v3760 = vpack.c.b16 %v3740, %v3738
  %v3761 = vpack.c.b16 %v3741, %v3739
  %v3762 = vpack.c.b16 %v3744, %v3742
  %v3763 = vpack.c.b16 %v3745, %v3743
  %v3764 = vpack.c.b16 %v3748, %v3746
  %v3765 = vpack.c.b16 %v3749, %v3747
  %3782 = vmatprep.subr.bf16.mxu0 %v3751
  %3783 = vmatpush1.bf16.msra.mxu0 %v3750
  %3784 = vmatprep.subr.bf16.mxu0 %v3753
  %3785 = vmatpush1.bf16.msra.mxu0 %v3752
  %3786 = vmatprep.subr.bf16.mxu0 %v3755
  %3787 = vmatpush1.bf16.msra.mxu0 %v3754
  %3788 = vmatprep.subr.bf16.mxu0 %v3757
  %3789 = vmatpush1.bf16.msra.mxu0 %v3756
  %3790 = vmatprep.subr.bf16.mxu0 %v3759
  %3791 = vmatpush1.bf16.msra.mxu0 %v3758
  %3792 = vmatprep.subr.bf16.mxu0 %v3761
  %3793 = vmatpush1.bf16.msra.mxu0 %v3760
  %3794 = vmatprep.subr.bf16.mxu0 %v3763
  %3795 = vmatpush1.bf16.msra.mxu0 %v3762
  %3796 = vmatprep.subr.bf16.mxu0 %v3765
  %3797 = vmatpush1.bf16.msra.mxu0 %v3764
  %3798 = vmatprep.subr.bf16.mxu0 0
  %3799 = vmatpush1.bf16.msra.mxu0 0
  %3800 = vmatprep.subr.bf16.mxu0 0
  %3801 = vmatpush1.bf16.msra.mxu0 0
  %3802 = vmatprep.subr.bf16.mxu0 0
  %3803 = vmatpush1.bf16.msra.mxu0 0
  %3804 = vmatprep.subr.bf16.mxu0 0
  %3805 = vmatpush1.bf16.msra.mxu0 0
  %3806 = vmatprep.subr.bf16.mxu0 0
  %3807 = vmatpush1.bf16.msra.mxu0 0
  %3808 = vmatprep.subr.bf16.mxu0 0
  %3809 = vmatpush1.bf16.msra.mxu0 0
  %3810 = vmatprep.subr.bf16.mxu0 0
  %3811 = vmatpush1.bf16.msra.mxu0 0
  %3812 = vmatprep.subr.bf16.mxu0 0
  %3813 = vmatpush1.bf16.msra.mxu0 0
  %3814 = vmatprep.mubr.bf16.mxu0 0
  %3815 = vmatmul.mubr.bf16.gmra.mrb[0].mxu0 %v3673
  %v3816 = vpop.f32.mrb[0].mxu0
  %v3817 = vadd.f32 %v3695, %v3816
  %v3818 = vpop.f32.mrb[0].mxu0
  %v3819 = vadd.f32 %v3699, %v3818
  %v3820 = vpop.f32.mrb[0].mxu0
  %v3821 = vadd.f32 %v3695, %v3820
  %v3822 = vpop.f32.mrb[0].mxu0
  %v3823 = vadd.f32 %v3699, %v3822
  %3824 = vdwg.mxu0
  %3825 = vst [vmem:[%s9] sm:$0xff] %v3817
  %3826 = vst [vmem:[%s9 + $0x8] sm:$0xff] %v3819
  %3827 = vst [vmem:[%s9 + $0x10] sm:$0xff] %v3821
  %3828 = vst [vmem:[%s9 + $0x18] sm:$0xff] %v3823
  // Predicated region
  $region38: #{dummy_llm_forward.1} parent=0 // pred_check
    _
  $region39: #{dummy_llm_forward.1} parent=0 // pred_check_branch
    %3830 = sbr.rel (0) target = $region41
  $region40: #{dummy_llm_forward.1} parent=0 // pred_region
    _
  $region41: #{dummy_llm_forward.1} parent=0 // pred_fallthru
    _
  // Predicated region
  $region42: #{dummy_llm_forward.1} parent=0 // pred_check
    _
  $region43: #{dummy_llm_forward.1} parent=0 // pred_check_branch
    %3832 = sbr.rel (0) target = $region45
  $region44: #{dummy_llm_forward.1} parent=0 // pred_region
    _
  $region45: #{dummy_llm_forward.1} parent=0 // pred_fallthru
    _

</llo_original>
